<compile_context>
chip_gen: v7x
topology: tpu7x:2x2x1
jax: 0.10.0
libtpu: 0.0.40
codegen_flags: <defaults>
</compile_context>

<pallas_src>
import math
from functools import partial

import jax
import jax.numpy as jnp
from jax.experimental import pallas as pl
from jax.experimental.pallas import tpu as pltpu

EPS = 1e-5          # torch.nn.BatchNorm2d default eps
NEG_SLOPE = 0.01    # torch.nn.LeakyReLU default negative_slope


# ----------------------------------------------------------------------------
# VMEM-aware sizing helpers
# ----------------------------------------------------------------------------
def _vmem_budgets():
    """(per-step working-set budget, scoped vmem_limit_bytes) from device VMEM."""
    cap = 64 * 1024 * 1024          # conservative fallback (v7x per-core VMEM)
    try:
        info = pltpu.get_tpu_info()
        cap = int(getattr(info, "vmem_capacity_bytes", cap))
    except Exception:
        pass
    budget = min(cap // 4, 24 * 1024 * 1024)
    limit = min((cap * 3) // 4, 96 * 1024 * 1024)
    return budget, limit


def _choose_row_tile(n, h, w, pad, cin, cout, budget_bytes):
    """Pick the H row-tile.  Returns (th, split_halo).

    th divides h; if split_halo, 2*pad divides th so the bottom halo can be
    expressed as a (2*pad)-row block of the reflect-padded input.
    """
    wp = w + 2 * pad

    def fits(th):
        slab = (th + 2 * pad) * wp * cin * 4
        io = th * w * cout * 4 * 2                       # y out + residual in
        tmp = 6 * th * w * max(cin, cout) * 4            # in-kernel temporaries
        return 2 * (slab + io) + tmp <= budget_bytes

    step = (2 * pad) if pad > 0 else 1
    best = None
    for cand in range(min(h, 512), 0, -1):
        if h % cand == 0 and cand % step == 0 and fits(cand):
            best = cand
            break
    if best is None:
        return h, False          # whole padded image per grid step (fallback)
    # keep >= ~4 grid steps so input DMA overlaps compute even for small batches
    while (n * (h // best) < 4 and best % 2 == 0 and best // 2 >= step
           and (best // 2) % step == 0 and h % (best // 2) == 0):
        best //= 2
    return best, pad > 0


def _choose_flat(total, c):
    """Lane-dense 2D view (rows, lane) for the final pointwise kernel."""
    base = (c * 128) // math.gcd(c, 128)
    if total % base != 0:
        return total // c, c     # fallback: channel-minor layout
    lane = base
    while lane < 1024 and total % (lane * 2) == 0 and (total // (lane * 2)) >= 8:
        lane *= 2
    return total // lane, lane


def _choose_tr(rows, lane, budget_bytes):
    if rows <= 8:
        return rows
    cap = max(8, budget_bytes // (lane * 4 * 6))
    for cand in (2048, 1024, 512, 256, 128, 64, 32, 16, 8):
        if cand <= rows and rows % cand == 0 and cand <= cap:
            return cand
    return rows


# ----------------------------------------------------------------------------
# Kernels
# ----------------------------------------------------------------------------
def _conv_block_kernel(*refs, ks, th, out_w, apply_prev, apply_res, split_halo):
    """Fused [prev BN + LeakyReLU] -> conv (ks*ks shifted matmuls) -> [+residual]
    -> per-channel partial (sum, sumsq) for this layer's BatchNorm."""
    it = iter(refs)
    scale_ref = next(it) if apply_prev else None
    shift_ref = next(it) if apply_prev else None
    main_ref = next(it)
    halo_ref = next(it) if split_halo else None
    xres_ref = next(it) if apply_res else None
    w_ref = next(it)
    y_ref = next(it)
    stats_ref = next(it)

    # Halo'd input slab for this row tile: (th + 2*pad, Wp, Cin).
    slab = main_ref[0]
    if split_halo:
        slab = jnp.concatenate([slab, halo_ref[0]], axis=0)

    # Previous layer's BatchNorm (folded scale/shift) + LeakyReLU, applied to the
    # raw pre-activation slab.  Pointwise, so valid on the reflect-padded halo too.
    if apply_prev:
        slab = slab * scale_ref[...] + shift_ref[...]
        slab = jnp.where(slab >= 0.0, slab, NEG_SLOPE * slab)

    cin = slab.shape[-1]
    wk = w_ref[...]                      # (ks, ks, Cin, Cout), VMEM-resident
    cout = wk.shape[-1]
    m = th * out_w

    # Convolution as ks*ks shifted-slice matmuls (no HBM im2col).
    acc = jnp.zeros((m, cout), jnp.float32)
    for dy in range(ks):
        for dx in range(ks):
            patch = slab[dy:dy + th, dx:dx + out_w, :].reshape(m, cin)
            acc = acc + jnp.dot(patch, wk[dy, dx],
                                preferred_element_type=jnp.float32)

    if apply_res:
        acc = acc + xres_ref[0].reshape(m, cout)

    # Per-channel partial sums / sums-of-squares via MXU ones-matmul (keeps the
    # column reduction off the VPU/XLU slots).
    ones_row = jnp.ones((1, m), jnp.float32)
    s1 = jnp.dot(ones_row, acc, preferred_element_type=jnp.float32)
    s2 = jnp.dot(ones_row, acc * acc, preferred_element_type=jnp.float32)
    stats_ref[...] = jnp.concatenate([s1, s2], axis=0).reshape(1, 1, 2, cout)

    y_ref[...] = acc.reshape(1, th, out_w, cout)


def _bn_act_kernel(s_ref, scale_ref, shift_ref, o_ref):
    """Final BatchNorm (folded scale/shift) + LeakyReLU on a lane-dense view."""
    y = s_ref[...] * scale_ref[...] + shift_ref[...]
    o_ref[...] = jnp.where(y >= 0.0, y, NEG_SLOPE * y)


# ----------------------------------------------------------------------------
# pallas_call wrappers
# ----------------------------------------------------------------------------
def conv_block(xp, w_k, prev_scale, prev_shift, x_res,
               out_h, out_w, pad, th, split_halo, vmem_limit):
    n, hp, wp, cin = xp.shape
    ks = w_k.shape[0]
    cout = w_k.shape[3]
    t = out_h // th

    apply_prev = prev_scale is not None
    apply_res = x_res is not None

    inputs, in_specs = [], []
    if apply_prev:
        vec_spec = pl.BlockSpec((1, cin), lambda ni, ti: (0, 0))
        inputs += [prev_scale, prev_shift]
        in_specs += [vec_spec, vec_spec]

    if split_halo:
        halo_stride = th // (2 * pad)
        inputs.append(xp)
        in_specs.append(pl.BlockSpec((1, th, wp, cin),
                                     lambda ni, ti: (ni, ti, 0, 0)))
        inputs.append(xp)   # same array, 2*pad-row bottom-halo window
        in_specs.append(pl.BlockSpec((1, 2 * pad, wp, cin),
                                     lambda ni, ti: (ni, (ti + 1) * halo_stride, 0, 0)))
    else:
        inputs.append(xp)
        in_specs.append(pl.BlockSpec((1, th + 2 * pad, wp, cin),
                                     lambda ni, ti: (ni, ti, 0, 0)))

    if apply_res:
        cr = x_res.shape[3]
        inputs.append(x_res)
        in_specs.append(pl.BlockSpec((1, th, out_w, cr),
                                     lambda ni, ti: (ni, ti, 0, 0)))

    inputs.append(w_k)
    in_specs.append(pl.BlockSpec((ks, ks, cin, cout),
                                 lambda ni, ti: (0, 0, 0, 0)))

    out_shape = (jax.ShapeDtypeStruct((n, out_h, out_w, cout), jnp.float32),
                 jax.ShapeDtypeStruct((n, t, 2, cout), jnp.float32))
    out_specs = (pl.BlockSpec((1, th, out_w, cout), lambda ni, ti: (ni, ti, 0, 0)),
                 pl.BlockSpec((1, 1, 2, cout), lambda ni, ti: (ni, ti, 0, 0)))

    kernel = partial(_conv_block_kernel, ks=ks, th=th, out_w=out_w,
                     apply_prev=apply_prev, apply_res=apply_res,
                     split_halo=split_halo)
    return pl.pallas_call(
        kernel,
        grid=(n, t),
        in_specs=in_specs,
        out_specs=out_specs,
        out_shape=out_shape,
        compiler_params=pltpu.CompilerParams(
            dimension_semantics=("parallel", "parallel"),
            vmem_limit_bytes=vmem_limit),
    )(*inputs)


def final_bn_act(s_nhwc, scale_c, shift_c, vmem_budget, vmem_limit):
    n, h, w, c = s_nhwc.shape
    total = n * h * w * c
    rows, lane = _choose_flat(total, c)
    rep = lane // c
    s2 = s_nhwc.reshape(rows, lane)
    scale_row = jnp.tile(scale_c.reshape(1, c), (1, rep))
    shift_row = jnp.tile(shift_c.reshape(1, c), (1, rep))
    tr = _choose_tr(rows, lane, vmem_budget)

    out = pl.pallas_call(
        _bn_act_kernel,
        grid=(rows // tr,),
        in_specs=[pl.BlockSpec((tr, lane), lambda r: (r, 0)),
                  pl.BlockSpec((1, lane), lambda r: (0, 0)),
                  pl.BlockSpec((1, lane), lambda r: (0, 0))],
        out_specs=pl.BlockSpec((tr, lane), lambda r: (r, 0)),
        out_shape=jax.ShapeDtypeStruct((rows, lane), jnp.float32),
        compiler_params=pltpu.CompilerParams(
            dimension_semantics=("parallel",),
            vmem_limit_bytes=vmem_limit),
    )(s2, scale_row, shift_row)
    return out.reshape(n, h, w, c)


# ----------------------------------------------------------------------------
# Forward pass
# ----------------------------------------------------------------------------
def residual_layer_forward(x_nchw, params, kernel_size):
    assert kernel_size % 2 == 1, "reflect padding path assumes odd kernel_size"
    n, c, h, w = x_nchw.shape
    pad = kernel_size // 2
    x = jnp.transpose(x_nchw, (0, 2, 3, 1)).astype(jnp.float32)   # NHWC

    vmem_budget, vmem_limit = _vmem_budgets()
    cnt = float(n * h * w)

    n_layers = len(params["conv_ws"])
    y_prev = x                       # raw (pre-BatchNorm) activation feeding next conv
    prev_scale = prev_shift = None   # folded BN(batch-stats, gamma, beta) of previous layer
    out = None

    for i in range(n_layers):
        w_k = jnp.transpose(params["conv_ws"][i], (2, 3, 1, 0))   # (ks, ks, Cin, Cout)
        cin, cout = int(w_k.shape[2]), int(w_k.shape[3])
        is_last = (i == n_layers - 1)

        # Reflect-pad the raw activation (XLA glue).  The previous layer's BN +
        # LeakyReLU are applied to this padded slab *inside* the conv kernel.
        xp = y_prev if pad == 0 else jnp.pad(
            y_prev, ((0, 0), (pad, pad), (pad, pad), (0, 0)), mode="reflect")

        th, split_halo = _choose_row_tile(n, h, w, pad, cin, cout, vmem_budget)
        y, stats = conv_block(
            xp, w_k, prev_scale, prev_shift,
            x if is_last else None,
            out_h=h, out_w=w, pad=pad, th=th, split_halo=split_halo,
            vmem_limit=vmem_limit)

        # Exact batch statistics (biased variance == torch BN training mode).
        tot = jnp.sum(stats, axis=(0, 1))     # (2, Cout): [sum, sumsq]
        mean = tot[0] / cnt
        var = tot[1] / cnt - mean * mean
        inv = jax.lax.rsqrt(var + EPS)

        if not is_last:
            gamma, beta = params["bn_gammas"][i], params["bn_betas"][i]
            prev_scale = (gamma * inv).reshape(1, cout)
            prev_shift = (beta - mean * gamma * inv).reshape(1, cout)
            y_prev = y
        else:
            # y already includes the residual add; apply final BN + LeakyReLU.
            gamma, beta = params["final_gamma"], params["final_beta"]
            fscale = gamma * inv
            fshift = beta - mean * fscale
            out = final_bn_act(y, fscale, fshift, vmem_budget, vmem_limit)

    return jnp.transpose(out, (0, 3, 1, 2))   # back to NCHW


# ----------------------------------------------------------------------------
# Deterministic parameters + pure-JAX reference (for a sanity check)
# ----------------------------------------------------------------------------
def make_params(key, l, k, in_channels, kernel_size):
    conv_ws, bn_gammas, bn_betas = [], [], []
    keys = jax.random.split(key, l)
    prev = in_channels
    for i in range(l - 1):
        out_c = in_channels * k
        conv_ws.append(0.1 * jax.random.normal(
            keys[i], (out_c, prev, kernel_size, kernel_size), jnp.float32))
        bn_gammas.append(jnp.ones((out_c,), jnp.float32))
        bn_betas.append(jnp.zeros((out_c,), jnp.float32))
        prev = out_c
    conv_ws.append(0.1 * jax.random.normal(
        keys[l - 1], (in_channels, prev, kernel_size, kernel_size), jnp.float32))
    return dict(conv_ws=conv_ws, bn_gammas=bn_gammas, bn_betas=bn_betas,
                final_gamma=jnp.ones((in_channels,), jnp.float32),
                final_beta=jnp.zeros((in_channels,), jnp.float32))


def _reference_forward(x_nchw, params, ks):
    pad = ks // 2
    x = jnp.transpose(x_nchw, (0, 2, 3, 1)).astype(jnp.float32)
    h = x
    n_layers = len(params["conv_ws"])
    for i in range(n_layers):
        w = jnp.transpose(params["conv_ws"][i], (2, 3, 1, 0))   # HWIO
        hp = jnp.pad(h, ((0, 0), (pad, pad), (pad, pad), (0, 0)), mode="reflect")
        h = jax.lax.conv_general_dilated(
            hp, w, window_strides=(1, 1), padding="VALID",
            dimension_numbers=("NHWC", "HWIO", "NHWC"),
            precision=jax.lax.Precision.HIGHEST)
        if i < n_layers - 1:
            mean = h.mean(axis=(0, 1, 2))
            var = ((h - mean) ** 2).mean(axis=(0, 1, 2))
            h = (h - mean) * jax.lax.rsqrt(var + EPS)
            h = h * params["bn_gammas"][i] + params["bn_betas"][i]
            h = jnp.where(h >= 0, h, NEG_SLOPE * h)
    s = h + x
    mean = s.mean(axis=(0, 1, 2))
    var = ((s - mean) ** 2).mean(axis=(0, 1, 2))
    s = (s - mean) * jax.lax.rsqrt(var + EPS)
    s = s * params["final_gamma"] + params["final_beta"]
    s = jnp.where(s >= 0, s, NEG_SLOPE * s)
    return jnp.transpose(s, (0, 3, 1, 2))


if __name__ == "__main__":
    l, k, in_channels, kernel_size = 2, 2, 4, 3
    N, H, W = 2, 16, 16

    key = jax.random.PRNGKey(0)
    kx, kp = jax.random.split(key)
    x = jax.random.normal(kx, (N, in_channels, H, W), jnp.float32)  # NCHW input
    params = make_params(kp, l, k, in_channels, kernel_size)

    fwd = jax.jit(partial(residual_layer_forward, kernel_size=kernel_size))
    out = fwd(x, params)
    jax.block_until_ready(out)
    assert out.shape == (N, in_channels, H, W)

    ref = _reference_forward(x, params, kernel_size)
    err = float(jnp.max(jnp.abs(out - ref)))
    assert err < 1e-1, f"mismatch vs reference: max abs err {err}"
    print("KERNEL_OK")
</pallas_src>

<mosaic_0001>
module attributes {stable_mosaic.version = 11 : i64} {
  func.func @_conv_block_kernel(%arg0: i32, %arg1: i32, %arg2: memref<1x8x18x4xf32, #tpu.memory_space<vmem>>, %arg3: memref<1x2x18x4xf32, #tpu.memory_space<vmem>>, %arg4: memref<3x3x4x8xf32, #tpu.memory_space<vmem>>, %arg5: memref<1x8x16x8xf32, #tpu.memory_space<vmem>>, %arg6: memref<1x1x2x8xf32, #tpu.memory_space<vmem>>) attributes {dimension_semantics = [#tpu.dimension_semantics<parallel>, #tpu.dimension_semantics<parallel>], iteration_bounds = array<i64: 2, 2>, scalar_prefetch = 0 : i64, scratch_operands = 0 : i64, tpu.core_type = #tpu.core_type<tc>, window_params = [{transform_indices = @transform_0, window_bounds = array<i64: 1, 8, 18, 4>}, {transform_indices = @transform_1, window_bounds = array<i64: 1, 2, 18, 4>}, {pipeline_mode = #tpu.pipeline_mode<synchronous>, transform_indices = @transform_2, window_bounds = array<i64: 3, 3, 4, 8>}, {transform_indices = @transform_3, window_bounds = array<i64: 1, 8, 16, 8>}, {transform_indices = @transform_4, window_bounds = array<i64: 1, 1, 2, 8>}]} {
    %c0 = arith.constant 0 : index
    %c0_0 = arith.constant 0 : index
    %c0_1 = arith.constant 0 : index
    %c0_2 = arith.constant 0 : index
    %0 = vector.load %arg2[%c0, %c0_0, %c0_1, %c0_2] : memref<1x8x18x4xf32, #tpu.memory_space<vmem>>, vector<1x8x18x4xf32>
    %1 = vector.shape_cast %0 : vector<1x8x18x4xf32> to vector<8x18x4xf32>
    %c0_3 = arith.constant 0 : index
    %c0_4 = arith.constant 0 : index
    %c0_5 = arith.constant 0 : index
    %c0_6 = arith.constant 0 : index
    %2 = vector.load %arg3[%c0_3, %c0_4, %c0_5, %c0_6] : memref<1x2x18x4xf32, #tpu.memory_space<vmem>>, vector<1x2x18x4xf32>
    %3 = vector.shape_cast %2 : vector<1x2x18x4xf32> to vector<2x18x4xf32>
    %4 = tpu.concatenate %1, %3 in 0 : vector<8x18x4xf32>, vector<2x18x4xf32> -> vector<10x18x4xf32>
    %c0_7 = arith.constant 0 : index
    %c0_8 = arith.constant 0 : index
    %c0_9 = arith.constant 0 : index
    %c0_10 = arith.constant 0 : index
    %5 = vector.load %arg4[%c0_7, %c0_8, %c0_9, %c0_10] : memref<3x3x4x8xf32, #tpu.memory_space<vmem>>, vector<3x3x4x8xf32>
    %cst = arith.constant 0.000000e+00 : f32
    %6 = vector.broadcast %cst : f32 to vector<128x8xf32>
    %7 = vector.extract_strided_slice %4 {offsets = [0, 0, 0], sizes = [8, 16, 4], strides = [1, 1, 1]} : vector<10x18x4xf32> to vector<8x16x4xf32>
    %8 = vector.shape_cast %7 : vector<8x16x4xf32> to vector<128x4xf32>
    %9 = vector.extract_strided_slice %5 {offsets = [0, 0, 0, 0], sizes = [1, 1, 4, 8], strides = [1, 1, 1, 1]} : vector<3x3x4x8xf32> to vector<1x1x4x8xf32>
    %10 = vector.shape_cast %9 : vector<1x1x4x8xf32> to vector<4x8xf32>
    %cst_11 = arith.constant dense<0.000000e+00> : vector<128x8xf32>
    %11 = tpu.matmul %8, %10, %cst_11 {dimension_numbers = #tpu.dot_dimension_numbers<[1], [0], [0], [1], [0, 0, 1, 1], [], []>} : vector<128x4xf32>, vector<4x8xf32>, vector<128x8xf32> -> vector<128x8xf32>
    %12 = arith.addf %6, %11 : vector<128x8xf32>
    %13 = vector.extract_strided_slice %4 {offsets = [0, 1, 0], sizes = [8, 16, 4], strides = [1, 1, 1]} : vector<10x18x4xf32> to vector<8x16x4xf32>
    %14 = vector.shape_cast %13 : vector<8x16x4xf32> to vector<128x4xf32>
    %15 = vector.extract_strided_slice %5 {offsets = [0, 1, 0, 0], sizes = [1, 1, 4, 8], strides = [1, 1, 1, 1]} : vector<3x3x4x8xf32> to vector<1x1x4x8xf32>
    %16 = vector.shape_cast %15 : vector<1x1x4x8xf32> to vector<4x8xf32>
    %cst_12 = arith.constant dense<0.000000e+00> : vector<128x8xf32>
    %17 = tpu.matmul %14, %16, %cst_12 {dimension_numbers = #tpu.dot_dimension_numbers<[1], [0], [0], [1], [0, 0, 1, 1], [], []>} : vector<128x4xf32>, vector<4x8xf32>, vector<128x8xf32> -> vector<128x8xf32>
    %18 = arith.addf %12, %17 : vector<128x8xf32>
    %19 = vector.extract_strided_slice %4 {offsets = [0, 2, 0], sizes = [8, 16, 4], strides = [1, 1, 1]} : vector<10x18x4xf32> to vector<8x16x4xf32>
    %20 = vector.shape_cast %19 : vector<8x16x4xf32> to vector<128x4xf32>
    %21 = vector.extract_strided_slice %5 {offsets = [0, 2, 0, 0], sizes = [1, 1, 4, 8], strides = [1, 1, 1, 1]} : vector<3x3x4x8xf32> to vector<1x1x4x8xf32>
    %22 = vector.shape_cast %21 : vector<1x1x4x8xf32> to vector<4x8xf32>
    %cst_13 = arith.constant dense<0.000000e+00> : vector<128x8xf32>
    %23 = tpu.matmul %20, %22, %cst_13 {dimension_numbers = #tpu.dot_dimension_numbers<[1], [0], [0], [1], [0, 0, 1, 1], [], []>} : vector<128x4xf32>, vector<4x8xf32>, vector<128x8xf32> -> vector<128x8xf32>
    %24 = arith.addf %18, %23 : vector<128x8xf32>
    %25 = vector.extract_strided_slice %4 {offsets = [1, 0, 0], sizes = [8, 16, 4], strides = [1, 1, 1]} : vector<10x18x4xf32> to vector<8x16x4xf32>
    %26 = vector.shape_cast %25 : vector<8x16x4xf32> to vector<128x4xf32>
    %27 = vector.extract_strided_slice %5 {offsets = [1, 0, 0, 0], sizes = [1, 1, 4, 8], strides = [1, 1, 1, 1]} : vector<3x3x4x8xf32> to vector<1x1x4x8xf32>
    %28 = vector.shape_cast %27 : vector<1x1x4x8xf32> to vector<4x8xf32>
    %cst_14 = arith.constant dense<0.000000e+00> : vector<128x8xf32>
    %29 = tpu.matmul %26, %28, %cst_14 {dimension_numbers = #tpu.dot_dimension_numbers<[1], [0], [0], [1], [0, 0, 1, 1], [], []>} : vector<128x4xf32>, vector<4x8xf32>, vector<128x8xf32> -> vector<128x8xf32>
    %30 = arith.addf %24, %29 : vector<128x8xf32>
    %31 = vector.extract_strided_slice %4 {offsets = [1, 1, 0], sizes = [8, 16, 4], strides = [1, 1, 1]} : vector<10x18x4xf32> to vector<8x16x4xf32>
    %32 = vector.shape_cast %31 : vector<8x16x4xf32> to vector<128x4xf32>
    %33 = vector.extract_strided_slice %5 {offsets = [1, 1, 0, 0], sizes = [1, 1, 4, 8], strides = [1, 1, 1, 1]} : vector<3x3x4x8xf32> to vector<1x1x4x8xf32>
    %34 = vector.shape_cast %33 : vector<1x1x4x8xf32> to vector<4x8xf32>
    %cst_15 = arith.constant dense<0.000000e+00> : vector<128x8xf32>
    %35 = tpu.matmul %32, %34, %cst_15 {dimension_numbers = #tpu.dot_dimension_numbers<[1], [0], [0], [1], [0, 0, 1, 1], [], []>} : vector<128x4xf32>, vector<4x8xf32>, vector<128x8xf32> -> vector<128x8xf32>
    %36 = arith.addf %30, %35 : vector<128x8xf32>
    %37 = vector.extract_strided_slice %4 {offsets = [1, 2, 0], sizes = [8, 16, 4], strides = [1, 1, 1]} : vector<10x18x4xf32> to vector<8x16x4xf32>
    %38 = vector.shape_cast %37 : vector<8x16x4xf32> to vector<128x4xf32>
    %39 = vector.extract_strided_slice %5 {offsets = [1, 2, 0, 0], sizes = [1, 1, 4, 8], strides = [1, 1, 1, 1]} : vector<3x3x4x8xf32> to vector<1x1x4x8xf32>
    %40 = vector.shape_cast %39 : vector<1x1x4x8xf32> to vector<4x8xf32>
    %cst_16 = arith.constant dense<0.000000e+00> : vector<128x8xf32>
    %41 = tpu.matmul %38, %40, %cst_16 {dimension_numbers = #tpu.dot_dimension_numbers<[1], [0], [0], [1], [0, 0, 1, 1], [], []>} : vector<128x4xf32>, vector<4x8xf32>, vector<128x8xf32> -> vector<128x8xf32>
    %42 = arith.addf %36, %41 : vector<128x8xf32>
    %43 = vector.extract_strided_slice %4 {offsets = [2, 0, 0], sizes = [8, 16, 4], strides = [1, 1, 1]} : vector<10x18x4xf32> to vector<8x16x4xf32>
    %44 = vector.shape_cast %43 : vector<8x16x4xf32> to vector<128x4xf32>
    %45 = vector.extract_strided_slice %5 {offsets = [2, 0, 0, 0], sizes = [1, 1, 4, 8], strides = [1, 1, 1, 1]} : vector<3x3x4x8xf32> to vector<1x1x4x8xf32>
    %46 = vector.shape_cast %45 : vector<1x1x4x8xf32> to vector<4x8xf32>
    %cst_17 = arith.constant dense<0.000000e+00> : vector<128x8xf32>
    %47 = tpu.matmul %44, %46, %cst_17 {dimension_numbers = #tpu.dot_dimension_numbers<[1], [0], [0], [1], [0, 0, 1, 1], [], []>} : vector<128x4xf32>, vector<4x8xf32>, vector<128x8xf32> -> vector<128x8xf32>
    %48 = arith.addf %42, %47 : vector<128x8xf32>
    %49 = vector.extract_strided_slice %4 {offsets = [2, 1, 0], sizes = [8, 16, 4], strides = [1, 1, 1]} : vector<10x18x4xf32> to vector<8x16x4xf32>
    %50 = vector.shape_cast %49 : vector<8x16x4xf32> to vector<128x4xf32>
    %51 = vector.extract_strided_slice %5 {offsets = [2, 1, 0, 0], sizes = [1, 1, 4, 8], strides = [1, 1, 1, 1]} : vector<3x3x4x8xf32> to vector<1x1x4x8xf32>
    %52 = vector.shape_cast %51 : vector<1x1x4x8xf32> to vector<4x8xf32>
    %cst_18 = arith.constant dense<0.000000e+00> : vector<128x8xf32>
    %53 = tpu.matmul %50, %52, %cst_18 {dimension_numbers = #tpu.dot_dimension_numbers<[1], [0], [0], [1], [0, 0, 1, 1], [], []>} : vector<128x4xf32>, vector<4x8xf32>, vector<128x8xf32> -> vector<128x8xf32>
    %54 = arith.addf %48, %53 : vector<128x8xf32>
    %55 = vector.extract_strided_slice %4 {offsets = [2, 2, 0], sizes = [8, 16, 4], strides = [1, 1, 1]} : vector<10x18x4xf32> to vector<8x16x4xf32>
    %56 = vector.shape_cast %55 : vector<8x16x4xf32> to vector<128x4xf32>
    %57 = vector.extract_strided_slice %5 {offsets = [2, 2, 0, 0], sizes = [1, 1, 4, 8], strides = [1, 1, 1, 1]} : vector<3x3x4x8xf32> to vector<1x1x4x8xf32>
    %58 = vector.shape_cast %57 : vector<1x1x4x8xf32> to vector<4x8xf32>
    %cst_19 = arith.constant dense<0.000000e+00> : vector<128x8xf32>
    %59 = tpu.matmul %56, %58, %cst_19 {dimension_numbers = #tpu.dot_dimension_numbers<[1], [0], [0], [1], [0, 0, 1, 1], [], []>} : vector<128x4xf32>, vector<4x8xf32>, vector<128x8xf32> -> vector<128x8xf32>
    %60 = arith.addf %54, %59 : vector<128x8xf32>
    %cst_20 = arith.constant 1.000000e+00 : f32
    %61 = vector.broadcast %cst_20 : f32 to vector<1x128xf32>
    %cst_21 = arith.constant dense<0.000000e+00> : vector<1x8xf32>
    %62 = tpu.matmul %61, %60, %cst_21 {dimension_numbers = #tpu.dot_dimension_numbers<[1], [0], [0], [1], [0, 0, 1, 1], [], []>} : vector<1x128xf32>, vector<128x8xf32>, vector<1x8xf32> -> vector<1x8xf32>
    %63 = arith.mulf %60, %60 : vector<128x8xf32>
    %cst_22 = arith.constant dense<0.000000e+00> : vector<1x8xf32>
    %64 = tpu.matmul %61, %63, %cst_22 {dimension_numbers = #tpu.dot_dimension_numbers<[1], [0], [0], [1], [0, 0, 1, 1], [], []>} : vector<1x128xf32>, vector<128x8xf32>, vector<1x8xf32> -> vector<1x8xf32>
    %65 = tpu.concatenate %62, %64 in 0 : vector<1x8xf32>, vector<1x8xf32> -> vector<2x8xf32>
    %66 = vector.shape_cast %65 : vector<2x8xf32> to vector<1x1x2x8xf32>
    %c0_23 = arith.constant 0 : index
    %c0_24 = arith.constant 0 : index
    %c0_25 = arith.constant 0 : index
    %c0_26 = arith.constant 0 : index
    %67 = vector.load %arg6[%c0_23, %c0_24, %c0_25, %c0_26] : memref<1x1x2x8xf32, #tpu.memory_space<vmem>>, vector<1x1x2x8xf32>
    tpu.vector_store %arg6[%c0_23, %c0_24, %c0_25, %c0_26], %66 {strides = array<i32>} : memref<1x1x2x8xf32, #tpu.memory_space<vmem>>, vector<1x1x2x8xf32>,
    %68 = vector.shape_cast %60 : vector<128x8xf32> to vector<1x8x16x8xf32>
    %c0_27 = arith.constant 0 : index
    %c0_28 = arith.constant 0 : index
    %c0_29 = arith.constant 0 : index
    %c0_30 = arith.constant 0 : index
    %69 = vector.load %arg5[%c0_27, %c0_28, %c0_29, %c0_30] : memref<1x8x16x8xf32, #tpu.memory_space<vmem>>, vector<1x8x16x8xf32>
    tpu.vector_store %arg5[%c0_27, %c0_28, %c0_29, %c0_30], %68 {strides = array<i32>} : memref<1x8x16x8xf32, #tpu.memory_space<vmem>>, vector<1x8x16x8xf32>,
    return
  }
  func.func @transform_0(%arg0: i32, %arg1: i32) -> (i32, i32, i32, i32) {
    %c0_i32 = arith.constant 0 : i32
    %c0_i32_0 = arith.constant 0 : i32
    %c0_i32_1 = arith.constant 0 : i32
    return %arg0, %arg1, %c0_i32, %c0_i32_0 : i32, i32, i32, i32
  }
  func.func @transform_1(%arg0: i32, %arg1: i32) -> (i32, i32, i32, i32) {
    %c1_i32 = arith.constant 1 : i32
    %0 = arith.addi %arg1, %c1_i32 : i32
    %c4_i32 = arith.constant 4 : i32
    %1 = arith.muli %0, %c4_i32 : i32
    %c0_i32 = arith.constant 0 : i32
    %c0_i32_0 = arith.constant 0 : i32
    %c0_i32_1 = arith.constant 0 : i32
    return %arg0, %1, %c0_i32, %c0_i32_0 : i32, i32, i32, i32
  }
  func.func @transform_2(%arg0: i32, %arg1: i32) -> (i32, i32, i32, i32) {
    %c0_i32 = arith.constant 0 : i32
    %c0_i32_0 = arith.constant 0 : i32
    %c0_i32_1 = arith.constant 0 : i32
    %c0_i32_2 = arith.constant 0 : i32
    %c0_i32_3 = arith.constant 0 : i32
    return %c0_i32, %c0_i32_0, %c0_i32_1, %c0_i32_2 : i32, i32, i32, i32
  }
  func.func @transform_3(%arg0: i32, %arg1: i32) -> (i32, i32, i32, i32) {
    %c0_i32 = arith.constant 0 : i32
    %c0_i32_0 = arith.constant 0 : i32
    %c0_i32_1 = arith.constant 0 : i32
    return %arg0, %arg1, %c0_i32, %c0_i32_0 : i32, i32, i32, i32
  }
  func.func @transform_4(%arg0: i32, %arg1: i32) -> (i32, i32, i32, i32) {
    %c0_i32 = arith.constant 0 : i32
    %c0_i32_0 = arith.constant 0 : i32
    %c0_i32_1 = arith.constant 0 : i32
    return %arg0, %arg1, %c0_i32, %c0_i32_0 : i32, i32, i32, i32
  }
}

module attributes {stable_mosaic.version = 11 : i64} {
  func.func @_conv_block_kernel(%arg0: i32, %arg1: i32, %arg2: memref<1x8xf32, #tpu.memory_space<vmem>>, %arg3: memref<1x8xf32, #tpu.memory_space<vmem>>, %arg4: memref<1x8x18x8xf32, #tpu.memory_space<vmem>>, %arg5: memref<1x2x18x8xf32, #tpu.memory_space<vmem>>, %arg6: memref<1x8x16x4xf32, #tpu.memory_space<vmem>>, %arg7: memref<3x3x8x4xf32, #tpu.memory_space<vmem>>, %arg8: memref<1x8x16x4xf32, #tpu.memory_space<vmem>>, %arg9: memref<1x1x2x4xf32, #tpu.memory_space<vmem>>) attributes {dimension_semantics = [#tpu.dimension_semantics<parallel>, #tpu.dimension_semantics<parallel>], iteration_bounds = array<i64: 2, 2>, scalar_prefetch = 0 : i64, scratch_operands = 0 : i64, tpu.core_type = #tpu.core_type<tc>, window_params = [{pipeline_mode = #tpu.pipeline_mode<synchronous>, transform_indices = @transform_0, window_bounds = array<i64: 1, 8>}, {pipeline_mode = #tpu.pipeline_mode<synchronous>, transform_indices = @transform_1, window_bounds = array<i64: 1, 8>}, {transform_indices = @transform_2, window_bounds = array<i64: 1, 8, 18, 8>}, {transform_indices = @transform_3, window_bounds = array<i64: 1, 2, 18, 8>}, {transform_indices = @transform_4, window_bounds = array<i64: 1, 8, 16, 4>}, {pipeline_mode = #tpu.pipeline_mode<synchronous>, transform_indices = @transform_5, window_bounds = array<i64: 3, 3, 8, 4>}, {transform_indices = @transform_6, window_bounds = array<i64: 1, 8, 16, 4>}, {transform_indices = @transform_7, window_bounds = array<i64: 1, 1, 2, 4>}]} {
    %c0 = arith.constant 0 : index
    %c0_0 = arith.constant 0 : index
    %c0_1 = arith.constant 0 : index
    %c0_2 = arith.constant 0 : index
    %0 = vector.load %arg4[%c0, %c0_0, %c0_1, %c0_2] : memref<1x8x18x8xf32, #tpu.memory_space<vmem>>, vector<1x8x18x8xf32>
    %1 = vector.shape_cast %0 : vector<1x8x18x8xf32> to vector<8x18x8xf32>
    %c0_3 = arith.constant 0 : index
    %c0_4 = arith.constant 0 : index
    %c0_5 = arith.constant 0 : index
    %c0_6 = arith.constant 0 : index
    %2 = vector.load %arg5[%c0_3, %c0_4, %c0_5, %c0_6] : memref<1x2x18x8xf32, #tpu.memory_space<vmem>>, vector<1x2x18x8xf32>
    %3 = vector.shape_cast %2 : vector<1x2x18x8xf32> to vector<2x18x8xf32>
    %4 = tpu.concatenate %1, %3 in 0 : vector<8x18x8xf32>, vector<2x18x8xf32> -> vector<10x18x8xf32>
    %c0_7 = arith.constant 0 : index
    %c0_8 = arith.constant 0 : index
    %5 = vector.load %arg2[%c0_7, %c0_8] : memref<1x8xf32, #tpu.memory_space<vmem>>, vector<1x8xf32>
    %6 = vector.shape_cast %5 : vector<1x8xf32> to vector<1x1x8xf32>
    %7 = vector.broadcast %6 : vector<1x1x8xf32> to vector<10x18x8xf32>
    %8 = arith.mulf %4, %7 : vector<10x18x8xf32>
    %c0_9 = arith.constant 0 : index
    %c0_10 = arith.constant 0 : index
    %9 = vector.load %arg3[%c0_9, %c0_10] : memref<1x8xf32, #tpu.memory_space<vmem>>, vector<1x8xf32>
    %10 = vector.shape_cast %9 : vector<1x8xf32> to vector<1x1x8xf32>
    %11 = vector.broadcast %10 : vector<1x1x8xf32> to vector<10x18x8xf32>
    %12 = arith.addf %8, %11 : vector<10x18x8xf32>
    %cst = arith.constant 0.000000e+00 : f32
    %13 = vector.broadcast %cst : f32 to vector<10x18x8xf32>
    %14 = arith.cmpf oge, %12, %13 : vector<10x18x8xf32>
    %cst_11 = arith.constant 0.00999999977 : f32
    %15 = vector.broadcast %cst_11 : f32 to vector<10x18x8xf32>
    %16 = arith.mulf %15, %12 : vector<10x18x8xf32>
    %17 = arith.select %14, %12, %16 : vector<10x18x8xi1>, vector<10x18x8xf32>
    %c0_12 = arith.constant 0 : index
    %c0_13 = arith.constant 0 : index
    %c0_14 = arith.constant 0 : index
    %c0_15 = arith.constant 0 : index
    %18 = vector.load %arg7[%c0_12, %c0_13, %c0_14, %c0_15] : memref<3x3x8x4xf32, #tpu.memory_space<vmem>>, vector<3x3x8x4xf32>
    %cst_16 = arith.constant 0.000000e+00 : f32
    %19 = vector.broadcast %cst_16 : f32 to vector<128x4xf32>
    %20 = vector.extract_strided_slice %17 {offsets = [0, 0, 0], sizes = [8, 16, 8], strides = [1, 1, 1]} : vector<10x18x8xf32> to vector<8x16x8xf32>
    %21 = vector.shape_cast %20 : vector<8x16x8xf32> to vector<128x8xf32>
    %22 = vector.extract_strided_slice %18 {offsets = [0, 0, 0, 0], sizes = [1, 1, 8, 4], strides = [1, 1, 1, 1]} : vector<3x3x8x4xf32> to vector<1x1x8x4xf32>
    %23 = vector.shape_cast %22 : vector<1x1x8x4xf32> to vector<8x4xf32>
    %cst_17 = arith.constant dense<0.000000e+00> : vector<128x4xf32>
    %24 = tpu.matmul %21, %23, %cst_17 {dimension_numbers = #tpu.dot_dimension_numbers<[1], [0], [0], [1], [0, 0, 1, 1], [], []>} : vector<128x8xf32>, vector<8x4xf32>, vector<128x4xf32> -> vector<128x4xf32>
    %25 = arith.addf %19, %24 : vector<128x4xf32>
    %26 = vector.extract_strided_slice %17 {offsets = [0, 1, 0], sizes = [8, 16, 8], strides = [1, 1, 1]} : vector<10x18x8xf32> to vector<8x16x8xf32>
    %27 = vector.shape_cast %26 : vector<8x16x8xf32> to vector<128x8xf32>
    %28 = vector.extract_strided_slice %18 {offsets = [0, 1, 0, 0], sizes = [1, 1, 8, 4], strides = [1, 1, 1, 1]} : vector<3x3x8x4xf32> to vector<1x1x8x4xf32>
    %29 = vector.shape_cast %28 : vector<1x1x8x4xf32> to vector<8x4xf32>
    %cst_18 = arith.constant dense<0.000000e+00> : vector<128x4xf32>
    %30 = tpu.matmul %27, %29, %cst_18 {dimension_numbers = #tpu.dot_dimension_numbers<[1], [0], [0], [1], [0, 0, 1, 1], [], []>} : vector<128x8xf32>, vector<8x4xf32>, vector<128x4xf32> -> vector<128x4xf32>
    %31 = arith.addf %25, %30 : vector<128x4xf32>
    %32 = vector.extract_strided_slice %17 {offsets = [0, 2, 0], sizes = [8, 16, 8], strides = [1, 1, 1]} : vector<10x18x8xf32> to vector<8x16x8xf32>
    %33 = vector.shape_cast %32 : vector<8x16x8xf32> to vector<128x8xf32>
    %34 = vector.extract_strided_slice %18 {offsets = [0, 2, 0, 0], sizes = [1, 1, 8, 4], strides = [1, 1, 1, 1]} : vector<3x3x8x4xf32> to vector<1x1x8x4xf32>
    %35 = vector.shape_cast %34 : vector<1x1x8x4xf32> to vector<8x4xf32>
    %cst_19 = arith.constant dense<0.000000e+00> : vector<128x4xf32>
    %36 = tpu.matmul %33, %35, %cst_19 {dimension_numbers = #tpu.dot_dimension_numbers<[1], [0], [0], [1], [0, 0, 1, 1], [], []>} : vector<128x8xf32>, vector<8x4xf32>, vector<128x4xf32> -> vector<128x4xf32>
    %37 = arith.addf %31, %36 : vector<128x4xf32>
    %38 = vector.extract_strided_slice %17 {offsets = [1, 0, 0], sizes = [8, 16, 8], strides = [1, 1, 1]} : vector<10x18x8xf32> to vector<8x16x8xf32>
    %39 = vector.shape_cast %38 : vector<8x16x8xf32> to vector<128x8xf32>
    %40 = vector.extract_strided_slice %18 {offsets = [1, 0, 0, 0], sizes = [1, 1, 8, 4], strides = [1, 1, 1, 1]} : vector<3x3x8x4xf32> to vector<1x1x8x4xf32>
    %41 = vector.shape_cast %40 : vector<1x1x8x4xf32> to vector<8x4xf32>
    %cst_20 = arith.constant dense<0.000000e+00> : vector<128x4xf32>
    %42 = tpu.matmul %39, %41, %cst_20 {dimension_numbers = #tpu.dot_dimension_numbers<[1], [0], [0], [1], [0, 0, 1, 1], [], []>} : vector<128x8xf32>, vector<8x4xf32>, vector<128x4xf32> -> vector<128x4xf32>
    %43 = arith.addf %37, %42 : vector<128x4xf32>
    %44 = vector.extract_strided_slice %17 {offsets = [1, 1, 0], sizes = [8, 16, 8], strides = [1, 1, 1]} : vector<10x18x8xf32> to vector<8x16x8xf32>
    %45 = vector.shape_cast %44 : vector<8x16x8xf32> to vector<128x8xf32>
    %46 = vector.extract_strided_slice %18 {offsets = [1, 1, 0, 0], sizes = [1, 1, 8, 4], strides = [1, 1, 1, 1]} : vector<3x3x8x4xf32> to vector<1x1x8x4xf32>
    %47 = vector.shape_cast %46 : vector<1x1x8x4xf32> to vector<8x4xf32>
    %cst_21 = arith.constant dense<0.000000e+00> : vector<128x4xf32>
    %48 = tpu.matmul %45, %47, %cst_21 {dimension_numbers = #tpu.dot_dimension_numbers<[1], [0], [0], [1], [0, 0, 1, 1], [], []>} : vector<128x8xf32>, vector<8x4xf32>, vector<128x4xf32> -> vector<128x4xf32>
    %49 = arith.addf %43, %48 : vector<128x4xf32>
    %50 = vector.extract_strided_slice %17 {offsets = [1, 2, 0], sizes = [8, 16, 8], strides = [1, 1, 1]} : vector<10x18x8xf32> to vector<8x16x8xf32>
    %51 = vector.shape_cast %50 : vector<8x16x8xf32> to vector<128x8xf32>
    %52 = vector.extract_strided_slice %18 {offsets = [1, 2, 0, 0], sizes = [1, 1, 8, 4], strides = [1, 1, 1, 1]} : vector<3x3x8x4xf32> to vector<1x1x8x4xf32>
    %53 = vector.shape_cast %52 : vector<1x1x8x4xf32> to vector<8x4xf32>
    %cst_22 = arith.constant dense<0.000000e+00> : vector<128x4xf32>
    %54 = tpu.matmul %51, %53, %cst_22 {dimension_numbers = #tpu.dot_dimension_numbers<[1], [0], [0], [1], [0, 0, 1, 1], [], []>} : vector<128x8xf32>, vector<8x4xf32>, vector<128x4xf32> -> vector<128x4xf32>
    %55 = arith.addf %49, %54 : vector<128x4xf32>
    %56 = vector.extract_strided_slice %17 {offsets = [2, 0, 0], sizes = [8, 16, 8], strides = [1, 1, 1]} : vector<10x18x8xf32> to vector<8x16x8xf32>
    %57 = vector.shape_cast %56 : vector<8x16x8xf32> to vector<128x8xf32>
    %58 = vector.extract_strided_slice %18 {offsets = [2, 0, 0, 0], sizes = [1, 1, 8, 4], strides = [1, 1, 1, 1]} : vector<3x3x8x4xf32> to vector<1x1x8x4xf32>
    %59 = vector.shape_cast %58 : vector<1x1x8x4xf32> to vector<8x4xf32>
    %cst_23 = arith.constant dense<0.000000e+00> : vector<128x4xf32>
    %60 = tpu.matmul %57, %59, %cst_23 {dimension_numbers = #tpu.dot_dimension_numbers<[1], [0], [0], [1], [0, 0, 1, 1], [], []>} : vector<128x8xf32>, vector<8x4xf32>, vector<128x4xf32> -> vector<128x4xf32>
    %61 = arith.addf %55, %60 : vector<128x4xf32>
    %62 = vector.extract_strided_slice %17 {offsets = [2, 1, 0], sizes = [8, 16, 8], strides = [1, 1, 1]} : vector<10x18x8xf32> to vector<8x16x8xf32>
    %63 = vector.shape_cast %62 : vector<8x16x8xf32> to vector<128x8xf32>
    %64 = vector.extract_strided_slice %18 {offsets = [2, 1, 0, 0], sizes = [1, 1, 8, 4], strides = [1, 1, 1, 1]} : vector<3x3x8x4xf32> to vector<1x1x8x4xf32>
    %65 = vector.shape_cast %64 : vector<1x1x8x4xf32> to vector<8x4xf32>
    %cst_24 = arith.constant dense<0.000000e+00> : vector<128x4xf32>
    %66 = tpu.matmul %63, %65, %cst_24 {dimension_numbers = #tpu.dot_dimension_numbers<[1], [0], [0], [1], [0, 0, 1, 1], [], []>} : vector<128x8xf32>, vector<8x4xf32>, vector<128x4xf32> -> vector<128x4xf32>
    %67 = arith.addf %61, %66 : vector<128x4xf32>
    %68 = vector.extract_strided_slice %17 {offsets = [2, 2, 0], sizes = [8, 16, 8], strides = [1, 1, 1]} : vector<10x18x8xf32> to vector<8x16x8xf32>
    %69 = vector.shape_cast %68 : vector<8x16x8xf32> to vector<128x8xf32>
    %70 = vector.extract_strided_slice %18 {offsets = [2, 2, 0, 0], sizes = [1, 1, 8, 4], strides = [1, 1, 1, 1]} : vector<3x3x8x4xf32> to vector<1x1x8x4xf32>
    %71 = vector.shape_cast %70 : vector<1x1x8x4xf32> to vector<8x4xf32>
    %cst_25 = arith.constant dense<0.000000e+00> : vector<128x4xf32>
    %72 = tpu.matmul %69, %71, %cst_25 {dimension_numbers = #tpu.dot_dimension_numbers<[1], [0], [0], [1], [0, 0, 1, 1], [], []>} : vector<128x8xf32>, vector<8x4xf32>, vector<128x4xf32> -> vector<128x4xf32>
    %73 = arith.addf %67, %72 : vector<128x4xf32>
    %c0_26 = arith.constant 0 : index
    %c0_27 = arith.constant 0 : index
    %c0_28 = arith.constant 0 : index
    %c0_29 = arith.constant 0 : index
    %74 = vector.load %arg6[%c0_26, %c0_27, %c0_28, %c0_29] : memref<1x8x16x4xf32, #tpu.memory_space<vmem>>, vector<1x8x16x4xf32>
    %75 = vector.shape_cast %74 : vector<1x8x16x4xf32> to vector<8x16x4xf32>
    %76 = vector.shape_cast %75 : vector<8x16x4xf32> to vector<128x4xf32>
    %77 = arith.addf %73, %76 : vector<128x4xf32>
    %cst_30 = arith.constant 1.000000e+00 : f32
    %78 = vector.broadcast %cst_30 : f32 to vector<1x128xf32>
    %cst_31 = arith.constant dense<0.000000e+00> : vector<1x4xf32>
    %79 = tpu.matmul %78, %77, %cst_31 {dimension_numbers = #tpu.dot_dimension_numbers<[1], [0], [0], [1], [0, 0, 1, 1], [], []>} : vector<1x128xf32>, vector<128x4xf32>, vector<1x4xf32> -> vector<1x4xf32>
    %80 = arith.mulf %77, %77 : vector<128x4xf32>
    %cst_32 = arith.constant dense<0.000000e+00> : vector<1x4xf32>
    %81 = tpu.matmul %78, %80, %cst_32 {dimension_numbers = #tpu.dot_dimension_numbers<[1], [0], [0], [1], [0, 0, 1, 1], [], []>} : vector<1x128xf32>, vector<128x4xf32>, vector<1x4xf32> -> vector<1x4xf32>
    %82 = tpu.concatenate %79, %81 in 0 : vector<1x4xf32>, vector<1x4xf32> -> vector<2x4xf32>
    %83 = vector.shape_cast %82 : vector<2x4xf32> to vector<1x1x2x4xf32>
    %c0_33 = arith.constant 0 : index
    %c0_34 = arith.constant 0 : index
    %c0_35 = arith.constant 0 : index
    %c0_36 = arith.constant 0 : index
    %84 = vector.load %arg9[%c0_33, %c0_34, %c0_35, %c0_36] : memref<1x1x2x4xf32, #tpu.memory_space<vmem>>, vector<1x1x2x4xf32>
    tpu.vector_store %arg9[%c0_33, %c0_34, %c0_35, %c0_36], %83 {strides = array<i32>} : memref<1x1x2x4xf32, #tpu.memory_space<vmem>>, vector<1x1x2x4xf32>,
    %85 = vector.shape_cast %77 : vector<128x4xf32> to vector<1x8x16x4xf32>
    %c0_37 = arith.constant 0 : index
    %c0_38 = arith.constant 0 : index
    %c0_39 = arith.constant 0 : index
    %c0_40 = arith.constant 0 : index
    %86 = vector.load %arg8[%c0_37, %c0_38, %c0_39, %c0_40] : memref<1x8x16x4xf32, #tpu.memory_space<vmem>>, vector<1x8x16x4xf32>
    tpu.vector_store %arg8[%c0_37, %c0_38, %c0_39, %c0_40], %85 {strides = array<i32>} : memref<1x8x16x4xf32, #tpu.memory_space<vmem>>, vector<1x8x16x4xf32>,
    return
  }
  func.func @transform_0(%arg0: i32, %arg1: i32) -> (i32, i32) {
    %c0_i32 = arith.constant 0 : i32
    %c0_i32_0 = arith.constant 0 : i32
    %c0_i32_1 = arith.constant 0 : i32
    return %c0_i32, %c0_i32_0 : i32, i32
  }
  func.func @transform_1(%arg0: i32, %arg1: i32) -> (i32, i32) {
    %c0_i32 = arith.constant 0 : i32
    %c0_i32_0 = arith.constant 0 : i32
    %c0_i32_1 = arith.constant 0 : i32
    return %c0_i32, %c0_i32_0 : i32, i32
  }
  func.func @transform_2(%arg0: i32, %arg1: i32) -> (i32, i32, i32, i32) {
    %c0_i32 = arith.constant 0 : i32
    %c0_i32_0 = arith.constant 0 : i32
    %c0_i32_1 = arith.constant 0 : i32
    return %arg0, %arg1, %c0_i32, %c0_i32_0 : i32, i32, i32, i32
  }
  func.func @transform_3(%arg0: i32, %arg1: i32) -> (i32, i32, i32, i32) {
    %c1_i32 = arith.constant 1 : i32
    %0 = arith.addi %arg1, %c1_i32 : i32
    %c4_i32 = arith.constant 4 : i32
    %1 = arith.muli %0, %c4_i32 : i32
    %c0_i32 = arith.constant 0 : i32
    %c0_i32_0 = arith.constant 0 : i32
    %c0_i32_1 = arith.constant 0 : i32
    return %arg0, %1, %c0_i32, %c0_i32_0 : i32, i32, i32, i32
  }
  func.func @transform_4(%arg0: i32, %arg1: i32) -> (i32, i32, i32, i32) {
    %c0_i32 = arith.constant 0 : i32
    %c0_i32_0 = arith.constant 0 : i32
    %c0_i32_1 = arith.constant 0 : i32
    return %arg0, %arg1, %c0_i32, %c0_i32_0 : i32, i32, i32, i32
  }
  func.func @transform_5(%arg0: i32, %arg1: i32) -> (i32, i32, i32, i32) {
    %c0_i32 = arith.constant 0 : i32
    %c0_i32_0 = arith.constant 0 : i32
    %c0_i32_1 = arith.constant 0 : i32
    %c0_i32_2 = arith.constant 0 : i32
    %c0_i32_3 = arith.constant 0 : i32
    return %c0_i32, %c0_i32_0, %c0_i32_1, %c0_i32_2 : i32, i32, i32, i32
  }
  func.func @transform_6(%arg0: i32, %arg1: i32) -> (i32, i32, i32, i32) {
    %c0_i32 = arith.constant 0 : i32
    %c0_i32_0 = arith.constant 0 : i32
    %c0_i32_1 = arith.constant 0 : i32
    return %arg0, %arg1, %c0_i32, %c0_i32_0 : i32, i32, i32, i32
  }
  func.func @transform_7(%arg0: i32, %arg1: i32) -> (i32, i32, i32, i32) {
    %c0_i32 = arith.constant 0 : i32
    %c0_i32_0 = arith.constant 0 : i32
    %c0_i32_1 = arith.constant 0 : i32
    return %arg0, %arg1, %c0_i32, %c0_i32_0 : i32, i32, i32, i32
  }
}

module attributes {stable_mosaic.version = 11 : i64} {
  func.func @_bn_act_kernel(%arg0: i32, %arg1: memref<8x256xf32, #tpu.memory_space<vmem>>, %arg2: memref<1x256xf32, #tpu.memory_space<vmem>>, %arg3: memref<1x256xf32, #tpu.memory_space<vmem>>, %arg4: memref<8x256xf32, #tpu.memory_space<vmem>>) attributes {dimension_semantics = [#tpu.dimension_semantics<parallel>], iteration_bounds = array<i64: 1>, scalar_prefetch = 0 : i64, scratch_operands = 0 : i64, tpu.core_type = #tpu.core_type<tc>, window_params = [{transform_indices = @transform_0, window_bounds = array<i64: 8, 256>}, {pipeline_mode = #tpu.pipeline_mode<synchronous>, transform_indices = @transform_1, window_bounds = array<i64: 1, 256>}, {pipeline_mode = #tpu.pipeline_mode<synchronous>, transform_indices = @transform_2, window_bounds = array<i64: 1, 256>}, {transform_indices = @transform_3, window_bounds = array<i64: 8, 256>}]} {
    %c0 = arith.constant 0 : index
    %c0_0 = arith.constant 0 : index
    %0 = vector.load %arg1[%c0, %c0_0] : memref<8x256xf32, #tpu.memory_space<vmem>>, vector<8x256xf32>
    %c0_1 = arith.constant 0 : index
    %c0_2 = arith.constant 0 : index
    %1 = vector.load %arg2[%c0_1, %c0_2] : memref<1x256xf32, #tpu.memory_space<vmem>>, vector<1x256xf32>
    %2 = vector.broadcast %1 : vector<1x256xf32> to vector<8x256xf32>
    %3 = arith.mulf %0, %2 : vector<8x256xf32>
    %c0_3 = arith.constant 0 : index
    %c0_4 = arith.constant 0 : index
    %4 = vector.load %arg3[%c0_3, %c0_4] : memref<1x256xf32, #tpu.memory_space<vmem>>, vector<1x256xf32>
    %5 = vector.broadcast %4 : vector<1x256xf32> to vector<8x256xf32>
    %6 = arith.addf %3, %5 : vector<8x256xf32>
    %cst = arith.constant 0.000000e+00 : f32
    %7 = vector.broadcast %cst : f32 to vector<8x256xf32>
    %8 = arith.cmpf oge, %6, %7 : vector<8x256xf32>
    %cst_5 = arith.constant 0.00999999977 : f32
    %9 = vector.broadcast %cst_5 : f32 to vector<8x256xf32>
    %10 = arith.mulf %9, %6 : vector<8x256xf32>
    %11 = arith.select %8, %6, %10 : vector<8x256xi1>, vector<8x256xf32>
    %c0_6 = arith.constant 0 : index
    %c0_7 = arith.constant 0 : index
    %12 = vector.load %arg4[%c0_6, %c0_7] : memref<8x256xf32, #tpu.memory_space<vmem>>, vector<8x256xf32>
    tpu.vector_store %arg4[%c0_6, %c0_7], %11 {strides = array<i32>} : memref<8x256xf32, #tpu.memory_space<vmem>>, vector<8x256xf32>,
    return
  }
  func.func @transform_0(%arg0: i32) -> (i32, i32) {
    %c0_i32 = arith.constant 0 : i32
    %c0_i32_0 = arith.constant 0 : i32
    return %arg0, %c0_i32 : i32, i32
  }
  func.func @transform_1(%arg0: i32) -> (i32, i32) {
    %c0_i32 = arith.constant 0 : i32
    %c0_i32_0 = arith.constant 0 : i32
    %c0_i32_1 = arith.constant 0 : i32
    return %c0_i32, %c0_i32_0 : i32, i32
  }
  func.func @transform_2(%arg0: i32) -> (i32, i32) {
    %c0_i32 = arith.constant 0 : i32
    %c0_i32_0 = arith.constant 0 : i32
    %c0_i32_1 = arith.constant 0 : i32
    return %c0_i32, %c0_i32_0 : i32, i32
  }
  func.func @transform_3(%arg0: i32) -> (i32, i32) {
    %c0_i32 = arith.constant 0 : i32
    %c0_i32_0 = arith.constant 0 : i32
    return %arg0, %c0_i32 : i32, i32
  }
}

</mosaic_0001>

<llo_original>
// kernel: residual_layer_forward.3
$region0: #{residual_layer_forward.3}
  #allocation0 [shape = 'u32[]', space=smem, size = 0x4, offset = 0x4, fixed_abs, tag = 'smem constant byte address 0x4 - core index']
  #allocation1 [shape = 'u32[144,128]{1,0:T(1,128)}', space=vmem, size = 0x12000, scoped, tag = 'internal scratch']
  %s0 = inlined_call_operand.vmem [shape: f32[2,18,18,4], index: 0, kind: input, shape index: {}, may-alias: {0,1}]
  %s1 = inlined_call_operand.vmem [shape: f32[2,18,18,4], index: 1, kind: input, shape index: {}, may-alias: {0,1}]
  %s2 = inlined_call_operand.vmem [shape: f32[3,3,4,8], index: 2, kind: input, shape index: {}]
  %s3 = inlined_call_operand.vmem [shape: f32[2,16,16,8], index: 3, kind: output, shape index: {0}]
  %s4 = inlined_call_operand.vmem [shape: f32[2,2,2,8], index: 4, kind: output, shape index: {1}]
  %5 = xla_tuple %s3, %s4
  %s6 = sld [smem:[#allocation0]]
  $region53: #{residual_layer_forward.3} parent=0
    _
  %s8 = ssub.s32 1, %s6
  %s9 = scalar_select 0, %s8, %s6
  loop: start=0, step=1, limit=6
  $region2: #{residual_layer_forward.3} parent=0 // loop_pre_header
    _
  $region3: #{residual_layer_forward.3} parent=0 // loop_header
    %s11 = sphi 0, %s15
    %p12 = scmp.ge.s32.totalorder %s11, 6
    %s18 = sphi 0, %s30
    %s19 = sphi 0, %s26
    %s20 = sphi 0, %s18
    %s21 = sphi 0, %s19
    %s22 = sphi 0, %s20
    %s23 = sphi 0, %s21
    %s35 = sphi 0, %s37
    %s38 = sphi 0, %s35
    %s39 = sphi 0, %s38
    %s55 = sphi 0, %s39
    %s67 = sphi 0, %s69
    %s70 = sphi 0, %s67
    %s71 = sphi 0, %s70
    %s87 = sphi 0, %s71
    %s91 = sphi 0, %s91
    %s93 = sphi 0, %s91
    %s94 = sphi 0, %s93
    %s108 = sphi 0, %s94
    %s116 = sphi 0, %s118
    %s119 = sphi 0, %s116
    %s120 = sphi 0, %s119
    %s136 = sphi 0, %s120
    %s144 = sphi 0, %s146
    %s147 = sphi 0, %s144
    %s148 = sphi 0, %s147
    %s164 = sphi 0, %s148
  $region4: #{residual_layer_forward.3} parent=0 // loop_header_branch
    %14 = sbr.rel (%p12) target = $region8
  $region5: #{residual_layer_forward.3} parent=0 // loop_body
    %s16 = ssub.s32 %s11, 1
    %s17 = ssub.s32 %s11, 2
    %s24 = sadd.s32 1, %s19
    %p25 = scmp.ge.s32.totalorder %s24, 2
    %s26 = scalar_select %p25, 0, %s24
    %s27 = sadd.s32 1, %s18
    %s28 = scalar_select %p25, %s27, %s18
    %p29 = scmp.ge.s32.totalorder %s28, 2
    %s30 = scalar_select %p29, 0, %s28
    %s31 = ssub.s32 %s18, %s30
    %s32 = ssub.s32 %s19, %s26
    %s33 = sor.u32 %s31, %s32
    %p34 = scmp.eq.s32.totalorder %s33, 0
    %s36 = sadd.s32 %s35, 1
    %s37 = scalar_select %p34, %s35, %s36
    %p40 = pneg %p34
    %p41 = scmp.eq.s32.totalorder %s11, 3
    %p42 = por %p40, %p41
    %p43 = scmp.ne.s32.totalorder %s35, %s38
    %p44 = scmp.eq.s32.totalorder %s11, 0
    %p45 = por %p43, %p44
    %p46 = scmp.ne.s32.totalorder %s35, %s38
    %p47 = scmp.eq.s32.totalorder %s16, 3
    %p48 = por %p46, %p47
    %p49 = scmp.ne.s32.totalorder %s38, %s39
    %p50 = scmp.eq.s32.totalorder %s16, 0
    %p51 = por %p49, %p50
    %p52 = scmp.ne.s32.totalorder %s38, %s39
    %p53 = scmp.eq.s32.totalorder %s17, 3
    %p54 = por %p52, %p53
    %p56 = scmp.ne.s32.totalorder %s39, %s55
    %p57 = scmp.eq.s32.totalorder %s17, 0
    %p58 = por %p56, %p57
    %s59 = sadd.s32 %s19, 1
    %s60 = smul.u32 %s59, 4
    %s61 = sadd.s32 %s26, 1
    %s62 = smul.u32 %s61, 4
    %s63 = ssub.s32 %s18, %s30
    %s64 = ssub.s32 %s60, %s62
    %s65 = sor.u32 %s63, %s64
    %p66 = scmp.eq.s32.totalorder %s65, 0
    %s68 = sadd.s32 %s67, 1
    %s69 = scalar_select %p66, %s67, %s68
    %p72 = pneg %p66
    %p73 = scmp.eq.s32.totalorder %s11, 3
    %p74 = por %p72, %p73
    %p75 = scmp.ne.s32.totalorder %s67, %s70
    %p76 = scmp.eq.s32.totalorder %s11, 0
    %p77 = por %p75, %p76
    %p78 = scmp.ne.s32.totalorder %s67, %s70
    %p79 = scmp.eq.s32.totalorder %s16, 3
    %p80 = por %p78, %p79
    %p81 = scmp.ne.s32.totalorder %s70, %s71
    %p82 = scmp.eq.s32.totalorder %s16, 0
    %p83 = por %p81, %p82
    %p84 = scmp.ne.s32.totalorder %s70, %s71
    %p85 = scmp.eq.s32.totalorder %s17, 3
    %p86 = por %p84, %p85
    %p88 = scmp.ne.s32.totalorder %s71, %s87
    %p89 = scmp.eq.s32.totalorder %s17, 0
    %p90 = por %p88, %p89
    %s92 = sadd.s32 %s91, 1
    %p95 = scmp.eq.s32.totalorder %s11, 3
    %p96 = scmp.ne.s32.totalorder %s91, %s93
    %p97 = scmp.eq.s32.totalorder %s11, 0
    %p98 = por %p96, %p97
    %p99 = scmp.ne.s32.totalorder %s91, %s93
    %p100 = scmp.eq.s32.totalorder %s16, 3
    %p101 = por %p99, %p100
    %p102 = scmp.ne.s32.totalorder %s93, %s94
    %p103 = scmp.eq.s32.totalorder %s16, 0
    %p104 = por %p102, %p103
    %p105 = scmp.ne.s32.totalorder %s93, %s94
    %p106 = scmp.eq.s32.totalorder %s17, 3
    %p107 = por %p105, %p106
    %p109 = scmp.ne.s32.totalorder %s94, %s108
    %p110 = scmp.eq.s32.totalorder %s17, 0
    %p111 = por %p109, %p110
    %s112 = ssub.s32 %s18, %s30
    %s113 = ssub.s32 %s19, %s26
    %s114 = sor.u32 %s112, %s113
    %p115 = scmp.eq.s32.totalorder %s114, 0
    %s117 = sadd.s32 %s116, 1
    %s118 = scalar_select %p115, %s116, %s117
    %p121 = pneg %p115
    %p122 = scmp.eq.s32.totalorder %s11, 3
    %p123 = por %p121, %p122
    %p124 = scmp.ne.s32.totalorder %s116, %s119
    %p125 = scmp.eq.s32.totalorder %s11, 0
    %p126 = por %p124, %p125
    %p127 = scmp.ne.s32.totalorder %s116, %s119
    %p128 = scmp.eq.s32.totalorder %s16, 3
    %p129 = por %p127, %p128
    %p130 = scmp.ne.s32.totalorder %s119, %s120
    %p131 = scmp.eq.s32.totalorder %s16, 0
    %p132 = por %p130, %p131
    %p133 = scmp.ne.s32.totalorder %s119, %s120
    %p134 = scmp.eq.s32.totalorder %s17, 3
    %p135 = por %p133, %p134
    %p137 = scmp.ne.s32.totalorder %s120, %s136
    %p138 = scmp.eq.s32.totalorder %s17, 0
    %p139 = por %p137, %p138
    %s140 = ssub.s32 %s18, %s30
    %s141 = ssub.s32 %s19, %s26
    %s142 = sor.u32 %s140, %s141
    %p143 = scmp.eq.s32.totalorder %s142, 0
    %s145 = sadd.s32 %s144, 1
    %s146 = scalar_select %p143, %s144, %s145
    %p149 = pneg %p143
    %p150 = scmp.eq.s32.totalorder %s11, 3
    %p151 = por %p149, %p150
    %p152 = scmp.ne.s32.totalorder %s144, %s147
    %p153 = scmp.eq.s32.totalorder %s11, 0
    %p154 = por %p152, %p153
    %p155 = scmp.ne.s32.totalorder %s144, %s147
    %p156 = scmp.eq.s32.totalorder %s16, 3
    %p157 = por %p155, %p156
    %p158 = scmp.ne.s32.totalorder %s147, %s148
    %p159 = scmp.eq.s32.totalorder %s16, 0
    %p160 = por %p158, %p159
    %p161 = scmp.ne.s32.totalorder %s147, %s148
    %p162 = scmp.eq.s32.totalorder %s17, 3
    %p163 = por %p161, %p162
    %p165 = scmp.ne.s32.totalorder %s148, %s164
    %p166 = scmp.eq.s32.totalorder %s17, 0
    %p167 = por %p165, %p166
    %p168 = scmp.le.s32.totalorder 1, %s11
    %p169 = scmp.lt.s32.totalorder %s11, 5
    %p170 = pnand %p168, %p169
    %p171 = pneg %p170
    // Predicated region
    $region9: #{residual_layer_forward.3} parent=5 // pred_check
      _
    $region10: #{residual_layer_forward.3} parent=5 // pred_check_branch
      %173 = sbr.rel (%p170) target = $region12
    $region11: #{residual_layer_forward.3} parent=5 // pred_region
      %s174 = ssub.s32 %s11, 1
      // Predicated region
      $region13: #{residual_layer_forward.3} parent=11 // pred_check
        %p175 = pneg %p104
      $region14: #{residual_layer_forward.3} parent=11 // pred_check_branch
        %177 = sbr.rel (%p175) target = $region16
      $region15: #{residual_layer_forward.3} parent=11 // pred_region
        _
      $region16: #{residual_layer_forward.3} parent=11 // pred_fallthru
        _
    $region12: #{residual_layer_forward.3} parent=5 // pred_fallthru
      _
    %p178 = scmp.lt.s32.totalorder %s11, 4
    // Predicated region
    $region17: #{residual_layer_forward.3} parent=5 // pred_check
      %p179 = pneg %p178
    $region18: #{residual_layer_forward.3} parent=5 // pred_check_branch
      %181 = sbr.rel (%p179) target = $region20
    $region19: #{residual_layer_forward.3} parent=5 // pred_region
      // Predicated region
      $region21: #{residual_layer_forward.3} parent=19 // pred_check
        %p182 = pneg %p45
      $region22: #{residual_layer_forward.3} parent=19 // pred_check_branch
        %184 = sbr.rel (%p182) target = $region24
      $region23: #{residual_layer_forward.3} parent=19 // pred_region
        %s185 = smul.u32 8, %s19
        %s186 = ssub.s32 18, %s185
        %p187 = scmp.lt.s32.totalorder %s186, 8
        %s188 = scalar_select %p187, %s186, 8
        %s189 = smul.u32 128, %s188
        %s190 = smul.u32 %s189, 3
        %p191 = scmp.lt.s32.totalorder %s18, 1
        %s192 = scalar_select %p191, %s18, 1
        %p193 = scmp.lt.s32.totalorder %s185, 17
        %s194 = scalar_select %p193, %s185, 17
        %s195 = smul.addr %s194, 3
        %s196 = smul.addr %s192, 54
        %s197 = sadd.s32 %s195, %s196
        %s198 = smul.addr %s197, 8
        %s199 = scalar_lea.vmem %s0, %s198
        %s200 = smul.u32 8, %s19
        %s201 = ssub.s32 18, %s200
        %p202 = scmp.lt.s32.totalorder %s201, 8
        %s203 = scalar_select %p202, %s201, 8
        %s204 = smul.u32 128, %s203
        %s205 = smul.u32 %s204, 3
      $region24: #{residual_layer_forward.3} parent=19 // pred_fallthru
        _
      // Predicated region
      $region25: #{residual_layer_forward.3} parent=19 // pred_check
        %p206 = pneg %p77
      $region26: #{residual_layer_forward.3} parent=19 // pred_check_branch
        %208 = sbr.rel (%p206) target = $region28
      $region27: #{residual_layer_forward.3} parent=19 // pred_region
        %s209 = sadd.s32 %s19, 1
        %s210 = smul.u32 %s209, 4
        %s211 = smul.u32 2, %s210
        %p212 = scmp.lt.s32.totalorder %s18, 1
        %s213 = scalar_select %p212, %s18, 1
        %p214 = scmp.lt.s32.totalorder %s211, 17
        %s215 = scalar_select %p214, %s211, 17
        %s216 = smul.addr %s215, 3
        %s217 = smul.addr %s213, 54
        %s218 = sadd.s32 %s216, %s217
        %s219 = smul.addr %s218, 8
        %s220 = scalar_lea.vmem %s1, %s219
        %s221 = sadd.s32 %s19, 1
        %s222 = smul.u32 %s221, 4
        %s223 = smul.u32 2, %s222
      $region28: #{residual_layer_forward.3} parent=19 // pred_fallthru
        _
    $region20: #{residual_layer_forward.3} parent=5 // pred_fallthru
      _
    %p224 = scmp.le.s32.totalorder 1, %s11
    %p225 = scmp.lt.s32.totalorder %s11, 5
    %p226 = pnand %p224, %p225
    %p227 = pneg %p226
    // Predicated region
    $region29: #{residual_layer_forward.3} parent=5 // pred_check
      _
    $region30: #{residual_layer_forward.3} parent=5 // pred_check_branch
      %229 = sbr.rel (%p226) target = $region32
    $region31: #{residual_layer_forward.3} parent=5 // pred_region
      %s230 = ssub.s32 %s11, 1
      %s231 = smul.u32 8, %s21
      %s232 = ssub.s32 18, %s231
      %p233 = scmp.lt.s32.totalorder %s232, 8
      %s234 = scalar_select %p233, %s232, 8
      %s235 = smul.u32 128, %s234
      %s236 = smul.u32 %s235, 3
      %p237 = scmp.lt.s32.totalorder %s20, 1
      %s238 = scalar_select %p237, %s20, 1
      %p239 = scmp.lt.s32.totalorder %s231, 17
      %s240 = scalar_select %p239, %s231, 17
      %s241 = smul.addr %s240, 3
      %s242 = smul.addr %s238, 54
      %s243 = sadd.s32 %s241, %s242
      %s244 = smul.addr %s243, 8
      %s245 = scalar_lea.vmem %s0, %s244
      %p246 = pneg %p51
      %p247 = pneg %p48
      %s248 = sadd.s32 %s21, 1
      %s249 = smul.u32 %s248, 4
      %s250 = smul.u32 2, %s249
      %p251 = scmp.lt.s32.totalorder %s20, 1
      %s252 = scalar_select %p251, %s20, 1
      %p253 = scmp.lt.s32.totalorder %s250, 17
      %s254 = scalar_select %p253, %s250, 17
      %s255 = smul.addr %s254, 3
      %s256 = smul.addr %s252, 54
      %s257 = sadd.s32 %s255, %s256
      %s258 = smul.addr %s257, 8
      %s259 = scalar_lea.vmem %s1, %s258
      %p260 = pneg %p83
      %p261 = pneg %p80
      %p262 = pneg %p104
      %p263 = pneg %p101
      %p264 = pneg %p132
      %p265 = pneg %p129
      %s266 = smul.u32 8, %s21
      %p267 = scmp.lt.s32.totalorder %s20, 1
      %s268 = scalar_select %p267, %s20, 1
      %p269 = scmp.lt.s32.totalorder %s266, 15
      %s270 = scalar_select %p269, %s266, 15
      %s271 = smul.addr %s270, 2
      %s272 = smul.addr %s268, 32
      %s273 = sadd.s32 %s271, %s272
      %s274 = smul.addr %s273, 8
      %s275 = scalar_lea.vmem %s3, %s274
      %p276 = pneg %p160
      %p277 = pneg %p157
      %p278 = scmp.lt.s32.totalorder %s20, 1
      %s279 = scalar_select %p278, %s20, 1
      %p280 = scmp.lt.s32.totalorder %s21, 1
      %s281 = scalar_select %p280, %s21, 1
      %s282 = smul.addr %s279, 2
      %s283 = sadd.s32 %s281, %s282
      %s284 = smul.addr %s283, 2
      %s285 = scalar_lea.vmem %s4, %s284
      %s286 = smul.u32 8, %s21
      %s287 = ssub.s32 18, %s286
      %p288 = scmp.lt.s32.totalorder %s287, 8
      %s289 = scalar_select %p288, %s287, 8
      %s290 = smul.u32 128, %s289
      %s291 = smul.u32 %s290, 3
      %p292 = scmp.lt.s32.totalorder %s20, 1
      %s293 = scalar_select %p292, %s20, 1
      %p294 = scmp.lt.s32.totalorder %s286, 17
      %s295 = scalar_select %p294, %s286, 17
      %s296 = smul.addr %s295, 3
      %s297 = smul.addr %s293, 54
      %s298 = sadd.s32 %s296, %s297
      %s299 = smul.addr %s298, 8
      %s300 = scalar_lea.vmem %s0, %s299
      %s301 = smul.u32 8, %s21
      %s302 = ssub.s32 18, %s301
      %p303 = scmp.lt.s32.totalorder %s302, 8
      %s304 = scalar_select %p303, %s302, 8
      %s305 = smul.u32 128, %s304
      %s306 = smul.u32 %s305, 3
      %s307 = sadd.s32 %s21, 1
      %s308 = smul.u32 %s307, 4
      %s309 = smul.u32 2, %s308
      %p310 = scmp.lt.s32.totalorder %s20, 1
      %s311 = scalar_select %p310, %s20, 1
      %p312 = scmp.lt.s32.totalorder %s309, 17
      %s313 = scalar_select %p312, %s309, 17
      %s314 = smul.addr %s313, 3
      %s315 = smul.addr %s311, 54
      %s316 = sadd.s32 %s314, %s315
      %s317 = smul.addr %s316, 8
      %s318 = scalar_lea.vmem %s1, %s317
      %s319 = sadd.s32 %s21, 1
      %s320 = smul.u32 %s319, 4
      %s321 = smul.u32 2, %s320
      %s322 = smul.u32 8, %s21
      %p323 = scmp.lt.s32.totalorder %s20, 1
      %s324 = scalar_select %p323, %s20, 1
      %p325 = scmp.lt.s32.totalorder %s322, 15
      %s326 = scalar_select %p325, %s322, 15
      %s327 = smul.addr %s326, 2
      %s328 = smul.addr %s324, 32
      %s329 = sadd.s32 %s327, %s328
      %s330 = smul.addr %s329, 8
      %s331 = scalar_lea.vmem %s3, %s330
      %s332 = smul.u32 8, %s21
      %p333 = scmp.lt.s32.totalorder %s20, 1
      %s334 = scalar_select %p333, %s20, 1
      %p335 = scmp.lt.s32.totalorder %s21, 1
      %s336 = scalar_select %p335, %s21, 1
      %s337 = smul.addr %s334, 2
      %s338 = sadd.s32 %s336, %s337
      %s339 = smul.addr %s338, 2
      %s340 = scalar_lea.vmem %s4, %s339
      %v341 = vld [vmem:[%s300] sm:$0xff]
      %v342 = vld [vmem:[%s300 + $0x8] sm:$0xff]
      %v343 = vld [vmem:[%s300 + $0x10] sm:$0x3]
      %v344 = vld [vmem:[%s300 + $0x18] sm:$0xff]
      %v345 = vld [vmem:[%s300 + $0x20] sm:$0xff]
      %v346 = vld [vmem:[%s300 + $0x28] sm:$0x3]
      %v347 = vld [vmem:[%s300 + $0x30] sm:$0xff]
      %v348 = vld [vmem:[%s300 + $0x38] sm:$0xff]
      %v349 = vld [vmem:[%s300 + $0x40] sm:$0x3]
      %v350 = vld [vmem:[%s300 + $0x48] sm:$0xff]
      %v351 = vld [vmem:[%s300 + $0x50] sm:$0xff]
      %v352 = vld [vmem:[%s300 + $0x58] sm:$0x3]
      %v353 = vld [vmem:[%s300 + $0x60] sm:$0xff]
      %v354 = vld [vmem:[%s300 + $0x68] sm:$0xff]
      %v355 = vld [vmem:[%s300 + $0x70] sm:$0x3]
      %v356 = vld [vmem:[%s300 + $0x78] sm:$0xff]
      %v357 = vld [vmem:[%s300 + $0x80] sm:$0xff]
      %v358 = vld [vmem:[%s300 + $0x88] sm:$0x3]
      %v359 = vld [vmem:[%s300 + $0x90] sm:$0xff]
      %v360 = vld [vmem:[%s300 + $0x98] sm:$0xff]
      %v361 = vld [vmem:[%s300 + $0xa0] sm:$0x3]
      %v362 = vld [vmem:[%s300 + $0xa8] sm:$0xff]
      %v363 = vld [vmem:[%s300 + $0xb0] sm:$0xff]
      %v364 = vld [vmem:[%s300 + $0xb8] sm:$0x3]
      %v365 = vld [vmem:[%s318] sm:$0xff]
      %v366 = vld [vmem:[%s318 + $0x8] sm:$0xff]
      %v367 = vld [vmem:[%s318 + $0x10] sm:$0x3]
      %v368 = vld [vmem:[%s318 + $0x18] sm:$0xff]
      %v369 = vld [vmem:[%s318 + $0x20] sm:$0xff]
      %v370 = vld [vmem:[%s318 + $0x28] sm:$0x3]
      %v371 = vld [vmem:[%s2] sm:$0xf]
      %v372 = vld [vmem:[%s2 + $0x4] sm:$0xf]
      %v373 = vld [vmem:[%s2 + $0x8] sm:$0xf]
      %v374 = vld [vmem:[%s2 + $0xc] sm:$0xf]
      %v375 = vld [vmem:[%s2 + $0x10] sm:$0xf]
      %v376 = vld [vmem:[%s2 + $0x14] sm:$0xf]
      %v377 = vld [vmem:[%s2 + $0x18] sm:$0xf]
      %v378 = vld [vmem:[%s2 + $0x1c] sm:$0xf]
      %v379 = vld [vmem:[%s2 + $0x20] sm:$0xf]
      %vm404 = vcmask 1046528
      %v405 = vrot.slane %v341, 1
      %v406 = vrot.slane %v342, 1
      %v407 = vsel %vm404, %v405, %v406
      %v408 = vrot.slane %v343, 1
      %v409 = vsel %vm404, %v406, %v408
      %v410 = vrot.slane %v344, 1
      %v411 = vrot.slane %v345, 1
      %v412 = vsel %vm404, %v410, %v411
      %v413 = vrot.slane %v346, 1
      %v414 = vsel %vm404, %v411, %v413
      %v415 = vrot.slane %v347, 1
      %v416 = vrot.slane %v348, 1
      %v417 = vsel %vm404, %v415, %v416
      %v418 = vrot.slane %v349, 1
      %v419 = vsel %vm404, %v416, %v418
      %v420 = vrot.slane %v350, 1
      %v421 = vrot.slane %v351, 1
      %v422 = vsel %vm404, %v420, %v421
      %v423 = vrot.slane %v352, 1
      %v424 = vsel %vm404, %v421, %v423
      %v425 = vrot.slane %v353, 1
      %v426 = vrot.slane %v354, 1
      %v427 = vsel %vm404, %v425, %v426
      %v428 = vrot.slane %v355, 1
      %v429 = vsel %vm404, %v426, %v428
      %v430 = vrot.slane %v356, 1
      %v431 = vrot.slane %v357, 1
      %v432 = vsel %vm404, %v430, %v431
      %v433 = vrot.slane %v358, 1
      %v434 = vsel %vm404, %v431, %v433
      %v435 = vrot.slane %v359, 1
      %v436 = vrot.slane %v360, 1
      %v437 = vsel %vm404, %v435, %v436
      %v438 = vrot.slane %v361, 1
      %v439 = vsel %vm404, %v436, %v438
      %v440 = vrot.slane %v362, 1
      %v441 = vrot.slane %v363, 1
      %v442 = vsel %vm404, %v440, %v441
      %v443 = vrot.slane %v364, 1
      %v444 = vsel %vm404, %v441, %v443
      %vm445 = vcmask 31744
      %v446 = vsel %vm445, %v407, 0
      %v448 = vsel %vm445, %v409, 0
      %v450 = vsel %vm445, %v412, 0
      %v452 = vsel %vm445, %v414, 0
      %v454 = vsel %vm445, %v417, 0
      %v456 = vsel %vm445, %v419, 0
      %v458 = vsel %vm445, %v422, 0
      %v460 = vsel %vm445, %v424, 0
      %v462 = vsel %vm445, %v427, 0
      %v464 = vsel %vm445, %v429, 0
      %v466 = vsel %vm445, %v432, 0
      %v468 = vsel %vm445, %v434, 0
      %v470 = vsel %vm445, %v437, 0
      %v472 = vsel %vm445, %v439, 0
      %v474 = vsel %vm445, %v442, 0
      %v476 = vsel %vm445, %v444, 0
      %vm478 = vcmask 1043456
      %v480 = vsel %vm478, %v372, 0
      %482 = vmatprep.subr.mxu0 0.0
      %483 = vmatpush1.msra.mxu0 %v480
      %484 = vmatprep.subr.mxu0 0.0
      %485 = vmatpush1.msra.mxu0 0.0
      %486 = vmatprep.subr.mxu0 0.0
      %487 = vmatpush1.msra.mxu0 0.0
      %488 = vmatprep.subr.mxu0 0.0
      %489 = vmatpush1.msra.mxu0 0.0
      %490 = vmatprep.subr.mxu0 0.0
      %491 = vmatpush1.msra.mxu0 0.0
      %492 = vmatprep.subr.mxu0 0.0
      %493 = vmatpush1.msra.mxu0 0.0
      %494 = vmatprep.subr.mxu0 0.0
      %495 = vmatpush1.msra.mxu0 0.0
      %496 = vmatprep.subr.mxu0 0.0
      %497 = vmatpush1.msra.mxu0 0.0
      %498 = vmatprep.subr.mxu0 0.0
      %499 = vmatpush1.msra.mxu0 0.0
      %500 = vmatprep.subr.mxu0 0.0
      %501 = vmatpush1.msra.mxu0 0.0
      %502 = vmatprep.subr.mxu0 0.0
      %503 = vmatpush1.msra.mxu0 0.0
      %504 = vmatprep.subr.mxu0 0.0
      %505 = vmatpush1.msra.mxu0 0.0
      %506 = vmatprep.subr.mxu0 0.0
      %507 = vmatpush1.msra.mxu0 0.0
      %508 = vmatprep.subr.mxu0 0.0
      %509 = vmatpush1.msra.mxu0 0.0
      %510 = vmatprep.subr.mxu0 0.0
      %511 = vmatpush1.msra.mxu0 0.0
      %512 = vmatprep.subr.mxu0 0.0
      %513 = vmatpush1.msra.mxu0 0.0
      %514 = vmatprep.subr.mxu0 0.0
      %515 = vmatpush1.msra.mxu0 0.0
      %516 = vmatprep.subr.mxu0 0.0
      %517 = vmatpush1.msra.mxu0 0.0
      %518 = vmatprep.subr.mxu0 0.0
      %519 = vmatpush1.msra.mxu0 0.0
      %520 = vmatprep.subr.mxu0 0.0
      %521 = vmatpush1.msra.mxu0 0.0
      %522 = vmatprep.subr.mxu0 0.0
      %523 = vmatpush1.msra.mxu0 0.0
      %524 = vmatprep.subr.mxu0 0.0
      %525 = vmatpush1.msra.mxu0 0.0
      %526 = vmatprep.subr.mxu0 0.0
      %527 = vmatpush1.msra.mxu0 0.0
      %528 = vmatprep.subr.mxu0 0.0
      %529 = vmatpush1.msra.mxu0 0.0
      %530 = vmatprep.subr.mxu0 0.0
      %531 = vmatpush1.msra.mxu0 0.0
      %532 = vmatprep.subr.mxu0 0.0
      %533 = vmatpush1.msra.mxu0 0.0
      %534 = vmatprep.subr.mxu0 0.0
      %535 = vmatpush1.msra.mxu0 0.0
      %536 = vmatprep.subr.mxu0 0.0
      %537 = vmatpush1.msra.mxu0 0.0
      %538 = vmatprep.subr.mxu0 0.0
      %539 = vmatpush1.msra.mxu0 0.0
      %540 = vmatprep.subr.mxu0 0.0
      %541 = vmatpush1.msra.mxu0 0.0
      %542 = vmatprep.subr.mxu0 0.0
      %543 = vmatpush1.msra.mxu0 0.0
      %544 = vmatprep.subr.mxu0 0.0
      %545 = vmatpush1.msra.mxu0 0.0
      %546 = vmatprep.mubr.f32.mxu0 0.0
      %547 = vmatmul.mubr.f32.gmra.mrb[0].mxu0 %v446
      %v548 = vpop.f32.mrb[0].mxu0
      %v549 = vadd.f32 0.0, %v548
      %v550 = vpop.f32.mrb[0].mxu0
      %551 = vmatprep.mubr.f32.mxu0 0.0
      %552 = vmatmul.mubr.f32.gmra.mrb[0].mxu0 %v448
      %v553 = vpop.f32.mrb[0].mxu0
      %v554 = vadd.f32 0.0, %v553
      %v555 = vpop.f32.mrb[0].mxu0
      %556 = vmatprep.mubr.f32.mxu0 0.0
      %557 = vmatmul.mubr.f32.gmra.mrb[0].mxu0 %v450
      %v558 = vpop.f32.mrb[0].mxu0
      %v559 = vadd.f32 0.0, %v558
      %v560 = vpop.f32.mrb[0].mxu0
      %561 = vmatprep.mubr.f32.mxu0 0.0
      %562 = vmatmul.mubr.f32.gmra.mrb[0].mxu0 %v452
      %v563 = vpop.f32.mrb[0].mxu0
      %v564 = vadd.f32 0.0, %v563
      %v565 = vpop.f32.mrb[0].mxu0
      %566 = vmatprep.mubr.f32.mxu0 0.0
      %567 = vmatmul.mubr.f32.gmra.mrb[0].mxu0 %v454
      %v568 = vpop.f32.mrb[0].mxu0
      %v569 = vadd.f32 0.0, %v568
      %v570 = vpop.f32.mrb[0].mxu0
      %571 = vmatprep.mubr.f32.mxu0 0.0
      %572 = vmatmul.mubr.f32.gmra.mrb[0].mxu0 %v456
      %v573 = vpop.f32.mrb[0].mxu0
      %v574 = vadd.f32 0.0, %v573
      %v575 = vpop.f32.mrb[0].mxu0
      %576 = vmatprep.mubr.f32.mxu0 0.0
      %577 = vmatmul.mubr.f32.gmra.mrb[0].mxu0 %v458
      %v578 = vpop.f32.mrb[0].mxu0
      %v579 = vadd.f32 0.0, %v578
      %v580 = vpop.f32.mrb[0].mxu0
      %581 = vmatprep.mubr.f32.mxu0 0.0
      %582 = vmatmul.mubr.f32.gmra.mrb[0].mxu0 %v460
      %v583 = vpop.f32.mrb[0].mxu0
      %v584 = vadd.f32 0.0, %v583
      %v585 = vpop.f32.mrb[0].mxu0
      %586 = vmatprep.mubr.f32.mxu0 0.0
      %587 = vmatmul.mubr.f32.gmra.mrb[0].mxu0 %v462
      %v588 = vpop.f32.mrb[0].mxu0
      %v589 = vadd.f32 0.0, %v588
      %v590 = vpop.f32.mrb[0].mxu0
      %591 = vmatprep.mubr.f32.mxu0 0.0
      %592 = vmatmul.mubr.f32.gmra.mrb[0].mxu0 %v464
      %v593 = vpop.f32.mrb[0].mxu0
      %v594 = vadd.f32 0.0, %v593
      %v595 = vpop.f32.mrb[0].mxu0
      %596 = vmatprep.mubr.f32.mxu0 0.0
      %597 = vmatmul.mubr.f32.gmra.mrb[0].mxu0 %v466
      %v598 = vpop.f32.mrb[0].mxu0
      %v599 = vadd.f32 0.0, %v598
      %v600 = vpop.f32.mrb[0].mxu0
      %601 = vmatprep.mubr.f32.mxu0 0.0
      %602 = vmatmul.mubr.f32.gmra.mrb[0].mxu0 %v468
      %v603 = vpop.f32.mrb[0].mxu0
      %v604 = vadd.f32 0.0, %v603
      %v605 = vpop.f32.mrb[0].mxu0
      %606 = vmatprep.mubr.f32.mxu0 0.0
      %607 = vmatmul.mubr.f32.gmra.mrb[0].mxu0 %v470
      %v608 = vpop.f32.mrb[0].mxu0
      %v609 = vadd.f32 0.0, %v608
      %v610 = vpop.f32.mrb[0].mxu0
      %611 = vmatprep.mubr.f32.mxu0 0.0
      %612 = vmatmul.mubr.f32.gmra.mrb[0].mxu0 %v472
      %v613 = vpop.f32.mrb[0].mxu0
      %v614 = vadd.f32 0.0, %v613
      %v615 = vpop.f32.mrb[0].mxu0
      %616 = vmatprep.mubr.f32.mxu0 0.0
      %617 = vmatmul.mubr.f32.gmra.mrb[0].mxu0 %v474
      %v618 = vpop.f32.mrb[0].mxu0
      %v619 = vadd.f32 0.0, %v618
      %v620 = vpop.f32.mrb[0].mxu0
      %621 = vmatprep.mubr.f32.mxu0 0.0
      %622 = vmatmul.mubr.f32.gmra.mrb[0].mxu0 %v476
      %v623 = vpop.f32.mrb[0].mxu0
      %v624 = vadd.f32 0.0, %v623
      %v625 = vpop.f32.mrb[0].mxu0
      %626 = vdwg.mxu0
      %v627 = vsel %vm445, %v341, 0
      %v629 = vsel %vm445, %v342, 0
      %v631 = vsel %vm445, %v344, 0
      %v633 = vsel %vm445, %v345, 0
      %v635 = vsel %vm445, %v347, 0
      %v637 = vsel %vm445, %v348, 0
      %v639 = vsel %vm445, %v350, 0
      %v641 = vsel %vm445, %v351, 0
      %v643 = vsel %vm445, %v353, 0
      %v645 = vsel %vm445, %v354, 0
      %v647 = vsel %vm445, %v356, 0
      %v649 = vsel %vm445, %v357, 0
      %v651 = vsel %vm445, %v359, 0
      %v653 = vsel %vm445, %v360, 0
      %v655 = vsel %vm445, %v362, 0
      %v657 = vsel %vm445, %v363, 0
      %v660 = vsel %vm478, %v371, 0
      %662 = vmatprep.subr.mxu0 0.0
      %663 = vmatpush1.msra.mxu0 %v660
      %664 = vmatprep.subr.mxu0 0.0
      %665 = vmatpush1.msra.mxu0 0.0
      %666 = vmatprep.subr.mxu0 0.0
      %667 = vmatpush1.msra.mxu0 0.0
      %668 = vmatprep.subr.mxu0 0.0
      %669 = vmatpush1.msra.mxu0 0.0
      %670 = vmatprep.subr.mxu0 0.0
      %671 = vmatpush1.msra.mxu0 0.0
      %672 = vmatprep.subr.mxu0 0.0
      %673 = vmatpush1.msra.mxu0 0.0
      %674 = vmatprep.subr.mxu0 0.0
      %675 = vmatpush1.msra.mxu0 0.0
      %676 = vmatprep.subr.mxu0 0.0
      %677 = vmatpush1.msra.mxu0 0.0
      %678 = vmatprep.subr.mxu0 0.0
      %679 = vmatpush1.msra.mxu0 0.0
      %680 = vmatprep.subr.mxu0 0.0
      %681 = vmatpush1.msra.mxu0 0.0
      %682 = vmatprep.subr.mxu0 0.0
      %683 = vmatpush1.msra.mxu0 0.0
      %684 = vmatprep.subr.mxu0 0.0
      %685 = vmatpush1.msra.mxu0 0.0
      %686 = vmatprep.subr.mxu0 0.0
      %687 = vmatpush1.msra.mxu0 0.0
      %688 = vmatprep.subr.mxu0 0.0
      %689 = vmatpush1.msra.mxu0 0.0
      %690 = vmatprep.subr.mxu0 0.0
      %691 = vmatpush1.msra.mxu0 0.0
      %692 = vmatprep.subr.mxu0 0.0
      %693 = vmatpush1.msra.mxu0 0.0
      %694 = vmatprep.subr.mxu0 0.0
      %695 = vmatpush1.msra.mxu0 0.0
      %696 = vmatprep.subr.mxu0 0.0
      %697 = vmatpush1.msra.mxu0 0.0
      %698 = vmatprep.subr.mxu0 0.0
      %699 = vmatpush1.msra.mxu0 0.0
      %700 = vmatprep.subr.mxu0 0.0
      %701 = vmatpush1.msra.mxu0 0.0
      %702 = vmatprep.subr.mxu0 0.0
      %703 = vmatpush1.msra.mxu0 0.0
      %704 = vmatprep.subr.mxu0 0.0
      %705 = vmatpush1.msra.mxu0 0.0
      %706 = vmatprep.subr.mxu0 0.0
      %707 = vmatpush1.msra.mxu0 0.0
      %708 = vmatprep.subr.mxu0 0.0
      %709 = vmatpush1.msra.mxu0 0.0
      %710 = vmatprep.subr.mxu0 0.0
      %711 = vmatpush1.msra.mxu0 0.0
      %712 = vmatprep.subr.mxu0 0.0
      %713 = vmatpush1.msra.mxu0 0.0
      %714 = vmatprep.subr.mxu0 0.0
      %715 = vmatpush1.msra.mxu0 0.0
      %716 = vmatprep.subr.mxu0 0.0
      %717 = vmatpush1.msra.mxu0 0.0
      %718 = vmatprep.subr.mxu0 0.0
      %719 = vmatpush1.msra.mxu0 0.0
      %720 = vmatprep.subr.mxu0 0.0
      %721 = vmatpush1.msra.mxu0 0.0
      %722 = vmatprep.subr.mxu0 0.0
      %723 = vmatpush1.msra.mxu0 0.0
      %724 = vmatprep.subr.mxu0 0.0
      %725 = vmatpush1.msra.mxu0 0.0
      %726 = vmatprep.mubr.f32.mxu0 0.0
      %727 = vmatmul.mubr.f32.gmra.mrb[0].mxu0 %v627
      %v728 = vpop.f32.mrb[0].mxu0
      %v729 = vadd.f32 %v549, %v728
      %v730 = vpop.f32.mrb[0].mxu0
      %731 = vmatprep.mubr.f32.mxu0 0.0
      %732 = vmatmul.mubr.f32.gmra.mrb[0].mxu0 %v629
      %v733 = vpop.f32.mrb[0].mxu0
      %v734 = vadd.f32 %v554, %v733
      %v735 = vpop.f32.mrb[0].mxu0
      %736 = vmatprep.mubr.f32.mxu0 0.0
      %737 = vmatmul.mubr.f32.gmra.mrb[0].mxu0 %v631
      %v738 = vpop.f32.mrb[0].mxu0
      %v739 = vadd.f32 %v559, %v738
      %v740 = vpop.f32.mrb[0].mxu0
      %741 = vmatprep.mubr.f32.mxu0 0.0
      %742 = vmatmul.mubr.f32.gmra.mrb[0].mxu0 %v633
      %v743 = vpop.f32.mrb[0].mxu0
      %v744 = vadd.f32 %v564, %v743
      %v745 = vpop.f32.mrb[0].mxu0
      %746 = vmatprep.mubr.f32.mxu0 0.0
      %747 = vmatmul.mubr.f32.gmra.mrb[0].mxu0 %v635
      %v748 = vpop.f32.mrb[0].mxu0
      %v749 = vadd.f32 %v569, %v748
      %v750 = vpop.f32.mrb[0].mxu0
      %751 = vmatprep.mubr.f32.mxu0 0.0
      %752 = vmatmul.mubr.f32.gmra.mrb[0].mxu0 %v637
      %v753 = vpop.f32.mrb[0].mxu0
      %v754 = vadd.f32 %v574, %v753
      %v755 = vpop.f32.mrb[0].mxu0
      %756 = vmatprep.mubr.f32.mxu0 0.0
      %757 = vmatmul.mubr.f32.gmra.mrb[0].mxu0 %v639
      %v758 = vpop.f32.mrb[0].mxu0
      %v759 = vadd.f32 %v579, %v758
      %v760 = vpop.f32.mrb[0].mxu0
      %761 = vmatprep.mubr.f32.mxu0 0.0
      %762 = vmatmul.mubr.f32.gmra.mrb[0].mxu0 %v641
      %v763 = vpop.f32.mrb[0].mxu0
      %v764 = vadd.f32 %v584, %v763
      %v765 = vpop.f32.mrb[0].mxu0
      %766 = vmatprep.mubr.f32.mxu0 0.0
      %767 = vmatmul.mubr.f32.gmra.mrb[0].mxu0 %v643
      %v768 = vpop.f32.mrb[0].mxu0
      %v769 = vadd.f32 %v589, %v768
      %v770 = vpop.f32.mrb[0].mxu0
      %771 = vmatprep.mubr.f32.mxu0 0.0
      %772 = vmatmul.mubr.f32.gmra.mrb[0].mxu0 %v645
      %v773 = vpop.f32.mrb[0].mxu0
      %v774 = vadd.f32 %v594, %v773
      %v775 = vpop.f32.mrb[0].mxu0
      %776 = vmatprep.mubr.f32.mxu0 0.0
      %777 = vmatmul.mubr.f32.gmra.mrb[0].mxu0 %v647
      %v778 = vpop.f32.mrb[0].mxu0
      %v779 = vadd.f32 %v599, %v778
      %v780 = vpop.f32.mrb[0].mxu0
      %781 = vmatprep.mubr.f32.mxu0 0.0
      %782 = vmatmul.mubr.f32.gmra.mrb[0].mxu0 %v649
      %v783 = vpop.f32.mrb[0].mxu0
      %v784 = vadd.f32 %v604, %v783
      %v785 = vpop.f32.mrb[0].mxu0
      %786 = vmatprep.mubr.f32.mxu0 0.0
      %787 = vmatmul.mubr.f32.gmra.mrb[0].mxu0 %v651
      %v788 = vpop.f32.mrb[0].mxu0
      %v789 = vadd.f32 %v609, %v788
      %v790 = vpop.f32.mrb[0].mxu0
      %791 = vmatprep.mubr.f32.mxu0 0.0
      %792 = vmatmul.mubr.f32.gmra.mrb[0].mxu0 %v653
      %v793 = vpop.f32.mrb[0].mxu0
      %v794 = vadd.f32 %v614, %v793
      %v795 = vpop.f32.mrb[0].mxu0
      %796 = vmatprep.mubr.f32.mxu0 0.0
      %797 = vmatmul.mubr.f32.gmra.mrb[0].mxu0 %v655
      %v798 = vpop.f32.mrb[0].mxu0
      %v799 = vadd.f32 %v619, %v798
      %v800 = vpop.f32.mrb[0].mxu0
      %801 = vmatprep.mubr.f32.mxu0 0.0
      %802 = vmatmul.mubr.f32.gmra.mrb[0].mxu0 %v657
      %v803 = vpop.f32.mrb[0].mxu0
      %v804 = vadd.f32 %v624, %v803
      %v805 = vpop.f32.mrb[0].mxu0
      %806 = vdwg.mxu0
      %vm807 = vcmask 1045504
      %v808 = vrot.slane %v341, 2
      %v809 = vrot.slane %v342, 2
      %v810 = vsel %vm807, %v808, %v809
      %v811 = vrot.slane %v343, 2
      %v812 = vsel %vm807, %v809, %v811
      %v813 = vrot.slane %v344, 2
      %v814 = vrot.slane %v345, 2
      %v815 = vsel %vm807, %v813, %v814
      %v816 = vrot.slane %v346, 2
      %v817 = vsel %vm807, %v814, %v816
      %v818 = vrot.slane %v347, 2
      %v819 = vrot.slane %v348, 2
      %v820 = vsel %vm807, %v818, %v819
      %v821 = vrot.slane %v349, 2
      %v822 = vsel %vm807, %v819, %v821
      %v823 = vrot.slane %v350, 2
      %v824 = vrot.slane %v351, 2
      %v825 = vsel %vm807, %v823, %v824
      %v826 = vrot.slane %v352, 2
      %v827 = vsel %vm807, %v824, %v826
      %v828 = vrot.slane %v353, 2
      %v829 = vrot.slane %v354, 2
      %v830 = vsel %vm807, %v828, %v829
      %v831 = vrot.slane %v355, 2
      %v832 = vsel %vm807, %v829, %v831
      %v833 = vrot.slane %v356, 2
      %v834 = vrot.slane %v357, 2
      %v835 = vsel %vm807, %v833, %v834
      %v836 = vrot.slane %v358, 2
      %v837 = vsel %vm807, %v834, %v836
      %v838 = vrot.slane %v359, 2
      %v839 = vrot.slane %v360, 2
      %v840 = vsel %vm807, %v838, %v839
      %v841 = vrot.slane %v361, 2
      %v842 = vsel %vm807, %v839, %v841
      %v843 = vrot.slane %v362, 2
      %v844 = vrot.slane %v363, 2
      %v845 = vsel %vm807, %v843, %v844
      %v846 = vrot.slane %v364, 2
      %v847 = vsel %vm807, %v844, %v846
      %v848 = vsel %vm445, %v810, 0
      %v850 = vsel %vm445, %v812, 0
      %v852 = vsel %vm445, %v815, 0
      %v854 = vsel %vm445, %v817, 0
      %v856 = vsel %vm445, %v820, 0
      %v858 = vsel %vm445, %v822, 0
      %v860 = vsel %vm445, %v825, 0
      %v862 = vsel %vm445, %v827, 0
      %v864 = vsel %vm445, %v830, 0
      %v866 = vsel %vm445, %v832, 0
      %v868 = vsel %vm445, %v835, 0
      %v870 = vsel %vm445, %v837, 0
      %v872 = vsel %vm445, %v840, 0
      %v874 = vsel %vm445, %v842, 0
      %v876 = vsel %vm445, %v845, 0
      %v878 = vsel %vm445, %v847, 0
      %v881 = vsel %vm478, %v373, 0
      %883 = vmatprep.subr.mxu0 0.0
      %884 = vmatpush1.msra.mxu0 %v881
      %885 = vmatprep.subr.mxu0 0.0
      %886 = vmatpush1.msra.mxu0 0.0
      %887 = vmatprep.subr.mxu0 0.0
      %888 = vmatpush1.msra.mxu0 0.0
      %889 = vmatprep.subr.mxu0 0.0
      %890 = vmatpush1.msra.mxu0 0.0
      %891 = vmatprep.subr.mxu0 0.0
      %892 = vmatpush1.msra.mxu0 0.0
      %893 = vmatprep.subr.mxu0 0.0
      %894 = vmatpush1.msra.mxu0 0.0
      %895 = vmatprep.subr.mxu0 0.0
      %896 = vmatpush1.msra.mxu0 0.0
      %897 = vmatprep.subr.mxu0 0.0
      %898 = vmatpush1.msra.mxu0 0.0
      %899 = vmatprep.subr.mxu0 0.0
      %900 = vmatpush1.msra.mxu0 0.0
      %901 = vmatprep.subr.mxu0 0.0
      %902 = vmatpush1.msra.mxu0 0.0
      %903 = vmatprep.subr.mxu0 0.0
      %904 = vmatpush1.msra.mxu0 0.0
      %905 = vmatprep.subr.mxu0 0.0
      %906 = vmatpush1.msra.mxu0 0.0
      %907 = vmatprep.subr.mxu0 0.0
      %908 = vmatpush1.msra.mxu0 0.0
      %909 = vmatprep.subr.mxu0 0.0
      %910 = vmatpush1.msra.mxu0 0.0
      %911 = vmatprep.subr.mxu0 0.0
      %912 = vmatpush1.msra.mxu0 0.0
      %913 = vmatprep.subr.mxu0 0.0
      %914 = vmatpush1.msra.mxu0 0.0
      %915 = vmatprep.subr.mxu0 0.0
      %916 = vmatpush1.msra.mxu0 0.0
      %917 = vmatprep.subr.mxu0 0.0
      %918 = vmatpush1.msra.mxu0 0.0
      %919 = vmatprep.subr.mxu0 0.0
      %920 = vmatpush1.msra.mxu0 0.0
      %921 = vmatprep.subr.mxu0 0.0
      %922 = vmatpush1.msra.mxu0 0.0
      %923 = vmatprep.subr.mxu0 0.0
      %924 = vmatpush1.msra.mxu0 0.0
      %925 = vmatprep.subr.mxu0 0.0
      %926 = vmatpush1.msra.mxu0 0.0
      %927 = vmatprep.subr.mxu0 0.0
      %928 = vmatpush1.msra.mxu0 0.0
      %929 = vmatprep.subr.mxu0 0.0
      %930 = vmatpush1.msra.mxu0 0.0
      %931 = vmatprep.subr.mxu0 0.0
      %932 = vmatpush1.msra.mxu0 0.0
      %933 = vmatprep.subr.mxu0 0.0
      %934 = vmatpush1.msra.mxu0 0.0
      %935 = vmatprep.subr.mxu0 0.0
      %936 = vmatpush1.msra.mxu0 0.0
      %937 = vmatprep.subr.mxu0 0.0
      %938 = vmatpush1.msra.mxu0 0.0
      %939 = vmatprep.subr.mxu0 0.0
      %940 = vmatpush1.msra.mxu0 0.0
      %941 = vmatprep.subr.mxu0 0.0
      %942 = vmatpush1.msra.mxu0 0.0
      %943 = vmatprep.subr.mxu0 0.0
      %944 = vmatpush1.msra.mxu0 0.0
      %945 = vmatprep.subr.mxu0 0.0
      %946 = vmatpush1.msra.mxu0 0.0
      %947 = vmatprep.mubr.f32.mxu0 0.0
      %948 = vmatmul.mubr.f32.gmra.mrb[0].mxu0 %v848
      %v949 = vpop.f32.mrb[0].mxu0
      %v950 = vadd.f32 0.0, %v949
      %v951 = vpop.f32.mrb[0].mxu0
      %952 = vmatprep.mubr.f32.mxu0 0.0
      %953 = vmatmul.mubr.f32.gmra.mrb[0].mxu0 %v850
      %v954 = vpop.f32.mrb[0].mxu0
      %v955 = vadd.f32 0.0, %v954
      %v956 = vpop.f32.mrb[0].mxu0
      %957 = vmatprep.mubr.f32.mxu0 0.0
      %958 = vmatmul.mubr.f32.gmra.mrb[0].mxu0 %v852
      %v959 = vpop.f32.mrb[0].mxu0
      %v960 = vadd.f32 0.0, %v959
      %v961 = vpop.f32.mrb[0].mxu0
      %962 = vmatprep.mubr.f32.mxu0 0.0
      %963 = vmatmul.mubr.f32.gmra.mrb[0].mxu0 %v854
      %v964 = vpop.f32.mrb[0].mxu0
      %v965 = vadd.f32 0.0, %v964
      %v966 = vpop.f32.mrb[0].mxu0
      %967 = vmatprep.mubr.f32.mxu0 0.0
      %968 = vmatmul.mubr.f32.gmra.mrb[0].mxu0 %v856
      %v969 = vpop.f32.mrb[0].mxu0
      %v970 = vadd.f32 0.0, %v969
      %v971 = vpop.f32.mrb[0].mxu0
      %972 = vmatprep.mubr.f32.mxu0 0.0
      %973 = vmatmul.mubr.f32.gmra.mrb[0].mxu0 %v858
      %v974 = vpop.f32.mrb[0].mxu0
      %v975 = vadd.f32 0.0, %v974
      %v976 = vpop.f32.mrb[0].mxu0
      %977 = vmatprep.mubr.f32.mxu0 0.0
      %978 = vmatmul.mubr.f32.gmra.mrb[0].mxu0 %v860
      %v979 = vpop.f32.mrb[0].mxu0
      %v980 = vadd.f32 0.0, %v979
      %v981 = vpop.f32.mrb[0].mxu0
      %982 = vmatprep.mubr.f32.mxu0 0.0
      %983 = vmatmul.mubr.f32.gmra.mrb[0].mxu0 %v862
      %v984 = vpop.f32.mrb[0].mxu0
      %v985 = vadd.f32 0.0, %v984
      %v986 = vpop.f32.mrb[0].mxu0
      %987 = vmatprep.mubr.f32.mxu0 0.0
      %988 = vmatmul.mubr.f32.gmra.mrb[0].mxu0 %v864
      %v989 = vpop.f32.mrb[0].mxu0
      %v990 = vadd.f32 0.0, %v989
      %v991 = vpop.f32.mrb[0].mxu0
      %992 = vmatprep.mubr.f32.mxu0 0.0
      %993 = vmatmul.mubr.f32.gmra.mrb[0].mxu0 %v866
      %v994 = vpop.f32.mrb[0].mxu0
      %v995 = vadd.f32 0.0, %v994
      %v996 = vpop.f32.mrb[0].mxu0
      %997 = vmatprep.mubr.f32.mxu0 0.0
      %998 = vmatmul.mubr.f32.gmra.mrb[0].mxu0 %v868
      %v999 = vpop.f32.mrb[0].mxu0
      %v1000 = vadd.f32 0.0, %v999
      %v1001 = vpop.f32.mrb[0].mxu0
      %1002 = vmatprep.mubr.f32.mxu0 0.0
      %1003 = vmatmul.mubr.f32.gmra.mrb[0].mxu0 %v870
      %v1004 = vpop.f32.mrb[0].mxu0
      %v1005 = vadd.f32 0.0, %v1004
      %v1006 = vpop.f32.mrb[0].mxu0
      %1007 = vmatprep.mubr.f32.mxu0 0.0
      %1008 = vmatmul.mubr.f32.gmra.mrb[0].mxu0 %v872
      %v1009 = vpop.f32.mrb[0].mxu0
      %v1010 = vadd.f32 0.0, %v1009
      %v1011 = vpop.f32.mrb[0].mxu0
      %1012 = vmatprep.mubr.f32.mxu0 0.0
      %1013 = vmatmul.mubr.f32.gmra.mrb[0].mxu0 %v874
      %v1014 = vpop.f32.mrb[0].mxu0
      %v1015 = vadd.f32 0.0, %v1014
      %v1016 = vpop.f32.mrb[0].mxu0
      %1017 = vmatprep.mubr.f32.mxu0 0.0
      %1018 = vmatmul.mubr.f32.gmra.mrb[0].mxu0 %v876
      %v1019 = vpop.f32.mrb[0].mxu0
      %v1020 = vadd.f32 0.0, %v1019
      %v1021 = vpop.f32.mrb[0].mxu0
      %1022 = vmatprep.mubr.f32.mxu0 0.0
      %1023 = vmatmul.mubr.f32.gmra.mrb[0].mxu0 %v878
      %v1024 = vpop.f32.mrb[0].mxu0
      %v1025 = vadd.f32 0.0, %v1024
      %v1026 = vpop.f32.mrb[0].mxu0
      %1027 = vdwg.mxu0
      %v1028 = vadd.f32 %v729, %v950
      %v1029 = vadd.f32 %v734, %v955
      %v1030 = vadd.f32 %v739, %v960
      %v1031 = vadd.f32 %v744, %v965
      %v1032 = vadd.f32 %v749, %v970
      %v1033 = vadd.f32 %v754, %v975
      %v1034 = vadd.f32 %v759, %v980
      %v1035 = vadd.f32 %v764, %v985
      %v1036 = vadd.f32 %v769, %v990
      %v1037 = vadd.f32 %v774, %v995
      %v1038 = vadd.f32 %v779, %v1000
      %v1039 = vadd.f32 %v784, %v1005
      %v1040 = vadd.f32 %v789, %v1010
      %v1041 = vadd.f32 %v794, %v1015
      %v1042 = vadd.f32 %v799, %v1020
      %v1043 = vadd.f32 %v804, %v1025
      %v1045 = vsel %vm445, %v365, 0
      %v1048 = vsel %vm445, %v366, 0
      %v1051 = vsel %vm478, %v374, 0
      %1053 = vmatprep.subr.mxu0 0.0
      %1054 = vmatpush1.msra.mxu0 %v1051
      %1055 = vmatprep.subr.mxu0 0.0
      %1056 = vmatpush1.msra.mxu0 0.0
      %1057 = vmatprep.subr.mxu0 0.0
      %1058 = vmatpush1.msra.mxu0 0.0
      %1059 = vmatprep.subr.mxu0 0.0
      %1060 = vmatpush1.msra.mxu0 0.0
      %1061 = vmatprep.subr.mxu0 0.0
      %1062 = vmatpush1.msra.mxu0 0.0
      %1063 = vmatprep.subr.mxu0 0.0
      %1064 = vmatpush1.msra.mxu0 0.0
      %1065 = vmatprep.subr.mxu0 0.0
      %1066 = vmatpush1.msra.mxu0 0.0
      %1067 = vmatprep.subr.mxu0 0.0
      %1068 = vmatpush1.msra.mxu0 0.0
      %1069 = vmatprep.subr.mxu0 0.0
      %1070 = vmatpush1.msra.mxu0 0.0
      %1071 = vmatprep.subr.mxu0 0.0
      %1072 = vmatpush1.msra.mxu0 0.0
      %1073 = vmatprep.subr.mxu0 0.0
      %1074 = vmatpush1.msra.mxu0 0.0
      %1075 = vmatprep.subr.mxu0 0.0
      %1076 = vmatpush1.msra.mxu0 0.0
      %1077 = vmatprep.subr.mxu0 0.0
      %1078 = vmatpush1.msra.mxu0 0.0
      %1079 = vmatprep.subr.mxu0 0.0
      %1080 = vmatpush1.msra.mxu0 0.0
      %1081 = vmatprep.subr.mxu0 0.0
      %1082 = vmatpush1.msra.mxu0 0.0
      %1083 = vmatprep.subr.mxu0 0.0
      %1084 = vmatpush1.msra.mxu0 0.0
      %1085 = vmatprep.subr.mxu0 0.0
      %1086 = vmatpush1.msra.mxu0 0.0
      %1087 = vmatprep.subr.mxu0 0.0
      %1088 = vmatpush1.msra.mxu0 0.0
      %1089 = vmatprep.subr.mxu0 0.0
      %1090 = vmatpush1.msra.mxu0 0.0
      %1091 = vmatprep.subr.mxu0 0.0
      %1092 = vmatpush1.msra.mxu0 0.0
      %1093 = vmatprep.subr.mxu0 0.0
      %1094 = vmatpush1.msra.mxu0 0.0
      %1095 = vmatprep.subr.mxu0 0.0
      %1096 = vmatpush1.msra.mxu0 0.0
      %1097 = vmatprep.subr.mxu0 0.0
      %1098 = vmatpush1.msra.mxu0 0.0
      %1099 = vmatprep.subr.mxu0 0.0
      %1100 = vmatpush1.msra.mxu0 0.0
      %1101 = vmatprep.subr.mxu0 0.0
      %1102 = vmatpush1.msra.mxu0 0.0
      %1103 = vmatprep.subr.mxu0 0.0
      %1104 = vmatpush1.msra.mxu0 0.0
      %1105 = vmatprep.subr.mxu0 0.0
      %1106 = vmatpush1.msra.mxu0 0.0
      %1107 = vmatprep.subr.mxu0 0.0
      %1108 = vmatpush1.msra.mxu0 0.0
      %1109 = vmatprep.subr.mxu0 0.0
      %1110 = vmatpush1.msra.mxu0 0.0
      %1111 = vmatprep.subr.mxu0 0.0
      %1112 = vmatpush1.msra.mxu0 0.0
      %1113 = vmatprep.subr.mxu0 0.0
      %1114 = vmatpush1.msra.mxu0 0.0
      %1115 = vmatprep.subr.mxu0 0.0
      %1116 = vmatpush1.msra.mxu0 0.0
      %1117 = vmatprep.mubr.f32.mxu0 0.0
      %1118 = vmatmul.mubr.f32.gmra.mrb[0].mxu0 %v631
      %v1119 = vpop.f32.mrb[0].mxu0
      %v1120 = vadd.f32 0.0, %v1119
      %v1121 = vpop.f32.mrb[0].mxu0
      %1122 = vmatprep.mubr.f32.mxu0 0.0
      %1123 = vmatmul.mubr.f32.gmra.mrb[0].mxu0 %v633
      %v1124 = vpop.f32.mrb[0].mxu0
      %v1125 = vadd.f32 0.0, %v1124
      %v1126 = vpop.f32.mrb[0].mxu0
      %1127 = vmatprep.mubr.f32.mxu0 0.0
      %1128 = vmatmul.mubr.f32.gmra.mrb[0].mxu0 %v635
      %v1129 = vpop.f32.mrb[0].mxu0
      %v1130 = vadd.f32 0.0, %v1129
      %v1131 = vpop.f32.mrb[0].mxu0
      %1132 = vmatprep.mubr.f32.mxu0 0.0
      %1133 = vmatmul.mubr.f32.gmra.mrb[0].mxu0 %v637
      %v1134 = vpop.f32.mrb[0].mxu0
      %v1135 = vadd.f32 0.0, %v1134
      %v1136 = vpop.f32.mrb[0].mxu0
      %1137 = vmatprep.mubr.f32.mxu0 0.0
      %1138 = vmatmul.mubr.f32.gmra.mrb[0].mxu0 %v639
      %v1139 = vpop.f32.mrb[0].mxu0
      %v1140 = vadd.f32 0.0, %v1139
      %v1141 = vpop.f32.mrb[0].mxu0
      %1142 = vmatprep.mubr.f32.mxu0 0.0
      %1143 = vmatmul.mubr.f32.gmra.mrb[0].mxu0 %v641
      %v1144 = vpop.f32.mrb[0].mxu0
      %v1145 = vadd.f32 0.0, %v1144
      %v1146 = vpop.f32.mrb[0].mxu0
      %1147 = vmatprep.mubr.f32.mxu0 0.0
      %1148 = vmatmul.mubr.f32.gmra.mrb[0].mxu0 %v643
      %v1149 = vpop.f32.mrb[0].mxu0
      %v1150 = vadd.f32 0.0, %v1149
      %v1151 = vpop.f32.mrb[0].mxu0
      %1152 = vmatprep.mubr.f32.mxu0 0.0
      %1153 = vmatmul.mubr.f32.gmra.mrb[0].mxu0 %v645
      %v1154 = vpop.f32.mrb[0].mxu0
      %v1155 = vadd.f32 0.0, %v1154
      %v1156 = vpop.f32.mrb[0].mxu0
      %1157 = vmatprep.mubr.f32.mxu0 0.0
      %1158 = vmatmul.mubr.f32.gmra.mrb[0].mxu0 %v647
      %v1159 = vpop.f32.mrb[0].mxu0
      %v1160 = vadd.f32 0.0, %v1159
      %v1161 = vpop.f32.mrb[0].mxu0
      %1162 = vmatprep.mubr.f32.mxu0 0.0
      %1163 = vmatmul.mubr.f32.gmra.mrb[0].mxu0 %v649
      %v1164 = vpop.f32.mrb[0].mxu0
      %v1165 = vadd.f32 0.0, %v1164
      %v1166 = vpop.f32.mrb[0].mxu0
      %1167 = vmatprep.mubr.f32.mxu0 0.0
      %1168 = vmatmul.mubr.f32.gmra.mrb[0].mxu0 %v651
      %v1169 = vpop.f32.mrb[0].mxu0
      %v1170 = vadd.f32 0.0, %v1169
      %v1171 = vpop.f32.mrb[0].mxu0
      %1172 = vmatprep.mubr.f32.mxu0 0.0
      %1173 = vmatmul.mubr.f32.gmra.mrb[0].mxu0 %v653
      %v1174 = vpop.f32.mrb[0].mxu0
      %v1175 = vadd.f32 0.0, %v1174
      %v1176 = vpop.f32.mrb[0].mxu0
      %1177 = vmatprep.mubr.f32.mxu0 0.0
      %1178 = vmatmul.mubr.f32.gmra.mrb[0].mxu0 %v655
      %v1179 = vpop.f32.mrb[0].mxu0
      %v1180 = vadd.f32 0.0, %v1179
      %v1181 = vpop.f32.mrb[0].mxu0
      %1182 = vmatprep.mubr.f32.mxu0 0.0
      %1183 = vmatmul.mubr.f32.gmra.mrb[0].mxu0 %v657
      %v1184 = vpop.f32.mrb[0].mxu0
      %v1185 = vadd.f32 0.0, %v1184
      %v1186 = vpop.f32.mrb[0].mxu0
      %1187 = vmatprep.mubr.f32.mxu0 0.0
      %1188 = vmatmul.mubr.f32.gmra.mrb[0].mxu0 %v1045
      %v1189 = vpop.f32.mrb[0].mxu0
      %v1190 = vadd.f32 0.0, %v1189
      %v1191 = vpop.f32.mrb[0].mxu0
      %1192 = vmatprep.mubr.f32.mxu0 0.0
      %1193 = vmatmul.mubr.f32.gmra.mrb[0].mxu0 %v1048
      %v1194 = vpop.f32.mrb[0].mxu0
      %v1195 = vadd.f32 0.0, %v1194
      %v1196 = vpop.f32.mrb[0].mxu0
      %1197 = vdwg.mxu0
      %v1198 = vadd.f32 %v1028, %v1120
      %v1199 = vadd.f32 %v1029, %v1125
      %v1200 = vadd.f32 %v1030, %v1130
      %v1201 = vadd.f32 %v1031, %v1135
      %v1202 = vadd.f32 %v1032, %v1140
      %v1203 = vadd.f32 %v1033, %v1145
      %v1204 = vadd.f32 %v1034, %v1150
      %v1205 = vadd.f32 %v1035, %v1155
      %v1206 = vadd.f32 %v1036, %v1160
      %v1207 = vadd.f32 %v1037, %v1165
      %v1208 = vadd.f32 %v1038, %v1170
      %v1209 = vadd.f32 %v1039, %v1175
      %v1210 = vadd.f32 %v1040, %v1180
      %v1211 = vadd.f32 %v1041, %v1185
      %v1212 = vadd.f32 %v1042, %v1190
      %v1213 = vadd.f32 %v1043, %v1195
      %v1215 = vrot.slane %v365, 1
      %v1216 = vrot.slane %v366, 1
      %v1217 = vsel %vm404, %v1215, %v1216
      %v1218 = vrot.slane %v367, 1
      %v1219 = vsel %vm404, %v1216, %v1218
      %v1220 = vsel %vm445, %v1217, 0
      %v1222 = vsel %vm445, %v1219, 0
      %v1225 = vsel %vm478, %v375, 0
      %1227 = vmatprep.subr.mxu0 0.0
      %1228 = vmatpush1.msra.mxu0 %v1225
      %1229 = vmatprep.subr.mxu0 0.0
      %1230 = vmatpush1.msra.mxu0 0.0
      %1231 = vmatprep.subr.mxu0 0.0
      %1232 = vmatpush1.msra.mxu0 0.0
      %1233 = vmatprep.subr.mxu0 0.0
      %1234 = vmatpush1.msra.mxu0 0.0
      %1235 = vmatprep.subr.mxu0 0.0
      %1236 = vmatpush1.msra.mxu0 0.0
      %1237 = vmatprep.subr.mxu0 0.0
      %1238 = vmatpush1.msra.mxu0 0.0
      %1239 = vmatprep.subr.mxu0 0.0
      %1240 = vmatpush1.msra.mxu0 0.0
      %1241 = vmatprep.subr.mxu0 0.0
      %1242 = vmatpush1.msra.mxu0 0.0
      %1243 = vmatprep.subr.mxu0 0.0
      %1244 = vmatpush1.msra.mxu0 0.0
      %1245 = vmatprep.subr.mxu0 0.0
      %1246 = vmatpush1.msra.mxu0 0.0
      %1247 = vmatprep.subr.mxu0 0.0
      %1248 = vmatpush1.msra.mxu0 0.0
      %1249 = vmatprep.subr.mxu0 0.0
      %1250 = vmatpush1.msra.mxu0 0.0
      %1251 = vmatprep.subr.mxu0 0.0
      %1252 = vmatpush1.msra.mxu0 0.0
      %1253 = vmatprep.subr.mxu0 0.0
      %1254 = vmatpush1.msra.mxu0 0.0
      %1255 = vmatprep.subr.mxu0 0.0
      %1256 = vmatpush1.msra.mxu0 0.0
      %1257 = vmatprep.subr.mxu0 0.0
      %1258 = vmatpush1.msra.mxu0 0.0
      %1259 = vmatprep.subr.mxu0 0.0
      %1260 = vmatpush1.msra.mxu0 0.0
      %1261 = vmatprep.subr.mxu0 0.0
      %1262 = vmatpush1.msra.mxu0 0.0
      %1263 = vmatprep.subr.mxu0 0.0
      %1264 = vmatpush1.msra.mxu0 0.0
      %1265 = vmatprep.subr.mxu0 0.0
      %1266 = vmatpush1.msra.mxu0 0.0
      %1267 = vmatprep.subr.mxu0 0.0
      %1268 = vmatpush1.msra.mxu0 0.0
      %1269 = vmatprep.subr.mxu0 0.0
      %1270 = vmatpush1.msra.mxu0 0.0
      %1271 = vmatprep.subr.mxu0 0.0
      %1272 = vmatpush1.msra.mxu0 0.0
      %1273 = vmatprep.subr.mxu0 0.0
      %1274 = vmatpush1.msra.mxu0 0.0
      %1275 = vmatprep.subr.mxu0 0.0
      %1276 = vmatpush1.msra.mxu0 0.0
      %1277 = vmatprep.subr.mxu0 0.0
      %1278 = vmatpush1.msra.mxu0 0.0
      %1279 = vmatprep.subr.mxu0 0.0
      %1280 = vmatpush1.msra.mxu0 0.0
      %1281 = vmatprep.subr.mxu0 0.0
      %1282 = vmatpush1.msra.mxu0 0.0
      %1283 = vmatprep.subr.mxu0 0.0
      %1284 = vmatpush1.msra.mxu0 0.0
      %1285 = vmatprep.subr.mxu0 0.0
      %1286 = vmatpush1.msra.mxu0 0.0
      %1287 = vmatprep.subr.mxu0 0.0
      %1288 = vmatpush1.msra.mxu0 0.0
      %1289 = vmatprep.subr.mxu0 0.0
      %1290 = vmatpush1.msra.mxu0 0.0
      %1291 = vmatprep.mubr.f32.mxu0 0.0
      %1292 = vmatmul.mubr.f32.gmra.mrb[0].mxu0 %v450
      %v1293 = vpop.f32.mrb[0].mxu0
      %v1294 = vadd.f32 0.0, %v1293
      %v1295 = vpop.f32.mrb[0].mxu0
      %1296 = vmatprep.mubr.f32.mxu0 0.0
      %1297 = vmatmul.mubr.f32.gmra.mrb[0].mxu0 %v452
      %v1298 = vpop.f32.mrb[0].mxu0
      %v1299 = vadd.f32 0.0, %v1298
      %v1300 = vpop.f32.mrb[0].mxu0
      %1301 = vmatprep.mubr.f32.mxu0 0.0
      %1302 = vmatmul.mubr.f32.gmra.mrb[0].mxu0 %v454
      %v1303 = vpop.f32.mrb[0].mxu0
      %v1304 = vadd.f32 0.0, %v1303
      %v1305 = vpop.f32.mrb[0].mxu0
      %1306 = vmatprep.mubr.f32.mxu0 0.0
      %1307 = vmatmul.mubr.f32.gmra.mrb[0].mxu0 %v456
      %v1308 = vpop.f32.mrb[0].mxu0
      %v1309 = vadd.f32 0.0, %v1308
      %v1310 = vpop.f32.mrb[0].mxu0
      %1311 = vmatprep.mubr.f32.mxu0 0.0
      %1312 = vmatmul.mubr.f32.gmra.mrb[0].mxu0 %v458
      %v1313 = vpop.f32.mrb[0].mxu0
      %v1314 = vadd.f32 0.0, %v1313
      %v1315 = vpop.f32.mrb[0].mxu0
      %1316 = vmatprep.mubr.f32.mxu0 0.0
      %1317 = vmatmul.mubr.f32.gmra.mrb[0].mxu0 %v460
      %v1318 = vpop.f32.mrb[0].mxu0
      %v1319 = vadd.f32 0.0, %v1318
      %v1320 = vpop.f32.mrb[0].mxu0
      %1321 = vmatprep.mubr.f32.mxu0 0.0
      %1322 = vmatmul.mubr.f32.gmra.mrb[0].mxu0 %v462
      %v1323 = vpop.f32.mrb[0].mxu0
      %v1324 = vadd.f32 0.0, %v1323
      %v1325 = vpop.f32.mrb[0].mxu0
      %1326 = vmatprep.mubr.f32.mxu0 0.0
      %1327 = vmatmul.mubr.f32.gmra.mrb[0].mxu0 %v464
      %v1328 = vpop.f32.mrb[0].mxu0
      %v1329 = vadd.f32 0.0, %v1328
      %v1330 = vpop.f32.mrb[0].mxu0
      %1331 = vmatprep.mubr.f32.mxu0 0.0
      %1332 = vmatmul.mubr.f32.gmra.mrb[0].mxu0 %v466
      %v1333 = vpop.f32.mrb[0].mxu0
      %v1334 = vadd.f32 0.0, %v1333
      %v1335 = vpop.f32.mrb[0].mxu0
      %1336 = vmatprep.mubr.f32.mxu0 0.0
      %1337 = vmatmul.mubr.f32.gmra.mrb[0].mxu0 %v468
      %v1338 = vpop.f32.mrb[0].mxu0
      %v1339 = vadd.f32 0.0, %v1338
      %v1340 = vpop.f32.mrb[0].mxu0
      %1341 = vmatprep.mubr.f32.mxu0 0.0
      %1342 = vmatmul.mubr.f32.gmra.mrb[0].mxu0 %v470
      %v1343 = vpop.f32.mrb[0].mxu0
      %v1344 = vadd.f32 0.0, %v1343
      %v1345 = vpop.f32.mrb[0].mxu0
      %1346 = vmatprep.mubr.f32.mxu0 0.0
      %1347 = vmatmul.mubr.f32.gmra.mrb[0].mxu0 %v472
      %v1348 = vpop.f32.mrb[0].mxu0
      %v1349 = vadd.f32 0.0, %v1348
      %v1350 = vpop.f32.mrb[0].mxu0
      %1351 = vmatprep.mubr.f32.mxu0 0.0
      %1352 = vmatmul.mubr.f32.gmra.mrb[0].mxu0 %v474
      %v1353 = vpop.f32.mrb[0].mxu0
      %v1354 = vadd.f32 0.0, %v1353
      %v1355 = vpop.f32.mrb[0].mxu0
      %1356 = vmatprep.mubr.f32.mxu0 0.0
      %1357 = vmatmul.mubr.f32.gmra.mrb[0].mxu0 %v476
      %v1358 = vpop.f32.mrb[0].mxu0
      %v1359 = vadd.f32 0.0, %v1358
      %v1360 = vpop.f32.mrb[0].mxu0
      %1361 = vmatprep.mubr.f32.mxu0 0.0
      %1362 = vmatmul.mubr.f32.gmra.mrb[0].mxu0 %v1220
      %v1363 = vpop.f32.mrb[0].mxu0
      %v1364 = vadd.f32 0.0, %v1363
      %v1365 = vpop.f32.mrb[0].mxu0
      %1366 = vmatprep.mubr.f32.mxu0 0.0
      %1367 = vmatmul.mubr.f32.gmra.mrb[0].mxu0 %v1222
      %v1368 = vpop.f32.mrb[0].mxu0
      %v1369 = vadd.f32 0.0, %v1368
      %v1370 = vpop.f32.mrb[0].mxu0
      %1371 = vdwg.mxu0
      %v1372 = vadd.f32 %v1198, %v1294
      %v1373 = vadd.f32 %v1199, %v1299
      %v1374 = vadd.f32 %v1200, %v1304
      %v1375 = vadd.f32 %v1201, %v1309
      %v1376 = vadd.f32 %v1202, %v1314
      %v1377 = vadd.f32 %v1203, %v1319
      %v1378 = vadd.f32 %v1204, %v1324
      %v1379 = vadd.f32 %v1205, %v1329
      %v1380 = vadd.f32 %v1206, %v1334
      %v1381 = vadd.f32 %v1207, %v1339
      %v1382 = vadd.f32 %v1208, %v1344
      %v1383 = vadd.f32 %v1209, %v1349
      %v1384 = vadd.f32 %v1210, %v1354
      %v1385 = vadd.f32 %v1211, %v1359
      %v1386 = vadd.f32 %v1212, %v1364
      %v1387 = vadd.f32 %v1213, %v1369
      %v1388 = vrot.slane %v365, 2
      %v1389 = vrot.slane %v366, 2
      %v1390 = vsel %vm807, %v1388, %v1389
      %v1391 = vrot.slane %v367, 2
      %v1392 = vsel %vm807, %v1389, %v1391
      %v1393 = vsel %vm445, %v1390, 0
      %v1395 = vsel %vm445, %v1392, 0
      %v1398 = vsel %vm478, %v376, 0
      %1400 = vmatprep.subr.mxu0 0.0
      %1401 = vmatpush1.msra.mxu0 %v1398
      %1402 = vmatprep.subr.mxu0 0.0
      %1403 = vmatpush1.msra.mxu0 0.0
      %1404 = vmatprep.subr.mxu0 0.0
      %1405 = vmatpush1.msra.mxu0 0.0
      %1406 = vmatprep.subr.mxu0 0.0
      %1407 = vmatpush1.msra.mxu0 0.0
      %1408 = vmatprep.subr.mxu0 0.0
      %1409 = vmatpush1.msra.mxu0 0.0
      %1410 = vmatprep.subr.mxu0 0.0
      %1411 = vmatpush1.msra.mxu0 0.0
      %1412 = vmatprep.subr.mxu0 0.0
      %1413 = vmatpush1.msra.mxu0 0.0
      %1414 = vmatprep.subr.mxu0 0.0
      %1415 = vmatpush1.msra.mxu0 0.0
      %1416 = vmatprep.subr.mxu0 0.0
      %1417 = vmatpush1.msra.mxu0 0.0
      %1418 = vmatprep.subr.mxu0 0.0
      %1419 = vmatpush1.msra.mxu0 0.0
      %1420 = vmatprep.subr.mxu0 0.0
      %1421 = vmatpush1.msra.mxu0 0.0
      %1422 = vmatprep.subr.mxu0 0.0
      %1423 = vmatpush1.msra.mxu0 0.0
      %1424 = vmatprep.subr.mxu0 0.0
      %1425 = vmatpush1.msra.mxu0 0.0
      %1426 = vmatprep.subr.mxu0 0.0
      %1427 = vmatpush1.msra.mxu0 0.0
      %1428 = vmatprep.subr.mxu0 0.0
      %1429 = vmatpush1.msra.mxu0 0.0
      %1430 = vmatprep.subr.mxu0 0.0
      %1431 = vmatpush1.msra.mxu0 0.0
      %1432 = vmatprep.subr.mxu0 0.0
      %1433 = vmatpush1.msra.mxu0 0.0
      %1434 = vmatprep.subr.mxu0 0.0
      %1435 = vmatpush1.msra.mxu0 0.0
      %1436 = vmatprep.subr.mxu0 0.0
      %1437 = vmatpush1.msra.mxu0 0.0
      %1438 = vmatprep.subr.mxu0 0.0
      %1439 = vmatpush1.msra.mxu0 0.0
      %1440 = vmatprep.subr.mxu0 0.0
      %1441 = vmatpush1.msra.mxu0 0.0
      %1442 = vmatprep.subr.mxu0 0.0
      %1443 = vmatpush1.msra.mxu0 0.0
      %1444 = vmatprep.subr.mxu0 0.0
      %1445 = vmatpush1.msra.mxu0 0.0
      %1446 = vmatprep.subr.mxu0 0.0
      %1447 = vmatpush1.msra.mxu0 0.0
      %1448 = vmatprep.subr.mxu0 0.0
      %1449 = vmatpush1.msra.mxu0 0.0
      %1450 = vmatprep.subr.mxu0 0.0
      %1451 = vmatpush1.msra.mxu0 0.0
      %1452 = vmatprep.subr.mxu0 0.0
      %1453 = vmatpush1.msra.mxu0 0.0
      %1454 = vmatprep.subr.mxu0 0.0
      %1455 = vmatpush1.msra.mxu0 0.0
      %1456 = vmatprep.subr.mxu0 0.0
      %1457 = vmatpush1.msra.mxu0 0.0
      %1458 = vmatprep.subr.mxu0 0.0
      %1459 = vmatpush1.msra.mxu0 0.0
      %1460 = vmatprep.subr.mxu0 0.0
      %1461 = vmatpush1.msra.mxu0 0.0
      %1462 = vmatprep.subr.mxu0 0.0
      %1463 = vmatpush1.msra.mxu0 0.0
      %1464 = vmatprep.mubr.f32.mxu0 0.0
      %1465 = vmatmul.mubr.f32.gmra.mrb[0].mxu0 %v852
      %v1466 = vpop.f32.mrb[0].mxu0
      %v1467 = vadd.f32 0.0, %v1466
      %v1468 = vpop.f32.mrb[0].mxu0
      %1469 = vmatprep.mubr.f32.mxu0 0.0
      %1470 = vmatmul.mubr.f32.gmra.mrb[0].mxu0 %v854
      %v1471 = vpop.f32.mrb[0].mxu0
      %v1472 = vadd.f32 0.0, %v1471
      %v1473 = vpop.f32.mrb[0].mxu0
      %1474 = vmatprep.mubr.f32.mxu0 0.0
      %1475 = vmatmul.mubr.f32.gmra.mrb[0].mxu0 %v856
      %v1476 = vpop.f32.mrb[0].mxu0
      %v1477 = vadd.f32 0.0, %v1476
      %v1478 = vpop.f32.mrb[0].mxu0
      %1479 = vmatprep.mubr.f32.mxu0 0.0
      %1480 = vmatmul.mubr.f32.gmra.mrb[0].mxu0 %v858
      %v1481 = vpop.f32.mrb[0].mxu0
      %v1482 = vadd.f32 0.0, %v1481
      %v1483 = vpop.f32.mrb[0].mxu0
      %1484 = vmatprep.mubr.f32.mxu0 0.0
      %1485 = vmatmul.mubr.f32.gmra.mrb[0].mxu0 %v860
      %v1486 = vpop.f32.mrb[0].mxu0
      %v1487 = vadd.f32 0.0, %v1486
      %v1488 = vpop.f32.mrb[0].mxu0
      %1489 = vmatprep.mubr.f32.mxu0 0.0
      %1490 = vmatmul.mubr.f32.gmra.mrb[0].mxu0 %v862
      %v1491 = vpop.f32.mrb[0].mxu0
      %v1492 = vadd.f32 0.0, %v1491
      %v1493 = vpop.f32.mrb[0].mxu0
      %1494 = vmatprep.mubr.f32.mxu0 0.0
      %1495 = vmatmul.mubr.f32.gmra.mrb[0].mxu0 %v864
      %v1496 = vpop.f32.mrb[0].mxu0
      %v1497 = vadd.f32 0.0, %v1496
      %v1498 = vpop.f32.mrb[0].mxu0
      %1499 = vmatprep.mubr.f32.mxu0 0.0
      %1500 = vmatmul.mubr.f32.gmra.mrb[0].mxu0 %v866
      %v1501 = vpop.f32.mrb[0].mxu0
      %v1502 = vadd.f32 0.0, %v1501
      %v1503 = vpop.f32.mrb[0].mxu0
      %1504 = vmatprep.mubr.f32.mxu0 0.0
      %1505 = vmatmul.mubr.f32.gmra.mrb[0].mxu0 %v868
      %v1506 = vpop.f32.mrb[0].mxu0
      %v1507 = vadd.f32 0.0, %v1506
      %v1508 = vpop.f32.mrb[0].mxu0
      %1509 = vmatprep.mubr.f32.mxu0 0.0
      %1510 = vmatmul.mubr.f32.gmra.mrb[0].mxu0 %v870
      %v1511 = vpop.f32.mrb[0].mxu0
      %v1512 = vadd.f32 0.0, %v1511
      %v1513 = vpop.f32.mrb[0].mxu0
      %1514 = vmatprep.mubr.f32.mxu0 0.0
      %1515 = vmatmul.mubr.f32.gmra.mrb[0].mxu0 %v872
      %v1516 = vpop.f32.mrb[0].mxu0
      %v1517 = vadd.f32 0.0, %v1516
      %v1518 = vpop.f32.mrb[0].mxu0
      %1519 = vmatprep.mubr.f32.mxu0 0.0
      %1520 = vmatmul.mubr.f32.gmra.mrb[0].mxu0 %v874
      %v1521 = vpop.f32.mrb[0].mxu0
      %v1522 = vadd.f32 0.0, %v1521
      %v1523 = vpop.f32.mrb[0].mxu0
      %1524 = vmatprep.mubr.f32.mxu0 0.0
      %1525 = vmatmul.mubr.f32.gmra.mrb[0].mxu0 %v876
      %v1526 = vpop.f32.mrb[0].mxu0
      %v1527 = vadd.f32 0.0, %v1526
      %v1528 = vpop.f32.mrb[0].mxu0
      %1529 = vmatprep.mubr.f32.mxu0 0.0
      %1530 = vmatmul.mubr.f32.gmra.mrb[0].mxu0 %v878
      %v1531 = vpop.f32.mrb[0].mxu0
      %v1532 = vadd.f32 0.0, %v1531
      %v1533 = vpop.f32.mrb[0].mxu0
      %1534 = vmatprep.mubr.f32.mxu0 0.0
      %1535 = vmatmul.mubr.f32.gmra.mrb[0].mxu0 %v1393
      %v1536 = vpop.f32.mrb[0].mxu0
      %v1537 = vadd.f32 0.0, %v1536
      %v1538 = vpop.f32.mrb[0].mxu0
      %1539 = vmatprep.mubr.f32.mxu0 0.0
      %1540 = vmatmul.mubr.f32.gmra.mrb[0].mxu0 %v1395
      %v1541 = vpop.f32.mrb[0].mxu0
      %v1542 = vadd.f32 0.0, %v1541
      %v1543 = vpop.f32.mrb[0].mxu0
      %1544 = vdwg.mxu0
      %v1545 = vadd.f32 %v1372, %v1467
      %v1546 = vadd.f32 %v1373, %v1472
      %v1547 = vadd.f32 %v1374, %v1477
      %v1548 = vadd.f32 %v1375, %v1482
      %v1549 = vadd.f32 %v1376, %v1487
      %v1550 = vadd.f32 %v1377, %v1492
      %v1551 = vadd.f32 %v1378, %v1497
      %v1552 = vadd.f32 %v1379, %v1502
      %v1553 = vadd.f32 %v1380, %v1507
      %v1554 = vadd.f32 %v1381, %v1512
      %v1555 = vadd.f32 %v1382, %v1517
      %v1556 = vadd.f32 %v1383, %v1522
      %v1557 = vadd.f32 %v1384, %v1527
      %v1558 = vadd.f32 %v1385, %v1532
      %v1559 = vadd.f32 %v1386, %v1537
      %v1560 = vadd.f32 %v1387, %v1542
      %v1562 = vsel %vm445, %v368, 0
      %v1565 = vsel %vm445, %v369, 0
      %v1568 = vsel %vm478, %v377, 0
      %1570 = vmatprep.subr.mxu0 0.0
      %1571 = vmatpush1.msra.mxu0 %v1568
      %1572 = vmatprep.subr.mxu0 0.0
      %1573 = vmatpush1.msra.mxu0 0.0
      %1574 = vmatprep.subr.mxu0 0.0
      %1575 = vmatpush1.msra.mxu0 0.0
      %1576 = vmatprep.subr.mxu0 0.0
      %1577 = vmatpush1.msra.mxu0 0.0
      %1578 = vmatprep.subr.mxu0 0.0
      %1579 = vmatpush1.msra.mxu0 0.0
      %1580 = vmatprep.subr.mxu0 0.0
      %1581 = vmatpush1.msra.mxu0 0.0
      %1582 = vmatprep.subr.mxu0 0.0
      %1583 = vmatpush1.msra.mxu0 0.0
      %1584 = vmatprep.subr.mxu0 0.0
      %1585 = vmatpush1.msra.mxu0 0.0
      %1586 = vmatprep.subr.mxu0 0.0
      %1587 = vmatpush1.msra.mxu0 0.0
      %1588 = vmatprep.subr.mxu0 0.0
      %1589 = vmatpush1.msra.mxu0 0.0
      %1590 = vmatprep.subr.mxu0 0.0
      %1591 = vmatpush1.msra.mxu0 0.0
      %1592 = vmatprep.subr.mxu0 0.0
      %1593 = vmatpush1.msra.mxu0 0.0
      %1594 = vmatprep.subr.mxu0 0.0
      %1595 = vmatpush1.msra.mxu0 0.0
      %1596 = vmatprep.subr.mxu0 0.0
      %1597 = vmatpush1.msra.mxu0 0.0
      %1598 = vmatprep.subr.mxu0 0.0
      %1599 = vmatpush1.msra.mxu0 0.0
      %1600 = vmatprep.subr.mxu0 0.0
      %1601 = vmatpush1.msra.mxu0 0.0
      %1602 = vmatprep.subr.mxu0 0.0
      %1603 = vmatpush1.msra.mxu0 0.0
      %1604 = vmatprep.subr.mxu0 0.0
      %1605 = vmatpush1.msra.mxu0 0.0
      %1606 = vmatprep.subr.mxu0 0.0
      %1607 = vmatpush1.msra.mxu0 0.0
      %1608 = vmatprep.subr.mxu0 0.0
      %1609 = vmatpush1.msra.mxu0 0.0
      %1610 = vmatprep.subr.mxu0 0.0
      %1611 = vmatpush1.msra.mxu0 0.0
      %1612 = vmatprep.subr.mxu0 0.0
      %1613 = vmatpush1.msra.mxu0 0.0
      %1614 = vmatprep.subr.mxu0 0.0
      %1615 = vmatpush1.msra.mxu0 0.0
      %1616 = vmatprep.subr.mxu0 0.0
      %1617 = vmatpush1.msra.mxu0 0.0
      %1618 = vmatprep.subr.mxu0 0.0
      %1619 = vmatpush1.msra.mxu0 0.0
      %1620 = vmatprep.subr.mxu0 0.0
      %1621 = vmatpush1.msra.mxu0 0.0
      %1622 = vmatprep.subr.mxu0 0.0
      %1623 = vmatpush1.msra.mxu0 0.0
      %1624 = vmatprep.subr.mxu0 0.0
      %1625 = vmatpush1.msra.mxu0 0.0
      %1626 = vmatprep.subr.mxu0 0.0
      %1627 = vmatpush1.msra.mxu0 0.0
      %1628 = vmatprep.subr.mxu0 0.0
      %1629 = vmatpush1.msra.mxu0 0.0
      %1630 = vmatprep.subr.mxu0 0.0
      %1631 = vmatpush1.msra.mxu0 0.0
      %1632 = vmatprep.subr.mxu0 0.0
      %1633 = vmatpush1.msra.mxu0 0.0
      %1634 = vmatprep.mubr.f32.mxu0 0.0
      %1635 = vmatmul.mubr.f32.gmra.mrb[0].mxu0 %v635
      %v1636 = vpop.f32.mrb[0].mxu0
      %v1637 = vadd.f32 0.0, %v1636
      %v1638 = vpop.f32.mrb[0].mxu0
      %1639 = vmatprep.mubr.f32.mxu0 0.0
      %1640 = vmatmul.mubr.f32.gmra.mrb[0].mxu0 %v637
      %v1641 = vpop.f32.mrb[0].mxu0
      %v1642 = vadd.f32 0.0, %v1641
      %v1643 = vpop.f32.mrb[0].mxu0
      %1644 = vmatprep.mubr.f32.mxu0 0.0
      %1645 = vmatmul.mubr.f32.gmra.mrb[0].mxu0 %v639
      %v1646 = vpop.f32.mrb[0].mxu0
      %v1647 = vadd.f32 0.0, %v1646
      %v1648 = vpop.f32.mrb[0].mxu0
      %1649 = vmatprep.mubr.f32.mxu0 0.0
      %1650 = vmatmul.mubr.f32.gmra.mrb[0].mxu0 %v641
      %v1651 = vpop.f32.mrb[0].mxu0
      %v1652 = vadd.f32 0.0, %v1651
      %v1653 = vpop.f32.mrb[0].mxu0
      %1654 = vmatprep.mubr.f32.mxu0 0.0
      %1655 = vmatmul.mubr.f32.gmra.mrb[0].mxu0 %v643
      %v1656 = vpop.f32.mrb[0].mxu0
      %v1657 = vadd.f32 0.0, %v1656
      %v1658 = vpop.f32.mrb[0].mxu0
      %1659 = vmatprep.mubr.f32.mxu0 0.0
      %1660 = vmatmul.mubr.f32.gmra.mrb[0].mxu0 %v645
      %v1661 = vpop.f32.mrb[0].mxu0
      %v1662 = vadd.f32 0.0, %v1661
      %v1663 = vpop.f32.mrb[0].mxu0
      %1664 = vmatprep.mubr.f32.mxu0 0.0
      %1665 = vmatmul.mubr.f32.gmra.mrb[0].mxu0 %v647
      %v1666 = vpop.f32.mrb[0].mxu0
      %v1667 = vadd.f32 0.0, %v1666
      %v1668 = vpop.f32.mrb[0].mxu0
      %1669 = vmatprep.mubr.f32.mxu0 0.0
      %1670 = vmatmul.mubr.f32.gmra.mrb[0].mxu0 %v649
      %v1671 = vpop.f32.mrb[0].mxu0
      %v1672 = vadd.f32 0.0, %v1671
      %v1673 = vpop.f32.mrb[0].mxu0
      %1674 = vmatprep.mubr.f32.mxu0 0.0
      %1675 = vmatmul.mubr.f32.gmra.mrb[0].mxu0 %v651
      %v1676 = vpop.f32.mrb[0].mxu0
      %v1677 = vadd.f32 0.0, %v1676
      %v1678 = vpop.f32.mrb[0].mxu0
      %1679 = vmatprep.mubr.f32.mxu0 0.0
      %1680 = vmatmul.mubr.f32.gmra.mrb[0].mxu0 %v653
      %v1681 = vpop.f32.mrb[0].mxu0
      %v1682 = vadd.f32 0.0, %v1681
      %v1683 = vpop.f32.mrb[0].mxu0
      %1684 = vmatprep.mubr.f32.mxu0 0.0
      %1685 = vmatmul.mubr.f32.gmra.mrb[0].mxu0 %v655
      %v1686 = vpop.f32.mrb[0].mxu0
      %v1687 = vadd.f32 0.0, %v1686
      %v1688 = vpop.f32.mrb[0].mxu0
      %1689 = vmatprep.mubr.f32.mxu0 0.0
      %1690 = vmatmul.mubr.f32.gmra.mrb[0].mxu0 %v657
      %v1691 = vpop.f32.mrb[0].mxu0
      %v1692 = vadd.f32 0.0, %v1691
      %v1693 = vpop.f32.mrb[0].mxu0
      %1694 = vmatprep.mubr.f32.mxu0 0.0
      %1695 = vmatmul.mubr.f32.gmra.mrb[0].mxu0 %v1045
      %v1696 = vpop.f32.mrb[0].mxu0
      %v1697 = vadd.f32 0.0, %v1696
      %v1698 = vpop.f32.mrb[0].mxu0
      %1699 = vmatprep.mubr.f32.mxu0 0.0
      %1700 = vmatmul.mubr.f32.gmra.mrb[0].mxu0 %v1048
      %v1701 = vpop.f32.mrb[0].mxu0
      %v1702 = vadd.f32 0.0, %v1701
      %v1703 = vpop.f32.mrb[0].mxu0
      %1704 = vmatprep.mubr.f32.mxu0 0.0
      %1705 = vmatmul.mubr.f32.gmra.mrb[0].mxu0 %v1562
      %v1706 = vpop.f32.mrb[0].mxu0
      %v1707 = vadd.f32 0.0, %v1706
      %v1708 = vpop.f32.mrb[0].mxu0
      %1709 = vmatprep.mubr.f32.mxu0 0.0
      %1710 = vmatmul.mubr.f32.gmra.mrb[0].mxu0 %v1565
      %v1711 = vpop.f32.mrb[0].mxu0
      %v1712 = vadd.f32 0.0, %v1711
      %v1713 = vpop.f32.mrb[0].mxu0
      %1714 = vdwg.mxu0
      %v1715 = vadd.f32 %v1545, %v1637
      %v1716 = vadd.f32 %v1546, %v1642
      %v1717 = vadd.f32 %v1547, %v1647
      %v1718 = vadd.f32 %v1548, %v1652
      %v1719 = vadd.f32 %v1549, %v1657
      %v1720 = vadd.f32 %v1550, %v1662
      %v1721 = vadd.f32 %v1551, %v1667
      %v1722 = vadd.f32 %v1552, %v1672
      %v1723 = vadd.f32 %v1553, %v1677
      %v1724 = vadd.f32 %v1554, %v1682
      %v1725 = vadd.f32 %v1555, %v1687
      %v1726 = vadd.f32 %v1556, %v1692
      %v1727 = vadd.f32 %v1557, %v1697
      %v1728 = vadd.f32 %v1558, %v1702
      %v1729 = vadd.f32 %v1559, %v1707
      %v1730 = vadd.f32 %v1560, %v1712
      %v1732 = vrot.slane %v368, 1
      %v1733 = vrot.slane %v369, 1
      %v1734 = vsel %vm404, %v1732, %v1733
      %v1735 = vrot.slane %v370, 1
      %v1736 = vsel %vm404, %v1733, %v1735
      %v1737 = vsel %vm445, %v1734, 0
      %v1739 = vsel %vm445, %v1736, 0
      %v1742 = vsel %vm478, %v378, 0
      %1744 = vmatprep.subr.mxu0 0.0
      %1745 = vmatpush1.msra.mxu0 %v1742
      %1746 = vmatprep.subr.mxu0 0.0
      %1747 = vmatpush1.msra.mxu0 0.0
      %1748 = vmatprep.subr.mxu0 0.0
      %1749 = vmatpush1.msra.mxu0 0.0
      %1750 = vmatprep.subr.mxu0 0.0
      %1751 = vmatpush1.msra.mxu0 0.0
      %1752 = vmatprep.subr.mxu0 0.0
      %1753 = vmatpush1.msra.mxu0 0.0
      %1754 = vmatprep.subr.mxu0 0.0
      %1755 = vmatpush1.msra.mxu0 0.0
      %1756 = vmatprep.subr.mxu0 0.0
      %1757 = vmatpush1.msra.mxu0 0.0
      %1758 = vmatprep.subr.mxu0 0.0
      %1759 = vmatpush1.msra.mxu0 0.0
      %1760 = vmatprep.subr.mxu0 0.0
      %1761 = vmatpush1.msra.mxu0 0.0
      %1762 = vmatprep.subr.mxu0 0.0
      %1763 = vmatpush1.msra.mxu0 0.0
      %1764 = vmatprep.subr.mxu0 0.0
      %1765 = vmatpush1.msra.mxu0 0.0
      %1766 = vmatprep.subr.mxu0 0.0
      %1767 = vmatpush1.msra.mxu0 0.0
      %1768 = vmatprep.subr.mxu0 0.0
      %1769 = vmatpush1.msra.mxu0 0.0
      %1770 = vmatprep.subr.mxu0 0.0
      %1771 = vmatpush1.msra.mxu0 0.0
      %1772 = vmatprep.subr.mxu0 0.0
      %1773 = vmatpush1.msra.mxu0 0.0
      %1774 = vmatprep.subr.mxu0 0.0
      %1775 = vmatpush1.msra.mxu0 0.0
      %1776 = vmatprep.subr.mxu0 0.0
      %1777 = vmatpush1.msra.mxu0 0.0
      %1778 = vmatprep.subr.mxu0 0.0
      %1779 = vmatpush1.msra.mxu0 0.0
      %1780 = vmatprep.subr.mxu0 0.0
      %1781 = vmatpush1.msra.mxu0 0.0
      %1782 = vmatprep.subr.mxu0 0.0
      %1783 = vmatpush1.msra.mxu0 0.0
      %1784 = vmatprep.subr.mxu0 0.0
      %1785 = vmatpush1.msra.mxu0 0.0
      %1786 = vmatprep.subr.mxu0 0.0
      %1787 = vmatpush1.msra.mxu0 0.0
      %1788 = vmatprep.subr.mxu0 0.0
      %1789 = vmatpush1.msra.mxu0 0.0
      %1790 = vmatprep.subr.mxu0 0.0
      %1791 = vmatpush1.msra.mxu0 0.0
      %1792 = vmatprep.subr.mxu0 0.0
      %1793 = vmatpush1.msra.mxu0 0.0
      %1794 = vmatprep.subr.mxu0 0.0
      %1795 = vmatpush1.msra.mxu0 0.0
      %1796 = vmatprep.subr.mxu0 0.0
      %1797 = vmatpush1.msra.mxu0 0.0
      %1798 = vmatprep.subr.mxu0 0.0
      %1799 = vmatpush1.msra.mxu0 0.0
      %1800 = vmatprep.subr.mxu0 0.0
      %1801 = vmatpush1.msra.mxu0 0.0
      %1802 = vmatprep.subr.mxu0 0.0
      %1803 = vmatpush1.msra.mxu0 0.0
      %1804 = vmatprep.subr.mxu0 0.0
      %1805 = vmatpush1.msra.mxu0 0.0
      %1806 = vmatprep.subr.mxu0 0.0
      %1807 = vmatpush1.msra.mxu0 0.0
      %1808 = vmatprep.mubr.f32.mxu0 0.0
      %1809 = vmatmul.mubr.f32.gmra.mrb[0].mxu0 %v454
      %v1810 = vpop.f32.mrb[0].mxu0
      %v1811 = vadd.f32 0.0, %v1810
      %v1812 = vpop.f32.mrb[0].mxu0
      %1813 = vmatprep.mubr.f32.mxu0 0.0
      %1814 = vmatmul.mubr.f32.gmra.mrb[0].mxu0 %v456
      %v1815 = vpop.f32.mrb[0].mxu0
      %v1816 = vadd.f32 0.0, %v1815
      %v1817 = vpop.f32.mrb[0].mxu0
      %1818 = vmatprep.mubr.f32.mxu0 0.0
      %1819 = vmatmul.mubr.f32.gmra.mrb[0].mxu0 %v458
      %v1820 = vpop.f32.mrb[0].mxu0
      %v1821 = vadd.f32 0.0, %v1820
      %v1822 = vpop.f32.mrb[0].mxu0
      %1823 = vmatprep.mubr.f32.mxu0 0.0
      %1824 = vmatmul.mubr.f32.gmra.mrb[0].mxu0 %v460
      %v1825 = vpop.f32.mrb[0].mxu0
      %v1826 = vadd.f32 0.0, %v1825
      %v1827 = vpop.f32.mrb[0].mxu0
      %1828 = vmatprep.mubr.f32.mxu0 0.0
      %1829 = vmatmul.mubr.f32.gmra.mrb[0].mxu0 %v462
      %v1830 = vpop.f32.mrb[0].mxu0
      %v1831 = vadd.f32 0.0, %v1830
      %v1832 = vpop.f32.mrb[0].mxu0
      %1833 = vmatprep.mubr.f32.mxu0 0.0
      %1834 = vmatmul.mubr.f32.gmra.mrb[0].mxu0 %v464
      %v1835 = vpop.f32.mrb[0].mxu0
      %v1836 = vadd.f32 0.0, %v1835
      %v1837 = vpop.f32.mrb[0].mxu0
      %1838 = vmatprep.mubr.f32.mxu0 0.0
      %1839 = vmatmul.mubr.f32.gmra.mrb[0].mxu0 %v466
      %v1840 = vpop.f32.mrb[0].mxu0
      %v1841 = vadd.f32 0.0, %v1840
      %v1842 = vpop.f32.mrb[0].mxu0
      %1843 = vmatprep.mubr.f32.mxu0 0.0
      %1844 = vmatmul.mubr.f32.gmra.mrb[0].mxu0 %v468
      %v1845 = vpop.f32.mrb[0].mxu0
      %v1846 = vadd.f32 0.0, %v1845
      %v1847 = vpop.f32.mrb[0].mxu0
      %1848 = vmatprep.mubr.f32.mxu0 0.0
      %1849 = vmatmul.mubr.f32.gmra.mrb[0].mxu0 %v470
      %v1850 = vpop.f32.mrb[0].mxu0
      %v1851 = vadd.f32 0.0, %v1850
      %v1852 = vpop.f32.mrb[0].mxu0
      %1853 = vmatprep.mubr.f32.mxu0 0.0
      %1854 = vmatmul.mubr.f32.gmra.mrb[0].mxu0 %v472
      %v1855 = vpop.f32.mrb[0].mxu0
      %v1856 = vadd.f32 0.0, %v1855
      %v1857 = vpop.f32.mrb[0].mxu0
      %1858 = vmatprep.mubr.f32.mxu0 0.0
      %1859 = vmatmul.mubr.f32.gmra.mrb[0].mxu0 %v474
      %v1860 = vpop.f32.mrb[0].mxu0
      %v1861 = vadd.f32 0.0, %v1860
      %v1862 = vpop.f32.mrb[0].mxu0
      %1863 = vmatprep.mubr.f32.mxu0 0.0
      %1864 = vmatmul.mubr.f32.gmra.mrb[0].mxu0 %v476
      %v1865 = vpop.f32.mrb[0].mxu0
      %v1866 = vadd.f32 0.0, %v1865
      %v1867 = vpop.f32.mrb[0].mxu0
      %1868 = vmatprep.mubr.f32.mxu0 0.0
      %1869 = vmatmul.mubr.f32.gmra.mrb[0].mxu0 %v1220
      %v1870 = vpop.f32.mrb[0].mxu0
      %v1871 = vadd.f32 0.0, %v1870
      %v1872 = vpop.f32.mrb[0].mxu0
      %1873 = vmatprep.mubr.f32.mxu0 0.0
      %1874 = vmatmul.mubr.f32.gmra.mrb[0].mxu0 %v1222
      %v1875 = vpop.f32.mrb[0].mxu0
      %v1876 = vadd.f32 0.0, %v1875
      %v1877 = vpop.f32.mrb[0].mxu0
      %1878 = vmatprep.mubr.f32.mxu0 0.0
      %1879 = vmatmul.mubr.f32.gmra.mrb[0].mxu0 %v1737
      %v1880 = vpop.f32.mrb[0].mxu0
      %v1881 = vadd.f32 0.0, %v1880
      %v1882 = vpop.f32.mrb[0].mxu0
      %1883 = vmatprep.mubr.f32.mxu0 0.0
      %1884 = vmatmul.mubr.f32.gmra.mrb[0].mxu0 %v1739
      %v1885 = vpop.f32.mrb[0].mxu0
      %v1886 = vadd.f32 0.0, %v1885
      %v1887 = vpop.f32.mrb[0].mxu0
      %1888 = vdwg.mxu0
      %v1889 = vadd.f32 %v1715, %v1811
      %v1890 = vadd.f32 %v1716, %v1816
      %v1891 = vadd.f32 %v1717, %v1821
      %v1892 = vadd.f32 %v1718, %v1826
      %v1893 = vadd.f32 %v1719, %v1831
      %v1894 = vadd.f32 %v1720, %v1836
      %v1895 = vadd.f32 %v1721, %v1841
      %v1896 = vadd.f32 %v1722, %v1846
      %v1897 = vadd.f32 %v1723, %v1851
      %v1898 = vadd.f32 %v1724, %v1856
      %v1899 = vadd.f32 %v1725, %v1861
      %v1900 = vadd.f32 %v1726, %v1866
      %v1901 = vadd.f32 %v1727, %v1871
      %v1902 = vadd.f32 %v1728, %v1876
      %v1903 = vadd.f32 %v1729, %v1881
      %v1904 = vadd.f32 %v1730, %v1886
      %v1905 = vrot.slane %v368, 2
      %v1906 = vrot.slane %v369, 2
      %v1907 = vsel %vm807, %v1905, %v1906
      %v1908 = vrot.slane %v370, 2
      %v1909 = vsel %vm807, %v1906, %v1908
      %v1910 = vsel %vm445, %v1907, 0
      %v1912 = vsel %vm445, %v1909, 0
      %v1915 = vsel %vm478, %v379, 0
      %1917 = vmatprep.subr.mxu0 0.0
      %1918 = vmatpush1.msra.mxu0 %v1915
      %1919 = vmatprep.subr.mxu0 0.0
      %1920 = vmatpush1.msra.mxu0 0.0
      %1921 = vmatprep.subr.mxu0 0.0
      %1922 = vmatpush1.msra.mxu0 0.0
      %1923 = vmatprep.subr.mxu0 0.0
      %1924 = vmatpush1.msra.mxu0 0.0
      %1925 = vmatprep.subr.mxu0 0.0
      %1926 = vmatpush1.msra.mxu0 0.0
      %1927 = vmatprep.subr.mxu0 0.0
      %1928 = vmatpush1.msra.mxu0 0.0
      %1929 = vmatprep.subr.mxu0 0.0
      %1930 = vmatpush1.msra.mxu0 0.0
      %1931 = vmatprep.subr.mxu0 0.0
      %1932 = vmatpush1.msra.mxu0 0.0
      %1933 = vmatprep.subr.mxu0 0.0
      %1934 = vmatpush1.msra.mxu0 0.0
      %1935 = vmatprep.subr.mxu0 0.0
      %1936 = vmatpush1.msra.mxu0 0.0
      %1937 = vmatprep.subr.mxu0 0.0
      %1938 = vmatpush1.msra.mxu0 0.0
      %1939 = vmatprep.subr.mxu0 0.0
      %1940 = vmatpush1.msra.mxu0 0.0
      %1941 = vmatprep.subr.mxu0 0.0
      %1942 = vmatpush1.msra.mxu0 0.0
      %1943 = vmatprep.subr.mxu0 0.0
      %1944 = vmatpush1.msra.mxu0 0.0
      %1945 = vmatprep.subr.mxu0 0.0
      %1946 = vmatpush1.msra.mxu0 0.0
      %1947 = vmatprep.subr.mxu0 0.0
      %1948 = vmatpush1.msra.mxu0 0.0
      %1949 = vmatprep.subr.mxu0 0.0
      %1950 = vmatpush1.msra.mxu0 0.0
      %1951 = vmatprep.subr.mxu0 0.0
      %1952 = vmatpush1.msra.mxu0 0.0
      %1953 = vmatprep.subr.mxu0 0.0
      %1954 = vmatpush1.msra.mxu0 0.0
      %1955 = vmatprep.subr.mxu0 0.0
      %1956 = vmatpush1.msra.mxu0 0.0
      %1957 = vmatprep.subr.mxu0 0.0
      %1958 = vmatpush1.msra.mxu0 0.0
      %1959 = vmatprep.subr.mxu0 0.0
      %1960 = vmatpush1.msra.mxu0 0.0
      %1961 = vmatprep.subr.mxu0 0.0
      %1962 = vmatpush1.msra.mxu0 0.0
      %1963 = vmatprep.subr.mxu0 0.0
      %1964 = vmatpush1.msra.mxu0 0.0
      %1965 = vmatprep.subr.mxu0 0.0
      %1966 = vmatpush1.msra.mxu0 0.0
      %1967 = vmatprep.subr.mxu0 0.0
      %1968 = vmatpush1.msra.mxu0 0.0
      %1969 = vmatprep.subr.mxu0 0.0
      %1970 = vmatpush1.msra.mxu0 0.0
      %1971 = vmatprep.subr.mxu0 0.0
      %1972 = vmatpush1.msra.mxu0 0.0
      %1973 = vmatprep.subr.mxu0 0.0
      %1974 = vmatpush1.msra.mxu0 0.0
      %1975 = vmatprep.subr.mxu0 0.0
      %1976 = vmatpush1.msra.mxu0 0.0
      %1977 = vmatprep.subr.mxu0 0.0
      %1978 = vmatpush1.msra.mxu0 0.0
      %1979 = vmatprep.subr.mxu0 0.0
      %1980 = vmatpush1.msra.mxu0 0.0
      %1981 = vmatprep.mubr.f32.mxu0 0.0
      %1982 = vmatmul.mubr.f32.gmra.mrb[0].mxu0 %v856
      %v1983 = vpop.f32.mrb[0].mxu0
      %v1984 = vadd.f32 0.0, %v1983
      %v1985 = vpop.f32.mrb[0].mxu0
      %1986 = vmatprep.mubr.f32.mxu0 0.0
      %1987 = vmatmul.mubr.f32.gmra.mrb[0].mxu0 %v858
      %v1988 = vpop.f32.mrb[0].mxu0
      %v1989 = vadd.f32 0.0, %v1988
      %v1990 = vpop.f32.mrb[0].mxu0
      %1991 = vmatprep.mubr.f32.mxu0 0.0
      %1992 = vmatmul.mubr.f32.gmra.mrb[0].mxu0 %v860
      %v1993 = vpop.f32.mrb[0].mxu0
      %v1994 = vadd.f32 0.0, %v1993
      %v1995 = vpop.f32.mrb[0].mxu0
      %1996 = vmatprep.mubr.f32.mxu0 0.0
      %1997 = vmatmul.mubr.f32.gmra.mrb[0].mxu0 %v862
      %v1998 = vpop.f32.mrb[0].mxu0
      %v1999 = vadd.f32 0.0, %v1998
      %v2000 = vpop.f32.mrb[0].mxu0
      %2001 = vmatprep.mubr.f32.mxu0 0.0
      %2002 = vmatmul.mubr.f32.gmra.mrb[0].mxu0 %v864
      %v2003 = vpop.f32.mrb[0].mxu0
      %v2004 = vadd.f32 0.0, %v2003
      %v2005 = vpop.f32.mrb[0].mxu0
      %2006 = vmatprep.mubr.f32.mxu0 0.0
      %2007 = vmatmul.mubr.f32.gmra.mrb[0].mxu0 %v866
      %v2008 = vpop.f32.mrb[0].mxu0
      %v2009 = vadd.f32 0.0, %v2008
      %v2010 = vpop.f32.mrb[0].mxu0
      %2011 = vmatprep.mubr.f32.mxu0 0.0
      %2012 = vmatmul.mubr.f32.gmra.mrb[0].mxu0 %v868
      %v2013 = vpop.f32.mrb[0].mxu0
      %v2014 = vadd.f32 0.0, %v2013
      %v2015 = vpop.f32.mrb[0].mxu0
      %2016 = vmatprep.mubr.f32.mxu0 0.0
      %2017 = vmatmul.mubr.f32.gmra.mrb[0].mxu0 %v870
      %v2018 = vpop.f32.mrb[0].mxu0
      %v2019 = vadd.f32 0.0, %v2018
      %v2020 = vpop.f32.mrb[0].mxu0
      %2021 = vmatprep.mubr.f32.mxu0 0.0
      %2022 = vmatmul.mubr.f32.gmra.mrb[0].mxu0 %v872
      %v2023 = vpop.f32.mrb[0].mxu0
      %v2024 = vadd.f32 0.0, %v2023
      %v2025 = vpop.f32.mrb[0].mxu0
      %2026 = vmatprep.mubr.f32.mxu0 0.0
      %2027 = vmatmul.mubr.f32.gmra.mrb[0].mxu0 %v874
      %v2028 = vpop.f32.mrb[0].mxu0
      %v2029 = vadd.f32 0.0, %v2028
      %v2030 = vpop.f32.mrb[0].mxu0
      %2031 = vmatprep.mubr.f32.mxu0 0.0
      %2032 = vmatmul.mubr.f32.gmra.mrb[0].mxu0 %v876
      %v2033 = vpop.f32.mrb[0].mxu0
      %v2034 = vadd.f32 0.0, %v2033
      %v2035 = vpop.f32.mrb[0].mxu0
      %2036 = vmatprep.mubr.f32.mxu0 0.0
      %2037 = vmatmul.mubr.f32.gmra.mrb[0].mxu0 %v878
      %v2038 = vpop.f32.mrb[0].mxu0
      %v2039 = vadd.f32 0.0, %v2038
      %v2040 = vpop.f32.mrb[0].mxu0
      %2041 = vmatprep.mubr.f32.mxu0 0.0
      %2042 = vmatmul.mubr.f32.gmra.mrb[0].mxu0 %v1393
      %v2043 = vpop.f32.mrb[0].mxu0
      %v2044 = vadd.f32 0.0, %v2043
      %v2045 = vpop.f32.mrb[0].mxu0
      %2046 = vmatprep.mubr.f32.mxu0 0.0
      %2047 = vmatmul.mubr.f32.gmra.mrb[0].mxu0 %v1395
      %v2048 = vpop.f32.mrb[0].mxu0
      %v2049 = vadd.f32 0.0, %v2048
      %v2050 = vpop.f32.mrb[0].mxu0
      %2051 = vmatprep.mubr.f32.mxu0 0.0
      %2052 = vmatmul.mubr.f32.gmra.mrb[0].mxu0 %v1910
      %v2053 = vpop.f32.mrb[0].mxu0
      %v2054 = vadd.f32 0.0, %v2053
      %v2055 = vpop.f32.mrb[0].mxu0
      %2056 = vmatprep.mubr.f32.mxu0 0.0
      %2057 = vmatmul.mubr.f32.gmra.mrb[0].mxu0 %v1912
      %v2058 = vpop.f32.mrb[0].mxu0
      %v2059 = vadd.f32 0.0, %v2058
      %v2060 = vpop.f32.mrb[0].mxu0
      %2061 = vdwg.mxu0
      %v2062 = vadd.f32 %v1889, %v1984
      %v2063 = vadd.f32 %v1890, %v1989
      %v2064 = vadd.f32 %v1891, %v1994
      %v2065 = vadd.f32 %v1892, %v1999
      %v2066 = vadd.f32 %v1893, %v2004
      %v2067 = vadd.f32 %v1894, %v2009
      %v2068 = vadd.f32 %v1895, %v2014
      %v2069 = vadd.f32 %v1896, %v2019
      %v2070 = vadd.f32 %v1897, %v2024
      %v2071 = vadd.f32 %v1898, %v2029
      %v2072 = vadd.f32 %v1899, %v2034
      %v2073 = vadd.f32 %v1900, %v2039
      %v2074 = vadd.f32 %v1901, %v2044
      %v2075 = vadd.f32 %v1902, %v2049
      %v2076 = vadd.f32 %v1903, %v2054
      %v2077 = vadd.f32 %v1904, %v2059
      %2078 = vmatprep.subr.mxu0 0.0
      %2079 = vmatpush1.msra.mxu0 %v2062
      %2080 = vmatprep.subr.mxu0 0.0
      %2081 = vmatpush1.msra.mxu0 %v2063
      %2082 = vmatprep.subr.mxu0 0.0
      %2083 = vmatpush1.msra.mxu0 %v2064
      %2084 = vmatprep.subr.mxu0 0.0
      %2085 = vmatpush1.msra.mxu0 %v2065
      %2086 = vmatprep.subr.mxu0 0.0
      %2087 = vmatpush1.msra.mxu0 %v2066
      %2088 = vmatprep.subr.mxu0 0.0
      %2089 = vmatpush1.msra.mxu0 %v2067
      %2090 = vmatprep.subr.mxu0 0.0
      %2091 = vmatpush1.msra.mxu0 %v2068
      %2092 = vmatprep.subr.mxu0 0.0
      %2093 = vmatpush1.msra.mxu0 %v2069
      %2094 = vmatprep.subr.mxu0 0.0
      %2095 = vmatpush1.msra.mxu0 %v2070
      %2096 = vmatprep.subr.mxu0 0.0
      %2097 = vmatpush1.msra.mxu0 %v2071
      %2098 = vmatprep.subr.mxu0 0.0
      %2099 = vmatpush1.msra.mxu0 %v2072
      %2100 = vmatprep.subr.mxu0 0.0
      %2101 = vmatpush1.msra.mxu0 %v2073
      %2102 = vmatprep.subr.mxu0 0.0
      %2103 = vmatpush1.msra.mxu0 %v2074
      %2104 = vmatprep.subr.mxu0 0.0
      %2105 = vmatpush1.msra.mxu0 %v2075
      %2106 = vmatprep.subr.mxu0 0.0
      %2107 = vmatpush1.msra.mxu0 %v2076
      %2108 = vmatprep.subr.mxu0 0.0
      %2109 = vmatpush1.msra.mxu0 %v2077
      %2110 = vmatprep.subr.mxu0 0.0
      %2111 = vmatpush1.msra.mxu0 0.0
      %2112 = vmatprep.subr.mxu0 0.0
      %2113 = vmatpush1.msra.mxu0 0.0
      %2114 = vmatprep.subr.mxu0 0.0
      %2115 = vmatpush1.msra.mxu0 0.0
      %2116 = vmatprep.subr.mxu0 0.0
      %2117 = vmatpush1.msra.mxu0 0.0
      %2118 = vmatprep.subr.mxu0 0.0
      %2119 = vmatpush1.msra.mxu0 0.0
      %2120 = vmatprep.subr.mxu0 0.0
      %2121 = vmatpush1.msra.mxu0 0.0
      %2122 = vmatprep.subr.mxu0 0.0
      %2123 = vmatpush1.msra.mxu0 0.0
      %2124 = vmatprep.subr.mxu0 0.0
      %2125 = vmatpush1.msra.mxu0 0.0
      %2126 = vmatprep.subr.mxu0 0.0
      %2127 = vmatpush1.msra.mxu0 0.0
      %2128 = vmatprep.subr.mxu0 0.0
      %2129 = vmatpush1.msra.mxu0 0.0
      %2130 = vmatprep.subr.mxu0 0.0
      %2131 = vmatpush1.msra.mxu0 0.0
      %2132 = vmatprep.subr.mxu0 0.0
      %2133 = vmatpush1.msra.mxu0 0.0
      %2134 = vmatprep.subr.mxu0 0.0
      %2135 = vmatpush1.msra.mxu0 0.0
      %2136 = vmatprep.subr.mxu0 0.0
      %2137 = vmatpush1.msra.mxu0 0.0
      %2138 = vmatprep.subr.mxu0 0.0
      %2139 = vmatpush1.msra.mxu0 0.0
      %2140 = vmatprep.subr.mxu0 0.0
      %2141 = vmatpush1.msra.mxu0 0.0
      %2142 = vmatprep.mubr.f32.mxu0 0.0
      %2143 = vmatmul.mubr.f32.gmra.mrb[0].mxu0 1.0
      %v2144 = vpop.f32.mrb[0].mxu0
      %v2145 = vadd.f32 0.0, %v2144
      %v2146 = vpop.f32.mrb[0].mxu0
      %2147 = vdwg.mxu0
      %v2148 = vmul.f32 %v2062, %v2062
      %v2149 = vmul.f32 %v2063, %v2063
      %v2150 = vmul.f32 %v2064, %v2064
      %v2151 = vmul.f32 %v2065, %v2065
      %v2152 = vmul.f32 %v2066, %v2066
      %v2153 = vmul.f32 %v2067, %v2067
      %v2154 = vmul.f32 %v2068, %v2068
      %v2155 = vmul.f32 %v2069, %v2069
      %v2156 = vmul.f32 %v2070, %v2070
      %v2157 = vmul.f32 %v2071, %v2071
      %v2158 = vmul.f32 %v2072, %v2072
      %v2159 = vmul.f32 %v2073, %v2073
      %v2160 = vmul.f32 %v2074, %v2074
      %v2161 = vmul.f32 %v2075, %v2075
      %v2162 = vmul.f32 %v2076, %v2076
      %v2163 = vmul.f32 %v2077, %v2077
      %2164 = vmatprep.subr.mxu0 0.0
      %2165 = vmatpush1.msra.mxu0 %v2148
      %2166 = vmatprep.subr.mxu0 0.0
      %2167 = vmatpush1.msra.mxu0 %v2149
      %2168 = vmatprep.subr.mxu0 0.0
      %2169 = vmatpush1.msra.mxu0 %v2150
      %2170 = vmatprep.subr.mxu0 0.0
      %2171 = vmatpush1.msra.mxu0 %v2151
      %2172 = vmatprep.subr.mxu0 0.0
      %2173 = vmatpush1.msra.mxu0 %v2152
      %2174 = vmatprep.subr.mxu0 0.0
      %2175 = vmatpush1.msra.mxu0 %v2153
      %2176 = vmatprep.subr.mxu0 0.0
      %2177 = vmatpush1.msra.mxu0 %v2154
      %2178 = vmatprep.subr.mxu0 0.0
      %2179 = vmatpush1.msra.mxu0 %v2155
      %2180 = vmatprep.subr.mxu0 0.0
      %2181 = vmatpush1.msra.mxu0 %v2156
      %2182 = vmatprep.subr.mxu0 0.0
      %2183 = vmatpush1.msra.mxu0 %v2157
      %2184 = vmatprep.subr.mxu0 0.0
      %2185 = vmatpush1.msra.mxu0 %v2158
      %2186 = vmatprep.subr.mxu0 0.0
      %2187 = vmatpush1.msra.mxu0 %v2159
      %2188 = vmatprep.subr.mxu0 0.0
      %2189 = vmatpush1.msra.mxu0 %v2160
      %2190 = vmatprep.subr.mxu0 0.0
      %2191 = vmatpush1.msra.mxu0 %v2161
      %2192 = vmatprep.subr.mxu0 0.0
      %2193 = vmatpush1.msra.mxu0 %v2162
      %2194 = vmatprep.subr.mxu0 0.0
      %2195 = vmatpush1.msra.mxu0 %v2163
      %2196 = vmatprep.subr.mxu0 0.0
      %2197 = vmatpush1.msra.mxu0 0.0
      %2198 = vmatprep.subr.mxu0 0.0
      %2199 = vmatpush1.msra.mxu0 0.0
      %2200 = vmatprep.subr.mxu0 0.0
      %2201 = vmatpush1.msra.mxu0 0.0
      %2202 = vmatprep.subr.mxu0 0.0
      %2203 = vmatpush1.msra.mxu0 0.0
      %2204 = vmatprep.subr.mxu0 0.0
      %2205 = vmatpush1.msra.mxu0 0.0
      %2206 = vmatprep.subr.mxu0 0.0
      %2207 = vmatpush1.msra.mxu0 0.0
      %2208 = vmatprep.subr.mxu0 0.0
      %2209 = vmatpush1.msra.mxu0 0.0
      %2210 = vmatprep.subr.mxu0 0.0
      %2211 = vmatpush1.msra.mxu0 0.0
      %2212 = vmatprep.subr.mxu0 0.0
      %2213 = vmatpush1.msra.mxu0 0.0
      %2214 = vmatprep.subr.mxu0 0.0
      %2215 = vmatpush1.msra.mxu0 0.0
      %2216 = vmatprep.subr.mxu0 0.0
      %2217 = vmatpush1.msra.mxu0 0.0
      %2218 = vmatprep.subr.mxu0 0.0
      %2219 = vmatpush1.msra.mxu0 0.0
      %2220 = vmatprep.subr.mxu0 0.0
      %2221 = vmatpush1.msra.mxu0 0.0
      %2222 = vmatprep.subr.mxu0 0.0
      %2223 = vmatpush1.msra.mxu0 0.0
      %2224 = vmatprep.subr.mxu0 0.0
      %2225 = vmatpush1.msra.mxu0 0.0
      %2226 = vmatprep.subr.mxu0 0.0
      %2227 = vmatpush1.msra.mxu0 0.0
      %2228 = vmatprep.mubr.f32.mxu0 0.0
      %2229 = vmatmul.mubr.f32.gmra.mrb[0].mxu0 1.0
      %v2230 = vpop.f32.mrb[0].mxu0
      %v2231 = vadd.f32 0.0, %v2230
      %v2232 = vpop.f32.mrb[0].mxu0
      %2233 = vdwg.mxu0
      %v2235 = vrot.slane %v2231, 7
      %vm2237 = vcmask 1040384
      %v2238 = vsel %vm2237, %v2145, %v2235
      %vm2239 = vcmask 58368
      %2240 = vst.msk [vmem:[%s340] sm:$0x3] %vm2239, %v2238
      %vm2241 = vcmask 64512
      %2242 = vst.msk [vmem:[%s331] sm:$0xff] %vm2241, %v2062
      %2243 = vst.msk [vmem:[%s331 + $0x8] sm:$0xff] %vm2241, %v2063
      %2244 = vst.msk [vmem:[%s331 + $0x10] sm:$0xff] %vm2241, %v2064
      %2245 = vst.msk [vmem:[%s331 + $0x18] sm:$0xff] %vm2241, %v2065
      %2246 = vst.msk [vmem:[%s331 + $0x20] sm:$0xff] %vm2241, %v2066
      %2247 = vst.msk [vmem:[%s331 + $0x28] sm:$0xff] %vm2241, %v2067
      %2248 = vst.msk [vmem:[%s331 + $0x30] sm:$0xff] %vm2241, %v2068
      %2249 = vst.msk [vmem:[%s331 + $0x38] sm:$0xff] %vm2241, %v2069
      %2250 = vst.msk [vmem:[%s331 + $0x40] sm:$0xff] %vm2241, %v2070
      %2251 = vst.msk [vmem:[%s331 + $0x48] sm:$0xff] %vm2241, %v2071
      %2252 = vst.msk [vmem:[%s331 + $0x50] sm:$0xff] %vm2241, %v2072
      %2253 = vst.msk [vmem:[%s331 + $0x58] sm:$0xff] %vm2241, %v2073
      %2254 = vst.msk [vmem:[%s331 + $0x60] sm:$0xff] %vm2241, %v2074
      %2255 = vst.msk [vmem:[%s331 + $0x68] sm:$0xff] %vm2241, %v2075
      %2256 = vst.msk [vmem:[%s331 + $0x70] sm:$0xff] %vm2241, %v2076
      %2257 = vst.msk [vmem:[%s331 + $0x78] sm:$0xff] %vm2241, %v2077
      %s2258 = smul.u32 8, %s21
      %p2259 = scmp.lt.s32.totalorder %s20, 1
      %s2260 = scalar_select %p2259, %s20, 1
      %p2261 = scmp.lt.s32.totalorder %s2258, 15
      %s2262 = scalar_select %p2261, %s2258, 15
      %s2263 = smul.addr %s2262, 2
      %s2264 = smul.addr %s2260, 32
      %s2265 = sadd.s32 %s2263, %s2264
      %s2266 = smul.addr %s2265, 8
      %s2267 = scalar_lea.vmem %s3, %s2266
      %p2268 = scmp.lt.s32.totalorder %s20, 1
      %s2269 = scalar_select %p2268, %s20, 1
      %p2270 = scmp.lt.s32.totalorder %s21, 1
      %s2271 = scalar_select %p2270, %s21, 1
      %s2272 = smul.addr %s2269, 2
      %s2273 = sadd.s32 %s2271, %s2272
      %s2274 = smul.addr %s2273, 2
      %s2275 = scalar_lea.vmem %s4, %s2274
      // Predicated region
      $region33: #{residual_layer_forward.3} parent=31 // pred_check
        %p2276 = pneg %p129
      $region34: #{residual_layer_forward.3} parent=31 // pred_check_branch
        %2278 = sbr.rel (%p2276) target = $region36
      $region35: #{residual_layer_forward.3} parent=31 // pred_region
        %s2279 = smul.u32 8, %s21
      $region36: #{residual_layer_forward.3} parent=31 // pred_fallthru
        _
      // Predicated region
      $region37: #{residual_layer_forward.3} parent=31 // pred_check
        %p2280 = pneg %p157
      $region38: #{residual_layer_forward.3} parent=31 // pred_check_branch
        %2282 = sbr.rel (%p2280) target = $region40
      $region39: #{residual_layer_forward.3} parent=31 // pred_region
        _
      $region40: #{residual_layer_forward.3} parent=31 // pred_fallthru
        _
    $region32: #{residual_layer_forward.3} parent=5 // pred_fallthru
      _
    %p2283 = scmp.le.s32.totalorder 2, %s11
    // Predicated region
    $region41: #{residual_layer_forward.3} parent=5 // pred_check
      %p2284 = pneg %p2283
    $region42: #{residual_layer_forward.3} parent=5 // pred_check_branch
      %2286 = sbr.rel (%p2284) target = $region44
    $region43: #{residual_layer_forward.3} parent=5 // pred_region
      %s2287 = ssub.s32 %s11, 2
      // Predicated region
      $region45: #{residual_layer_forward.3} parent=43 // pred_check
        %p2288 = pneg %p135
      $region46: #{residual_layer_forward.3} parent=43 // pred_check_branch
        %2290 = sbr.rel (%p2288) target = $region48
      $region47: #{residual_layer_forward.3} parent=43 // pred_region
        %s2291 = smul.u32 8, %s23
        %p2292 = scmp.lt.s32.totalorder %s22, 1
        %s2293 = scalar_select %p2292, %s22, 1
        %p2294 = scmp.lt.s32.totalorder %s2291, 15
        %s2295 = scalar_select %p2294, %s2291, 15
        %s2296 = smul.addr %s2295, 2
        %s2297 = smul.addr %s2293, 32
        %s2298 = sadd.s32 %s2296, %s2297
        %s2299 = smul.addr %s2298, 8
        %s2300 = scalar_lea.vmem %s3, %s2299
      $region48: #{residual_layer_forward.3} parent=43 // pred_fallthru
        _
      // Predicated region
      $region49: #{residual_layer_forward.3} parent=43 // pred_check
        %p2301 = pneg %p163
      $region50: #{residual_layer_forward.3} parent=43 // pred_check_branch
        %2303 = sbr.rel (%p2301) target = $region52
      $region51: #{residual_layer_forward.3} parent=43 // pred_region
        %p2304 = scmp.lt.s32.totalorder %s22, 1
        %s2305 = scalar_select %p2304, %s22, 1
        %p2306 = scmp.lt.s32.totalorder %s23, 1
        %s2307 = scalar_select %p2306, %s23, 1
        %s2308 = smul.addr %s2305, 2
        %s2309 = sadd.s32 %s2307, %s2308
        %s2310 = smul.addr %s2309, 2
        %s2311 = scalar_lea.vmem %s4, %s2310
      $region52: #{residual_layer_forward.3} parent=43 // pred_fallthru
        _
    $region44: #{residual_layer_forward.3} parent=5 // pred_fallthru
      _
  $region6: #{residual_layer_forward.3} parent=0 // loop_footer
    %s15 = sadd.s32 1, %s11
  $region7: #{residual_layer_forward.3} parent=0 // loop_footer_branch
    %10 = sbr.rel target = $region3
  $region8: #{residual_layer_forward.3} parent=0 // loop_exit
    _

// kernel: residual_layer_forward.4
$region0: #{residual_layer_forward.4}
  #allocation0 [shape = 'u32[]', space=smem, size = 0x4, offset = 0x4, fixed_abs, tag = 'smem constant byte address 0x4 - core index']
  #allocation1 [shape = 'u32[144,128]{1,0:T(1,128)}', space=vmem, size = 0x12000, scoped, tag = 'internal scratch']
  %s0 = inlined_call_operand.vmem [shape: f32[1,8], index: 0, kind: input, shape index: {}]
  %s1 = inlined_call_operand.vmem [shape: f32[1,8], index: 1, kind: input, shape index: {}]
  %s2 = inlined_call_operand.vmem [shape: f32[2,18,18,8], index: 2, kind: input, shape index: {}, may-alias: {2,3}]
  %s3 = inlined_call_operand.vmem [shape: f32[2,18,18,8], index: 3, kind: input, shape index: {}, may-alias: {2,3}]
  %s4 = inlined_call_operand.vmem [shape: f32[2,16,16,4], index: 4, kind: input, shape index: {}]
  %s5 = inlined_call_operand.vmem [shape: f32[3,3,8,4], index: 5, kind: input, shape index: {}]
  %s6 = inlined_call_operand.vmem [shape: f32[2,16,16,4], index: 6, kind: output, shape index: {0}]
  %s7 = inlined_call_operand.vmem [shape: f32[2,2,2,4], index: 7, kind: output, shape index: {1}]
  %8 = xla_tuple %s6, %s7
  %s9 = sld [smem:[#allocation0]]
  $region65: #{residual_layer_forward.4} parent=0
    _
  %s11 = ssub.s32 1, %s9
  %s12 = scalar_select 0, %s11, %s9
  loop: start=0, step=1, limit=6
  $region2: #{residual_layer_forward.4} parent=0 // loop_pre_header
    _
  $region3: #{residual_layer_forward.4} parent=0 // loop_header
    %s14 = sphi 0, %s18
    %p15 = scmp.ge.s32.totalorder %s14, 6
    %s21 = sphi 0, %s33
    %s22 = sphi 0, %s29
    %s23 = sphi 0, %s21
    %s24 = sphi 0, %s22
    %s25 = sphi 0, %s23
    %s26 = sphi 0, %s24
    %s34 = sphi 0, %s34
    %s36 = sphi 0, %s34
    %s37 = sphi 0, %s36
    %s51 = sphi 0, %s37
    %s55 = sphi 0, %s55
    %s57 = sphi 0, %s55
    %s58 = sphi 0, %s57
    %s72 = sphi 0, %s58
    %s80 = sphi 0, %s82
    %s83 = sphi 0, %s80
    %s84 = sphi 0, %s83
    %s100 = sphi 0, %s84
    %s112 = sphi 0, %s114
    %s115 = sphi 0, %s112
    %s116 = sphi 0, %s115
    %s132 = sphi 0, %s116
    %s140 = sphi 0, %s142
    %s143 = sphi 0, %s140
    %s144 = sphi 0, %s143
    %s160 = sphi 0, %s144
    %s164 = sphi 0, %s164
    %s166 = sphi 0, %s164
    %s167 = sphi 0, %s166
    %s181 = sphi 0, %s167
    %s189 = sphi 0, %s191
    %s192 = sphi 0, %s189
    %s193 = sphi 0, %s192
    %s209 = sphi 0, %s193
    %s217 = sphi 0, %s219
    %s220 = sphi 0, %s217
    %s221 = sphi 0, %s220
    %s237 = sphi 0, %s221
  $region4: #{residual_layer_forward.4} parent=0 // loop_header_branch
    %17 = sbr.rel (%p15) target = $region8
  $region5: #{residual_layer_forward.4} parent=0 // loop_body
    %s19 = ssub.s32 %s14, 1
    %s20 = ssub.s32 %s14, 2
    %s27 = sadd.s32 1, %s22
    %p28 = scmp.ge.s32.totalorder %s27, 2
    %s29 = scalar_select %p28, 0, %s27
    %s30 = sadd.s32 1, %s21
    %s31 = scalar_select %p28, %s30, %s21
    %p32 = scmp.ge.s32.totalorder %s31, 2
    %s33 = scalar_select %p32, 0, %s31
    %s35 = sadd.s32 %s34, 1
    %p38 = scmp.eq.s32.totalorder %s14, 3
    %p39 = scmp.ne.s32.totalorder %s34, %s36
    %p40 = scmp.eq.s32.totalorder %s14, 0
    %p41 = por %p39, %p40
    %p42 = scmp.ne.s32.totalorder %s34, %s36
    %p43 = scmp.eq.s32.totalorder %s19, 3
    %p44 = por %p42, %p43
    %p45 = scmp.ne.s32.totalorder %s36, %s37
    %p46 = scmp.eq.s32.totalorder %s19, 0
    %p47 = por %p45, %p46
    %p48 = scmp.ne.s32.totalorder %s36, %s37
    %p49 = scmp.eq.s32.totalorder %s20, 3
    %p50 = por %p48, %p49
    %p52 = scmp.ne.s32.totalorder %s37, %s51
    %p53 = scmp.eq.s32.totalorder %s20, 0
    %p54 = por %p52, %p53
    %s56 = sadd.s32 %s55, 1
    %p59 = scmp.eq.s32.totalorder %s14, 3
    %p60 = scmp.ne.s32.totalorder %s55, %s57
    %p61 = scmp.eq.s32.totalorder %s14, 0
    %p62 = por %p60, %p61
    %p63 = scmp.ne.s32.totalorder %s55, %s57
    %p64 = scmp.eq.s32.totalorder %s19, 3
    %p65 = por %p63, %p64
    %p66 = scmp.ne.s32.totalorder %s57, %s58
    %p67 = scmp.eq.s32.totalorder %s19, 0
    %p68 = por %p66, %p67
    %p69 = scmp.ne.s32.totalorder %s57, %s58
    %p70 = scmp.eq.s32.totalorder %s20, 3
    %p71 = por %p69, %p70
    %p73 = scmp.ne.s32.totalorder %s58, %s72
    %p74 = scmp.eq.s32.totalorder %s20, 0
    %p75 = por %p73, %p74
    %s76 = ssub.s32 %s21, %s33
    %s77 = ssub.s32 %s22, %s29
    %s78 = sor.u32 %s76, %s77
    %p79 = scmp.eq.s32.totalorder %s78, 0
    %s81 = sadd.s32 %s80, 1
    %s82 = scalar_select %p79, %s80, %s81
    %p85 = pneg %p79
    %p86 = scmp.eq.s32.totalorder %s14, 3
    %p87 = por %p85, %p86
    %p88 = scmp.ne.s32.totalorder %s80, %s83
    %p89 = scmp.eq.s32.totalorder %s14, 0
    %p90 = por %p88, %p89
    %p91 = scmp.ne.s32.totalorder %s80, %s83
    %p92 = scmp.eq.s32.totalorder %s19, 3
    %p93 = por %p91, %p92
    %p94 = scmp.ne.s32.totalorder %s83, %s84
    %p95 = scmp.eq.s32.totalorder %s19, 0
    %p96 = por %p94, %p95
    %p97 = scmp.ne.s32.totalorder %s83, %s84
    %p98 = scmp.eq.s32.totalorder %s20, 3
    %p99 = por %p97, %p98
    %p101 = scmp.ne.s32.totalorder %s84, %s100
    %p102 = scmp.eq.s32.totalorder %s20, 0
    %p103 = por %p101, %p102
    %s104 = sadd.s32 %s22, 1
    %s105 = smul.u32 %s104, 4
    %s106 = sadd.s32 %s29, 1
    %s107 = smul.u32 %s106, 4
    %s108 = ssub.s32 %s21, %s33
    %s109 = ssub.s32 %s105, %s107
    %s110 = sor.u32 %s108, %s109
    %p111 = scmp.eq.s32.totalorder %s110, 0
    %s113 = sadd.s32 %s112, 1
    %s114 = scalar_select %p111, %s112, %s113
    %p117 = pneg %p111
    %p118 = scmp.eq.s32.totalorder %s14, 3
    %p119 = por %p117, %p118
    %p120 = scmp.ne.s32.totalorder %s112, %s115
    %p121 = scmp.eq.s32.totalorder %s14, 0
    %p122 = por %p120, %p121
    %p123 = scmp.ne.s32.totalorder %s112, %s115
    %p124 = scmp.eq.s32.totalorder %s19, 3
    %p125 = por %p123, %p124
    %p126 = scmp.ne.s32.totalorder %s115, %s116
    %p127 = scmp.eq.s32.totalorder %s19, 0
    %p128 = por %p126, %p127
    %p129 = scmp.ne.s32.totalorder %s115, %s116
    %p130 = scmp.eq.s32.totalorder %s20, 3
    %p131 = por %p129, %p130
    %p133 = scmp.ne.s32.totalorder %s116, %s132
    %p134 = scmp.eq.s32.totalorder %s20, 0
    %p135 = por %p133, %p134
    %s136 = ssub.s32 %s21, %s33
    %s137 = ssub.s32 %s22, %s29
    %s138 = sor.u32 %s136, %s137
    %p139 = scmp.eq.s32.totalorder %s138, 0
    %s141 = sadd.s32 %s140, 1
    %s142 = scalar_select %p139, %s140, %s141
    %p145 = pneg %p139
    %p146 = scmp.eq.s32.totalorder %s14, 3
    %p147 = por %p145, %p146
    %p148 = scmp.ne.s32.totalorder %s140, %s143
    %p149 = scmp.eq.s32.totalorder %s14, 0
    %p150 = por %p148, %p149
    %p151 = scmp.ne.s32.totalorder %s140, %s143
    %p152 = scmp.eq.s32.totalorder %s19, 3
    %p153 = por %p151, %p152
    %p154 = scmp.ne.s32.totalorder %s143, %s144
    %p155 = scmp.eq.s32.totalorder %s19, 0
    %p156 = por %p154, %p155
    %p157 = scmp.ne.s32.totalorder %s143, %s144
    %p158 = scmp.eq.s32.totalorder %s20, 3
    %p159 = por %p157, %p158
    %p161 = scmp.ne.s32.totalorder %s144, %s160
    %p162 = scmp.eq.s32.totalorder %s20, 0
    %p163 = por %p161, %p162
    %s165 = sadd.s32 %s164, 1
    %p168 = scmp.eq.s32.totalorder %s14, 3
    %p169 = scmp.ne.s32.totalorder %s164, %s166
    %p170 = scmp.eq.s32.totalorder %s14, 0
    %p171 = por %p169, %p170
    %p172 = scmp.ne.s32.totalorder %s164, %s166
    %p173 = scmp.eq.s32.totalorder %s19, 3
    %p174 = por %p172, %p173
    %p175 = scmp.ne.s32.totalorder %s166, %s167
    %p176 = scmp.eq.s32.totalorder %s19, 0
    %p177 = por %p175, %p176
    %p178 = scmp.ne.s32.totalorder %s166, %s167
    %p179 = scmp.eq.s32.totalorder %s20, 3
    %p180 = por %p178, %p179
    %p182 = scmp.ne.s32.totalorder %s167, %s181
    %p183 = scmp.eq.s32.totalorder %s20, 0
    %p184 = por %p182, %p183
    %s185 = ssub.s32 %s21, %s33
    %s186 = ssub.s32 %s22, %s29
    %s187 = sor.u32 %s185, %s186
    %p188 = scmp.eq.s32.totalorder %s187, 0
    %s190 = sadd.s32 %s189, 1
    %s191 = scalar_select %p188, %s189, %s190
    %p194 = pneg %p188
    %p195 = scmp.eq.s32.totalorder %s14, 3
    %p196 = por %p194, %p195
    %p197 = scmp.ne.s32.totalorder %s189, %s192
    %p198 = scmp.eq.s32.totalorder %s14, 0
    %p199 = por %p197, %p198
    %p200 = scmp.ne.s32.totalorder %s189, %s192
    %p201 = scmp.eq.s32.totalorder %s19, 3
    %p202 = por %p200, %p201
    %p203 = scmp.ne.s32.totalorder %s192, %s193
    %p204 = scmp.eq.s32.totalorder %s19, 0
    %p205 = por %p203, %p204
    %p206 = scmp.ne.s32.totalorder %s192, %s193
    %p207 = scmp.eq.s32.totalorder %s20, 3
    %p208 = por %p206, %p207
    %p210 = scmp.ne.s32.totalorder %s193, %s209
    %p211 = scmp.eq.s32.totalorder %s20, 0
    %p212 = por %p210, %p211
    %s213 = ssub.s32 %s21, %s33
    %s214 = ssub.s32 %s22, %s29
    %s215 = sor.u32 %s213, %s214
    %p216 = scmp.eq.s32.totalorder %s215, 0
    %s218 = sadd.s32 %s217, 1
    %s219 = scalar_select %p216, %s217, %s218
    %p222 = pneg %p216
    %p223 = scmp.eq.s32.totalorder %s14, 3
    %p224 = por %p222, %p223
    %p225 = scmp.ne.s32.totalorder %s217, %s220
    %p226 = scmp.eq.s32.totalorder %s14, 0
    %p227 = por %p225, %p226
    %p228 = scmp.ne.s32.totalorder %s217, %s220
    %p229 = scmp.eq.s32.totalorder %s19, 3
    %p230 = por %p228, %p229
    %p231 = scmp.ne.s32.totalorder %s220, %s221
    %p232 = scmp.eq.s32.totalorder %s19, 0
    %p233 = por %p231, %p232
    %p234 = scmp.ne.s32.totalorder %s220, %s221
    %p235 = scmp.eq.s32.totalorder %s20, 3
    %p236 = por %p234, %p235
    %p238 = scmp.ne.s32.totalorder %s221, %s237
    %p239 = scmp.eq.s32.totalorder %s20, 0
    %p240 = por %p238, %p239
    %p241 = scmp.le.s32.totalorder 1, %s14
    %p242 = scmp.lt.s32.totalorder %s14, 5
    %p243 = pnand %p241, %p242
    %p244 = pneg %p243
    // Predicated region
    $region9: #{residual_layer_forward.4} parent=5 // pred_check
      _
    $region10: #{residual_layer_forward.4} parent=5 // pred_check_branch
      %246 = sbr.rel (%p243) target = $region12
    $region11: #{residual_layer_forward.4} parent=5 // pred_region
      %s247 = ssub.s32 %s14, 1
      // Predicated region
      $region13: #{residual_layer_forward.4} parent=11 // pred_check
        %p248 = pneg %p47
      $region14: #{residual_layer_forward.4} parent=11 // pred_check_branch
        %250 = sbr.rel (%p248) target = $region16
      $region15: #{residual_layer_forward.4} parent=11 // pred_region
        _
      $region16: #{residual_layer_forward.4} parent=11 // pred_fallthru
        _
      // Predicated region
      $region17: #{residual_layer_forward.4} parent=11 // pred_check
        %p251 = pneg %p68
      $region18: #{residual_layer_forward.4} parent=11 // pred_check_branch
        %253 = sbr.rel (%p251) target = $region20
      $region19: #{residual_layer_forward.4} parent=11 // pred_region
        _
      $region20: #{residual_layer_forward.4} parent=11 // pred_fallthru
        _
      // Predicated region
      $region21: #{residual_layer_forward.4} parent=11 // pred_check
        %p254 = pneg %p177
      $region22: #{residual_layer_forward.4} parent=11 // pred_check_branch
        %256 = sbr.rel (%p254) target = $region24
      $region23: #{residual_layer_forward.4} parent=11 // pred_region
        _
      $region24: #{residual_layer_forward.4} parent=11 // pred_fallthru
        _
    $region12: #{residual_layer_forward.4} parent=5 // pred_fallthru
      _
    %p257 = scmp.lt.s32.totalorder %s14, 4
    // Predicated region
    $region25: #{residual_layer_forward.4} parent=5 // pred_check
      %p258 = pneg %p257
    $region26: #{residual_layer_forward.4} parent=5 // pred_check_branch
      %260 = sbr.rel (%p258) target = $region28
    $region27: #{residual_layer_forward.4} parent=5 // pred_region
      // Predicated region
      $region29: #{residual_layer_forward.4} parent=27 // pred_check
        %p261 = pneg %p90
      $region30: #{residual_layer_forward.4} parent=27 // pred_check_branch
        %263 = sbr.rel (%p261) target = $region32
      $region31: #{residual_layer_forward.4} parent=27 // pred_region
        %s264 = smul.u32 8, %s22
        %s265 = ssub.s32 18, %s264
        %p266 = scmp.lt.s32.totalorder %s265, 8
        %s267 = scalar_select %p266, %s265, 8
        %s268 = smul.u32 128, %s267
        %s269 = smul.u32 %s268, 3
        %p270 = scmp.lt.s32.totalorder %s21, 1
        %s271 = scalar_select %p270, %s21, 1
        %p272 = scmp.lt.s32.totalorder %s264, 17
        %s273 = scalar_select %p272, %s264, 17
        %s274 = smul.addr %s273, 3
        %s275 = smul.addr %s271, 54
        %s276 = sadd.s32 %s274, %s275
        %s277 = smul.addr %s276, 8
        %s278 = scalar_lea.vmem %s2, %s277
        %s279 = smul.u32 8, %s22
        %s280 = ssub.s32 18, %s279
        %p281 = scmp.lt.s32.totalorder %s280, 8
        %s282 = scalar_select %p281, %s280, 8
        %s283 = smul.u32 128, %s282
        %s284 = smul.u32 %s283, 3
      $region32: #{residual_layer_forward.4} parent=27 // pred_fallthru
        _
      // Predicated region
      $region33: #{residual_layer_forward.4} parent=27 // pred_check
        %p285 = pneg %p122
      $region34: #{residual_layer_forward.4} parent=27 // pred_check_branch
        %287 = sbr.rel (%p285) target = $region36
      $region35: #{residual_layer_forward.4} parent=27 // pred_region
        %s288 = sadd.s32 %s22, 1
        %s289 = smul.u32 %s288, 4
        %s290 = smul.u32 2, %s289
        %p291 = scmp.lt.s32.totalorder %s21, 1
        %s292 = scalar_select %p291, %s21, 1
        %p293 = scmp.lt.s32.totalorder %s290, 17
        %s294 = scalar_select %p293, %s290, 17
        %s295 = smul.addr %s294, 3
        %s296 = smul.addr %s292, 54
        %s297 = sadd.s32 %s295, %s296
        %s298 = smul.addr %s297, 8
        %s299 = scalar_lea.vmem %s3, %s298
        %s300 = sadd.s32 %s22, 1
        %s301 = smul.u32 %s300, 4
        %s302 = smul.u32 2, %s301
      $region36: #{residual_layer_forward.4} parent=27 // pred_fallthru
        _
      // Predicated region
      $region37: #{residual_layer_forward.4} parent=27 // pred_check
        %p303 = pneg %p150
      $region38: #{residual_layer_forward.4} parent=27 // pred_check_branch
        %305 = sbr.rel (%p303) target = $region40
      $region39: #{residual_layer_forward.4} parent=27 // pred_region
        %s306 = smul.u32 8, %s22
        %p307 = scmp.lt.s32.totalorder %s21, 1
        %s308 = scalar_select %p307, %s21, 1
        %p309 = scmp.lt.s32.totalorder %s306, 15
        %s310 = scalar_select %p309, %s306, 15
        %s311 = smul.addr %s310, 2
        %s312 = smul.addr %s308, 32
        %s313 = sadd.s32 %s311, %s312
        %s314 = smul.addr %s313, 8
        %s315 = scalar_lea.vmem %s4, %s314
        %s316 = smul.u32 8, %s22
      $region40: #{residual_layer_forward.4} parent=27 // pred_fallthru
        _
    $region28: #{residual_layer_forward.4} parent=5 // pred_fallthru
      _
    %p317 = scmp.le.s32.totalorder 1, %s14
    %p318 = scmp.lt.s32.totalorder %s14, 5
    %p319 = pnand %p317, %p318
    %p320 = pneg %p319
    // Predicated region
    $region41: #{residual_layer_forward.4} parent=5 // pred_check
      _
    $region42: #{residual_layer_forward.4} parent=5 // pred_check_branch
      %322 = sbr.rel (%p319) target = $region44
    $region43: #{residual_layer_forward.4} parent=5 // pred_region
      %s323 = ssub.s32 %s14, 1
      %p324 = pneg %p47
      %p325 = pneg %p44
      %p326 = pneg %p68
      %p327 = pneg %p65
      %s328 = smul.u32 8, %s24
      %s329 = ssub.s32 18, %s328
      %p330 = scmp.lt.s32.totalorder %s329, 8
      %s331 = scalar_select %p330, %s329, 8
      %s332 = smul.u32 128, %s331
      %s333 = smul.u32 %s332, 3
      %p334 = scmp.lt.s32.totalorder %s23, 1
      %s335 = scalar_select %p334, %s23, 1
      %p336 = scmp.lt.s32.totalorder %s328, 17
      %s337 = scalar_select %p336, %s328, 17
      %s338 = smul.addr %s337, 3
      %s339 = smul.addr %s335, 54
      %s340 = sadd.s32 %s338, %s339
      %s341 = smul.addr %s340, 8
      %s342 = scalar_lea.vmem %s2, %s341
      %p343 = pneg %p96
      %p344 = pneg %p93
      %s345 = sadd.s32 %s24, 1
      %s346 = smul.u32 %s345, 4
      %s347 = smul.u32 2, %s346
      %p348 = scmp.lt.s32.totalorder %s23, 1
      %s349 = scalar_select %p348, %s23, 1
      %p350 = scmp.lt.s32.totalorder %s347, 17
      %s351 = scalar_select %p350, %s347, 17
      %s352 = smul.addr %s351, 3
      %s353 = smul.addr %s349, 54
      %s354 = sadd.s32 %s352, %s353
      %s355 = smul.addr %s354, 8
      %s356 = scalar_lea.vmem %s3, %s355
      %p357 = pneg %p128
      %p358 = pneg %p125
      %s359 = smul.u32 8, %s24
      %p360 = scmp.lt.s32.totalorder %s23, 1
      %s361 = scalar_select %p360, %s23, 1
      %p362 = scmp.lt.s32.totalorder %s359, 15
      %s363 = scalar_select %p362, %s359, 15
      %s364 = smul.addr %s363, 2
      %s365 = smul.addr %s361, 32
      %s366 = sadd.s32 %s364, %s365
      %s367 = smul.addr %s366, 8
      %s368 = scalar_lea.vmem %s4, %s367
      %p369 = pneg %p156
      %p370 = pneg %p153
      %p371 = pneg %p177
      %p372 = pneg %p174
      %p373 = pneg %p205
      %p374 = pneg %p202
      %s375 = smul.u32 8, %s24
      %p376 = scmp.lt.s32.totalorder %s23, 1
      %s377 = scalar_select %p376, %s23, 1
      %p378 = scmp.lt.s32.totalorder %s375, 15
      %s379 = scalar_select %p378, %s375, 15
      %s380 = smul.addr %s379, 2
      %s381 = smul.addr %s377, 32
      %s382 = sadd.s32 %s380, %s381
      %s383 = smul.addr %s382, 8
      %s384 = scalar_lea.vmem %s6, %s383
      %p385 = pneg %p233
      %p386 = pneg %p230
      %p387 = scmp.lt.s32.totalorder %s23, 1
      %s388 = scalar_select %p387, %s23, 1
      %p389 = scmp.lt.s32.totalorder %s24, 1
      %s390 = scalar_select %p389, %s24, 1
      %s391 = smul.addr %s388, 2
      %s392 = sadd.s32 %s390, %s391
      %s393 = smul.addr %s392, 2
      %s394 = scalar_lea.vmem %s7, %s393
      %s395 = smul.u32 8, %s24
      %s396 = ssub.s32 18, %s395
      %p397 = scmp.lt.s32.totalorder %s396, 8
      %s398 = scalar_select %p397, %s396, 8
      %s399 = smul.u32 128, %s398
      %s400 = smul.u32 %s399, 3
      %p401 = scmp.lt.s32.totalorder %s23, 1
      %s402 = scalar_select %p401, %s23, 1
      %p403 = scmp.lt.s32.totalorder %s395, 17
      %s404 = scalar_select %p403, %s395, 17
      %s405 = smul.addr %s404, 3
      %s406 = smul.addr %s402, 54
      %s407 = sadd.s32 %s405, %s406
      %s408 = smul.addr %s407, 8
      %s409 = scalar_lea.vmem %s2, %s408
      %s410 = smul.u32 8, %s24
      %s411 = ssub.s32 18, %s410
      %p412 = scmp.lt.s32.totalorder %s411, 8
      %s413 = scalar_select %p412, %s411, 8
      %s414 = smul.u32 128, %s413
      %s415 = smul.u32 %s414, 3
      %s416 = sadd.s32 %s24, 1
      %s417 = smul.u32 %s416, 4
      %s418 = smul.u32 2, %s417
      %p419 = scmp.lt.s32.totalorder %s23, 1
      %s420 = scalar_select %p419, %s23, 1
      %p421 = scmp.lt.s32.totalorder %s418, 17
      %s422 = scalar_select %p421, %s418, 17
      %s423 = smul.addr %s422, 3
      %s424 = smul.addr %s420, 54
      %s425 = sadd.s32 %s423, %s424
      %s426 = smul.addr %s425, 8
      %s427 = scalar_lea.vmem %s3, %s426
      %s428 = sadd.s32 %s24, 1
      %s429 = smul.u32 %s428, 4
      %s430 = smul.u32 2, %s429
      %s431 = smul.u32 8, %s24
      %p432 = scmp.lt.s32.totalorder %s23, 1
      %s433 = scalar_select %p432, %s23, 1
      %p434 = scmp.lt.s32.totalorder %s431, 15
      %s435 = scalar_select %p434, %s431, 15
      %s436 = smul.addr %s435, 2
      %s437 = smul.addr %s433, 32
      %s438 = sadd.s32 %s436, %s437
      %s439 = smul.addr %s438, 8
      %s440 = scalar_lea.vmem %s4, %s439
      %s441 = smul.u32 8, %s24
      %s442 = smul.u32 8, %s24
      %p443 = scmp.lt.s32.totalorder %s23, 1
      %s444 = scalar_select %p443, %s23, 1
      %p445 = scmp.lt.s32.totalorder %s442, 15
      %s446 = scalar_select %p445, %s442, 15
      %s447 = smul.addr %s446, 2
      %s448 = smul.addr %s444, 32
      %s449 = sadd.s32 %s447, %s448
      %s450 = smul.addr %s449, 8
      %s451 = scalar_lea.vmem %s6, %s450
      %s452 = smul.u32 8, %s24
      %p453 = scmp.lt.s32.totalorder %s23, 1
      %s454 = scalar_select %p453, %s23, 1
      %p455 = scmp.lt.s32.totalorder %s24, 1
      %s456 = scalar_select %p455, %s24, 1
      %s457 = smul.addr %s454, 2
      %s458 = sadd.s32 %s456, %s457
      %s459 = smul.addr %s458, 2
      %s460 = scalar_lea.vmem %s7, %s459
      %v461 = vld [vmem:[%s409] sm:$0xff]
      %v462 = vld [vmem:[%s409 + $0x8] sm:$0xff]
      %v463 = vld [vmem:[%s409 + $0x10] sm:$0x3]
      %v464 = vld [vmem:[%s409 + $0x18] sm:$0xff]
      %v465 = vld [vmem:[%s409 + $0x20] sm:$0xff]
      %v466 = vld [vmem:[%s409 + $0x28] sm:$0x3]
      %v467 = vld [vmem:[%s409 + $0x30] sm:$0xff]
      %v468 = vld [vmem:[%s409 + $0x38] sm:$0xff]
      %v469 = vld [vmem:[%s409 + $0x40] sm:$0x3]
      %v470 = vld [vmem:[%s409 + $0x48] sm:$0xff]
      %v471 = vld [vmem:[%s409 + $0x50] sm:$0xff]
      %v472 = vld [vmem:[%s409 + $0x58] sm:$0x3]
      %v473 = vld [vmem:[%s409 + $0x60] sm:$0xff]
      %v474 = vld [vmem:[%s409 + $0x68] sm:$0xff]
      %v475 = vld [vmem:[%s409 + $0x70] sm:$0x3]
      %v476 = vld [vmem:[%s409 + $0x78] sm:$0xff]
      %v477 = vld [vmem:[%s409 + $0x80] sm:$0xff]
      %v478 = vld [vmem:[%s409 + $0x88] sm:$0x3]
      %v479 = vld [vmem:[%s409 + $0x90] sm:$0xff]
      %v480 = vld [vmem:[%s409 + $0x98] sm:$0xff]
      %v481 = vld [vmem:[%s409 + $0xa0] sm:$0x3]
      %v482 = vld [vmem:[%s409 + $0xa8] sm:$0xff]
      %v483 = vld [vmem:[%s409 + $0xb0] sm:$0xff]
      %v484 = vld [vmem:[%s409 + $0xb8] sm:$0x3]
      %v485 = vld [vmem:[%s427] sm:$0xff]
      %v486 = vld [vmem:[%s427 + $0x8] sm:$0xff]
      %v487 = vld [vmem:[%s427 + $0x10] sm:$0x3]
      %v488 = vld [vmem:[%s427 + $0x18] sm:$0xff]
      %v489 = vld [vmem:[%s427 + $0x20] sm:$0xff]
      %v490 = vld [vmem:[%s427 + $0x28] sm:$0x3]
      %v491 = vld [vmem:[%s0] sm:$0x1]
      %v493 = vlaneseq
      %v494 = vshrl.u32 %v493, 7
      %v495 = vsub.s32 0, %v494
      %v496 = vrot.slane %v491, %v495
      %v498 = vmul.f32 %v461, %v496
      %v499 = vmul.f32 %v462, %v496
      %v500 = vmul.f32 %v463, %v496
      %v501 = vmul.f32 %v464, %v496
      %v502 = vmul.f32 %v465, %v496
      %v503 = vmul.f32 %v466, %v496
      %v504 = vmul.f32 %v467, %v496
      %v505 = vmul.f32 %v468, %v496
      %v506 = vmul.f32 %v469, %v496
      %v507 = vmul.f32 %v470, %v496
      %v508 = vmul.f32 %v471, %v496
      %v509 = vmul.f32 %v472, %v496
      %v510 = vmul.f32 %v473, %v496
      %v511 = vmul.f32 %v474, %v496
      %v512 = vmul.f32 %v475, %v496
      %v513 = vmul.f32 %v476, %v496
      %v514 = vmul.f32 %v477, %v496
      %v515 = vmul.f32 %v478, %v496
      %v516 = vmul.f32 %v479, %v496
      %v517 = vmul.f32 %v480, %v496
      %v518 = vmul.f32 %v481, %v496
      %v519 = vmul.f32 %v482, %v496
      %v520 = vmul.f32 %v483, %v496
      %v521 = vmul.f32 %v484, %v496
      %v522 = vmul.f32 %v485, %v496
      %v523 = vmul.f32 %v486, %v496
      %v524 = vmul.f32 %v487, %v496
      %v525 = vmul.f32 %v488, %v496
      %v526 = vmul.f32 %v489, %v496
      %v527 = vmul.f32 %v490, %v496
      %v528 = vld [vmem:[%s1] sm:$0x1]
      %v530 = vlaneseq
      %v531 = vshrl.u32 %v530, 7
      %v532 = vsub.s32 0, %v531
      %v533 = vrot.slane %v528, %v532
      %v535 = vadd.f32 %v498, %v533
      %v536 = vadd.f32 %v499, %v533
      %v537 = vadd.f32 %v500, %v533
      %v538 = vadd.f32 %v501, %v533
      %v539 = vadd.f32 %v502, %v533
      %v540 = vadd.f32 %v503, %v533
      %v541 = vadd.f32 %v504, %v533
      %v542 = vadd.f32 %v505, %v533
      %v543 = vadd.f32 %v506, %v533
      %v544 = vadd.f32 %v507, %v533
      %v545 = vadd.f32 %v508, %v533
      %v546 = vadd.f32 %v509, %v533
      %v547 = vadd.f32 %v510, %v533
      %v548 = vadd.f32 %v511, %v533
      %v549 = vadd.f32 %v512, %v533
      %v550 = vadd.f32 %v513, %v533
      %v551 = vadd.f32 %v514, %v533
      %v552 = vadd.f32 %v515, %v533
      %v553 = vadd.f32 %v516, %v533
      %v554 = vadd.f32 %v517, %v533
      %v555 = vadd.f32 %v518, %v533
      %v556 = vadd.f32 %v519, %v533
      %v557 = vadd.f32 %v520, %v533
      %v558 = vadd.f32 %v521, %v533
      %v559 = vadd.f32 %v522, %v533
      %v560 = vadd.f32 %v523, %v533
      %v561 = vadd.f32 %v524, %v533
      %v562 = vadd.f32 %v525, %v533
      %v563 = vadd.f32 %v526, %v533
      %v564 = vadd.f32 %v527, %v533
      %vm565 = vcmp.ge.f32.partialorder %v535, 0.0
      %vm566 = vcmp.ge.f32.partialorder %v536, 0.0
      %vm567 = vcmp.ge.f32.partialorder %v537, 0.0
      %vm568 = vcmp.ge.f32.partialorder %v538, 0.0
      %vm569 = vcmp.ge.f32.partialorder %v539, 0.0
      %vm570 = vcmp.ge.f32.partialorder %v540, 0.0
      %vm571 = vcmp.ge.f32.partialorder %v541, 0.0
      %vm572 = vcmp.ge.f32.partialorder %v542, 0.0
      %vm573 = vcmp.ge.f32.partialorder %v543, 0.0
      %vm574 = vcmp.ge.f32.partialorder %v544, 0.0
      %vm575 = vcmp.ge.f32.partialorder %v545, 0.0
      %vm576 = vcmp.ge.f32.partialorder %v546, 0.0
      %vm577 = vcmp.ge.f32.partialorder %v547, 0.0
      %vm578 = vcmp.ge.f32.partialorder %v548, 0.0
      %vm579 = vcmp.ge.f32.partialorder %v549, 0.0
      %vm580 = vcmp.ge.f32.partialorder %v550, 0.0
      %vm581 = vcmp.ge.f32.partialorder %v551, 0.0
      %vm582 = vcmp.ge.f32.partialorder %v552, 0.0
      %vm583 = vcmp.ge.f32.partialorder %v553, 0.0
      %vm584 = vcmp.ge.f32.partialorder %v554, 0.0
      %vm585 = vcmp.ge.f32.partialorder %v555, 0.0
      %vm586 = vcmp.ge.f32.partialorder %v556, 0.0
      %vm587 = vcmp.ge.f32.partialorder %v557, 0.0
      %vm588 = vcmp.ge.f32.partialorder %v558, 0.0
      %vm589 = vcmp.ge.f32.partialorder %v559, 0.0
      %vm590 = vcmp.ge.f32.partialorder %v560, 0.0
      %vm591 = vcmp.ge.f32.partialorder %v561, 0.0
      %vm592 = vcmp.ge.f32.partialorder %v562, 0.0
      %vm593 = vcmp.ge.f32.partialorder %v563, 0.0
      %vm594 = vcmp.ge.f32.partialorder %v564, 0.0
      %v595 = vmul.f32 %v535, 0.01
      %v596 = vmul.f32 %v536, 0.01
      %v597 = vmul.f32 %v537, 0.01
      %v598 = vmul.f32 %v538, 0.01
      %v599 = vmul.f32 %v539, 0.01
      %v600 = vmul.f32 %v540, 0.01
      %v601 = vmul.f32 %v541, 0.01
      %v602 = vmul.f32 %v542, 0.01
      %v603 = vmul.f32 %v543, 0.01
      %v604 = vmul.f32 %v544, 0.01
      %v605 = vmul.f32 %v545, 0.01
      %v606 = vmul.f32 %v546, 0.01
      %v607 = vmul.f32 %v547, 0.01
      %v608 = vmul.f32 %v548, 0.01
      %v609 = vmul.f32 %v549, 0.01
      %v610 = vmul.f32 %v550, 0.01
      %v611 = vmul.f32 %v551, 0.01
      %v612 = vmul.f32 %v552, 0.01
      %v613 = vmul.f32 %v553, 0.01
      %v614 = vmul.f32 %v554, 0.01
      %v615 = vmul.f32 %v555, 0.01
      %v616 = vmul.f32 %v556, 0.01
      %v617 = vmul.f32 %v557, 0.01
      %v618 = vmul.f32 %v558, 0.01
      %v619 = vmul.f32 %v559, 0.01
      %v620 = vmul.f32 %v560, 0.01
      %v621 = vmul.f32 %v561, 0.01
      %v622 = vmul.f32 %v562, 0.01
      %v623 = vmul.f32 %v563, 0.01
      %v624 = vmul.f32 %v564, 0.01
      %v625 = vsel %vm565, %v535, %v595
      %v626 = vsel %vm566, %v536, %v596
      %v627 = vsel %vm567, %v537, %v597
      %v628 = vsel %vm568, %v538, %v598
      %v629 = vsel %vm569, %v539, %v599
      %v630 = vsel %vm570, %v540, %v600
      %v631 = vsel %vm571, %v541, %v601
      %v632 = vsel %vm572, %v542, %v602
      %v633 = vsel %vm573, %v543, %v603
      %v634 = vsel %vm574, %v544, %v604
      %v635 = vsel %vm575, %v545, %v605
      %v636 = vsel %vm576, %v546, %v606
      %v637 = vsel %vm577, %v547, %v607
      %v638 = vsel %vm578, %v548, %v608
      %v639 = vsel %vm579, %v549, %v609
      %v640 = vsel %vm580, %v550, %v610
      %v641 = vsel %vm581, %v551, %v611
      %v642 = vsel %vm582, %v552, %v612
      %v643 = vsel %vm583, %v553, %v613
      %v644 = vsel %vm584, %v554, %v614
      %v645 = vsel %vm585, %v555, %v615
      %v646 = vsel %vm586, %v556, %v616
      %v647 = vsel %vm587, %v557, %v617
      %v648 = vsel %vm588, %v558, %v618
      %v649 = vsel %vm589, %v559, %v619
      %v650 = vsel %vm590, %v560, %v620
      %v651 = vsel %vm591, %v561, %v621
      %v652 = vsel %vm592, %v562, %v622
      %v653 = vsel %vm593, %v563, %v623
      %v654 = vsel %vm594, %v564, %v624
      %v655 = vld [vmem:[%s5] sm:$0xff]
      %v656 = vld [vmem:[%s5 + $0x8] sm:$0xff]
      %v657 = vld [vmem:[%s5 + $0x10] sm:$0xff]
      %v658 = vld [vmem:[%s5 + $0x18] sm:$0xff]
      %v659 = vld [vmem:[%s5 + $0x20] sm:$0xff]
      %v660 = vld [vmem:[%s5 + $0x28] sm:$0xff]
      %v661 = vld [vmem:[%s5 + $0x30] sm:$0xff]
      %v662 = vld [vmem:[%s5 + $0x38] sm:$0xff]
      %v663 = vld [vmem:[%s5 + $0x40] sm:$0xff]
      %vm688 = vcmask 1046528
      %v689 = vrot.slane %v625, 1
      %v690 = vrot.slane %v626, 1
      %v691 = vsel %vm688, %v689, %v690
      %v692 = vrot.slane %v627, 1
      %v693 = vsel %vm688, %v690, %v692
      %v694 = vrot.slane %v628, 1
      %v695 = vrot.slane %v629, 1
      %v696 = vsel %vm688, %v694, %v695
      %v697 = vrot.slane %v630, 1
      %v698 = vsel %vm688, %v695, %v697
      %v699 = vrot.slane %v631, 1
      %v700 = vrot.slane %v632, 1
      %v701 = vsel %vm688, %v699, %v700
      %v702 = vrot.slane %v633, 1
      %v703 = vsel %vm688, %v700, %v702
      %v704 = vrot.slane %v634, 1
      %v705 = vrot.slane %v635, 1
      %v706 = vsel %vm688, %v704, %v705
      %v707 = vrot.slane %v636, 1
      %v708 = vsel %vm688, %v705, %v707
      %v709 = vrot.slane %v637, 1
      %v710 = vrot.slane %v638, 1
      %v711 = vsel %vm688, %v709, %v710
      %v712 = vrot.slane %v639, 1
      %v713 = vsel %vm688, %v710, %v712
      %v714 = vrot.slane %v640, 1
      %v715 = vrot.slane %v641, 1
      %v716 = vsel %vm688, %v714, %v715
      %v717 = vrot.slane %v642, 1
      %v718 = vsel %vm688, %v715, %v717
      %v719 = vrot.slane %v643, 1
      %v720 = vrot.slane %v644, 1
      %v721 = vsel %vm688, %v719, %v720
      %v722 = vrot.slane %v645, 1
      %v723 = vsel %vm688, %v720, %v722
      %v724 = vrot.slane %v646, 1
      %v725 = vrot.slane %v647, 1
      %v726 = vsel %vm688, %v724, %v725
      %v727 = vrot.slane %v648, 1
      %v728 = vsel %vm688, %v725, %v727
      %vm729 = vcmask 64512
      %v730 = vsel %vm729, %v691, 0
      %v732 = vsel %vm729, %v693, 0
      %v734 = vsel %vm729, %v696, 0
      %v736 = vsel %vm729, %v698, 0
      %v738 = vsel %vm729, %v701, 0
      %v740 = vsel %vm729, %v703, 0
      %v742 = vsel %vm729, %v706, 0
      %v744 = vsel %vm729, %v708, 0
      %v746 = vsel %vm729, %v711, 0
      %v748 = vsel %vm729, %v713, 0
      %v750 = vsel %vm729, %v716, 0
      %v752 = vsel %vm729, %v718, 0
      %v754 = vsel %vm729, %v721, 0
      %v756 = vsel %vm729, %v723, 0
      %v758 = vsel %vm729, %v726, 0
      %v760 = vsel %vm729, %v728, 0
      %762 = vmatprep.subr.mxu0 0.0
      %763 = vmatpush1.msra.mxu0 %v656
      %764 = vmatprep.subr.mxu0 0.0
      %765 = vmatpush1.msra.mxu0 0.0
      %766 = vmatprep.subr.mxu0 0.0
      %767 = vmatpush1.msra.mxu0 0.0
      %768 = vmatprep.subr.mxu0 0.0
      %769 = vmatpush1.msra.mxu0 0.0
      %770 = vmatprep.subr.mxu0 0.0
      %771 = vmatpush1.msra.mxu0 0.0
      %772 = vmatprep.subr.mxu0 0.0
      %773 = vmatpush1.msra.mxu0 0.0
      %774 = vmatprep.subr.mxu0 0.0
      %775 = vmatpush1.msra.mxu0 0.0
      %776 = vmatprep.subr.mxu0 0.0
      %777 = vmatpush1.msra.mxu0 0.0
      %778 = vmatprep.subr.mxu0 0.0
      %779 = vmatpush1.msra.mxu0 0.0
      %780 = vmatprep.subr.mxu0 0.0
      %781 = vmatpush1.msra.mxu0 0.0
      %782 = vmatprep.subr.mxu0 0.0
      %783 = vmatpush1.msra.mxu0 0.0
      %784 = vmatprep.subr.mxu0 0.0
      %785 = vmatpush1.msra.mxu0 0.0
      %786 = vmatprep.subr.mxu0 0.0
      %787 = vmatpush1.msra.mxu0 0.0
      %788 = vmatprep.subr.mxu0 0.0
      %789 = vmatpush1.msra.mxu0 0.0
      %790 = vmatprep.subr.mxu0 0.0
      %791 = vmatpush1.msra.mxu0 0.0
      %792 = vmatprep.subr.mxu0 0.0
      %793 = vmatpush1.msra.mxu0 0.0
      %794 = vmatprep.subr.mxu0 0.0
      %795 = vmatpush1.msra.mxu0 0.0
      %796 = vmatprep.subr.mxu0 0.0
      %797 = vmatpush1.msra.mxu0 0.0
      %798 = vmatprep.subr.mxu0 0.0
      %799 = vmatpush1.msra.mxu0 0.0
      %800 = vmatprep.subr.mxu0 0.0
      %801 = vmatpush1.msra.mxu0 0.0
      %802 = vmatprep.subr.mxu0 0.0
      %803 = vmatpush1.msra.mxu0 0.0
      %804 = vmatprep.subr.mxu0 0.0
      %805 = vmatpush1.msra.mxu0 0.0
      %806 = vmatprep.subr.mxu0 0.0
      %807 = vmatpush1.msra.mxu0 0.0
      %808 = vmatprep.subr.mxu0 0.0
      %809 = vmatpush1.msra.mxu0 0.0
      %810 = vmatprep.subr.mxu0 0.0
      %811 = vmatpush1.msra.mxu0 0.0
      %812 = vmatprep.subr.mxu0 0.0
      %813 = vmatpush1.msra.mxu0 0.0
      %814 = vmatprep.subr.mxu0 0.0
      %815 = vmatpush1.msra.mxu0 0.0
      %816 = vmatprep.subr.mxu0 0.0
      %817 = vmatpush1.msra.mxu0 0.0
      %818 = vmatprep.subr.mxu0 0.0
      %819 = vmatpush1.msra.mxu0 0.0
      %820 = vmatprep.subr.mxu0 0.0
      %821 = vmatpush1.msra.mxu0 0.0
      %822 = vmatprep.subr.mxu0 0.0
      %823 = vmatpush1.msra.mxu0 0.0
      %824 = vmatprep.subr.mxu0 0.0
      %825 = vmatpush1.msra.mxu0 0.0
      %826 = vmatprep.mubr.f32.mxu0 0.0
      %827 = vmatmul.mubr.f32.gmra.mrb[0].mxu0 %v730
      %v828 = vpop.f32.mrb[0].mxu0
      %v829 = vadd.f32 0.0, %v828
      %v830 = vpop.f32.mrb[0].mxu0
      %831 = vmatprep.mubr.f32.mxu0 0.0
      %832 = vmatmul.mubr.f32.gmra.mrb[0].mxu0 %v732
      %v833 = vpop.f32.mrb[0].mxu0
      %v834 = vadd.f32 0.0, %v833
      %v835 = vpop.f32.mrb[0].mxu0
      %836 = vmatprep.mubr.f32.mxu0 0.0
      %837 = vmatmul.mubr.f32.gmra.mrb[0].mxu0 %v734
      %v838 = vpop.f32.mrb[0].mxu0
      %v839 = vadd.f32 0.0, %v838
      %v840 = vpop.f32.mrb[0].mxu0
      %841 = vmatprep.mubr.f32.mxu0 0.0
      %842 = vmatmul.mubr.f32.gmra.mrb[0].mxu0 %v736
      %v843 = vpop.f32.mrb[0].mxu0
      %v844 = vadd.f32 0.0, %v843
      %v845 = vpop.f32.mrb[0].mxu0
      %846 = vmatprep.mubr.f32.mxu0 0.0
      %847 = vmatmul.mubr.f32.gmra.mrb[0].mxu0 %v738
      %v848 = vpop.f32.mrb[0].mxu0
      %v849 = vadd.f32 0.0, %v848
      %v850 = vpop.f32.mrb[0].mxu0
      %851 = vmatprep.mubr.f32.mxu0 0.0
      %852 = vmatmul.mubr.f32.gmra.mrb[0].mxu0 %v740
      %v853 = vpop.f32.mrb[0].mxu0
      %v854 = vadd.f32 0.0, %v853
      %v855 = vpop.f32.mrb[0].mxu0
      %856 = vmatprep.mubr.f32.mxu0 0.0
      %857 = vmatmul.mubr.f32.gmra.mrb[0].mxu0 %v742
      %v858 = vpop.f32.mrb[0].mxu0
      %v859 = vadd.f32 0.0, %v858
      %v860 = vpop.f32.mrb[0].mxu0
      %861 = vmatprep.mubr.f32.mxu0 0.0
      %862 = vmatmul.mubr.f32.gmra.mrb[0].mxu0 %v744
      %v863 = vpop.f32.mrb[0].mxu0
      %v864 = vadd.f32 0.0, %v863
      %v865 = vpop.f32.mrb[0].mxu0
      %866 = vmatprep.mubr.f32.mxu0 0.0
      %867 = vmatmul.mubr.f32.gmra.mrb[0].mxu0 %v746
      %v868 = vpop.f32.mrb[0].mxu0
      %v869 = vadd.f32 0.0, %v868
      %v870 = vpop.f32.mrb[0].mxu0
      %871 = vmatprep.mubr.f32.mxu0 0.0
      %872 = vmatmul.mubr.f32.gmra.mrb[0].mxu0 %v748
      %v873 = vpop.f32.mrb[0].mxu0
      %v874 = vadd.f32 0.0, %v873
      %v875 = vpop.f32.mrb[0].mxu0
      %876 = vmatprep.mubr.f32.mxu0 0.0
      %877 = vmatmul.mubr.f32.gmra.mrb[0].mxu0 %v750
      %v878 = vpop.f32.mrb[0].mxu0
      %v879 = vadd.f32 0.0, %v878
      %v880 = vpop.f32.mrb[0].mxu0
      %881 = vmatprep.mubr.f32.mxu0 0.0
      %882 = vmatmul.mubr.f32.gmra.mrb[0].mxu0 %v752
      %v883 = vpop.f32.mrb[0].mxu0
      %v884 = vadd.f32 0.0, %v883
      %v885 = vpop.f32.mrb[0].mxu0
      %886 = vmatprep.mubr.f32.mxu0 0.0
      %887 = vmatmul.mubr.f32.gmra.mrb[0].mxu0 %v754
      %v888 = vpop.f32.mrb[0].mxu0
      %v889 = vadd.f32 0.0, %v888
      %v890 = vpop.f32.mrb[0].mxu0
      %891 = vmatprep.mubr.f32.mxu0 0.0
      %892 = vmatmul.mubr.f32.gmra.mrb[0].mxu0 %v756
      %v893 = vpop.f32.mrb[0].mxu0
      %v894 = vadd.f32 0.0, %v893
      %v895 = vpop.f32.mrb[0].mxu0
      %896 = vmatprep.mubr.f32.mxu0 0.0
      %897 = vmatmul.mubr.f32.gmra.mrb[0].mxu0 %v758
      %v898 = vpop.f32.mrb[0].mxu0
      %v899 = vadd.f32 0.0, %v898
      %v900 = vpop.f32.mrb[0].mxu0
      %901 = vmatprep.mubr.f32.mxu0 0.0
      %902 = vmatmul.mubr.f32.gmra.mrb[0].mxu0 %v760
      %v903 = vpop.f32.mrb[0].mxu0
      %v904 = vadd.f32 0.0, %v903
      %v905 = vpop.f32.mrb[0].mxu0
      %906 = vdwg.mxu0
      %v907 = vsel %vm729, %v625, 0
      %v909 = vsel %vm729, %v626, 0
      %v911 = vsel %vm729, %v628, 0
      %v913 = vsel %vm729, %v629, 0
      %v915 = vsel %vm729, %v631, 0
      %v917 = vsel %vm729, %v632, 0
      %v919 = vsel %vm729, %v634, 0
      %v921 = vsel %vm729, %v635, 0
      %v923 = vsel %vm729, %v637, 0
      %v925 = vsel %vm729, %v638, 0
      %v927 = vsel %vm729, %v640, 0
      %v929 = vsel %vm729, %v641, 0
      %v931 = vsel %vm729, %v643, 0
      %v933 = vsel %vm729, %v644, 0
      %v935 = vsel %vm729, %v646, 0
      %v937 = vsel %vm729, %v647, 0
      %939 = vmatprep.subr.mxu0 0.0
      %940 = vmatpush1.msra.mxu0 %v655
      %941 = vmatprep.subr.mxu0 0.0
      %942 = vmatpush1.msra.mxu0 0.0
      %943 = vmatprep.subr.mxu0 0.0
      %944 = vmatpush1.msra.mxu0 0.0
      %945 = vmatprep.subr.mxu0 0.0
      %946 = vmatpush1.msra.mxu0 0.0
      %947 = vmatprep.subr.mxu0 0.0
      %948 = vmatpush1.msra.mxu0 0.0
      %949 = vmatprep.subr.mxu0 0.0
      %950 = vmatpush1.msra.mxu0 0.0
      %951 = vmatprep.subr.mxu0 0.0
      %952 = vmatpush1.msra.mxu0 0.0
      %953 = vmatprep.subr.mxu0 0.0
      %954 = vmatpush1.msra.mxu0 0.0
      %955 = vmatprep.subr.mxu0 0.0
      %956 = vmatpush1.msra.mxu0 0.0
      %957 = vmatprep.subr.mxu0 0.0
      %958 = vmatpush1.msra.mxu0 0.0
      %959 = vmatprep.subr.mxu0 0.0
      %960 = vmatpush1.msra.mxu0 0.0
      %961 = vmatprep.subr.mxu0 0.0
      %962 = vmatpush1.msra.mxu0 0.0
      %963 = vmatprep.subr.mxu0 0.0
      %964 = vmatpush1.msra.mxu0 0.0
      %965 = vmatprep.subr.mxu0 0.0
      %966 = vmatpush1.msra.mxu0 0.0
      %967 = vmatprep.subr.mxu0 0.0
      %968 = vmatpush1.msra.mxu0 0.0
      %969 = vmatprep.subr.mxu0 0.0
      %970 = vmatpush1.msra.mxu0 0.0
      %971 = vmatprep.subr.mxu0 0.0
      %972 = vmatpush1.msra.mxu0 0.0
      %973 = vmatprep.subr.mxu0 0.0
      %974 = vmatpush1.msra.mxu0 0.0
      %975 = vmatprep.subr.mxu0 0.0
      %976 = vmatpush1.msra.mxu0 0.0
      %977 = vmatprep.subr.mxu0 0.0
      %978 = vmatpush1.msra.mxu0 0.0
      %979 = vmatprep.subr.mxu0 0.0
      %980 = vmatpush1.msra.mxu0 0.0
      %981 = vmatprep.subr.mxu0 0.0
      %982 = vmatpush1.msra.mxu0 0.0
      %983 = vmatprep.subr.mxu0 0.0
      %984 = vmatpush1.msra.mxu0 0.0
      %985 = vmatprep.subr.mxu0 0.0
      %986 = vmatpush1.msra.mxu0 0.0
      %987 = vmatprep.subr.mxu0 0.0
      %988 = vmatpush1.msra.mxu0 0.0
      %989 = vmatprep.subr.mxu0 0.0
      %990 = vmatpush1.msra.mxu0 0.0
      %991 = vmatprep.subr.mxu0 0.0
      %992 = vmatpush1.msra.mxu0 0.0
      %993 = vmatprep.subr.mxu0 0.0
      %994 = vmatpush1.msra.mxu0 0.0
      %995 = vmatprep.subr.mxu0 0.0
      %996 = vmatpush1.msra.mxu0 0.0
      %997 = vmatprep.subr.mxu0 0.0
      %998 = vmatpush1.msra.mxu0 0.0
      %999 = vmatprep.subr.mxu0 0.0
      %1000 = vmatpush1.msra.mxu0 0.0
      %1001 = vmatprep.subr.mxu0 0.0
      %1002 = vmatpush1.msra.mxu0 0.0
      %1003 = vmatprep.mubr.f32.mxu0 0.0
      %1004 = vmatmul.mubr.f32.gmra.mrb[0].mxu0 %v907
      %v1005 = vpop.f32.mrb[0].mxu0
      %v1006 = vadd.f32 %v829, %v1005
      %v1007 = vpop.f32.mrb[0].mxu0
      %1008 = vmatprep.mubr.f32.mxu0 0.0
      %1009 = vmatmul.mubr.f32.gmra.mrb[0].mxu0 %v909
      %v1010 = vpop.f32.mrb[0].mxu0
      %v1011 = vadd.f32 %v834, %v1010
      %v1012 = vpop.f32.mrb[0].mxu0
      %1013 = vmatprep.mubr.f32.mxu0 0.0
      %1014 = vmatmul.mubr.f32.gmra.mrb[0].mxu0 %v911
      %v1015 = vpop.f32.mrb[0].mxu0
      %v1016 = vadd.f32 %v839, %v1015
      %v1017 = vpop.f32.mrb[0].mxu0
      %1018 = vmatprep.mubr.f32.mxu0 0.0
      %1019 = vmatmul.mubr.f32.gmra.mrb[0].mxu0 %v913
      %v1020 = vpop.f32.mrb[0].mxu0
      %v1021 = vadd.f32 %v844, %v1020
      %v1022 = vpop.f32.mrb[0].mxu0
      %1023 = vmatprep.mubr.f32.mxu0 0.0
      %1024 = vmatmul.mubr.f32.gmra.mrb[0].mxu0 %v915
      %v1025 = vpop.f32.mrb[0].mxu0
      %v1026 = vadd.f32 %v849, %v1025
      %v1027 = vpop.f32.mrb[0].mxu0
      %1028 = vmatprep.mubr.f32.mxu0 0.0
      %1029 = vmatmul.mubr.f32.gmra.mrb[0].mxu0 %v917
      %v1030 = vpop.f32.mrb[0].mxu0
      %v1031 = vadd.f32 %v854, %v1030
      %v1032 = vpop.f32.mrb[0].mxu0
      %1033 = vmatprep.mubr.f32.mxu0 0.0
      %1034 = vmatmul.mubr.f32.gmra.mrb[0].mxu0 %v919
      %v1035 = vpop.f32.mrb[0].mxu0
      %v1036 = vadd.f32 %v859, %v1035
      %v1037 = vpop.f32.mrb[0].mxu0
      %1038 = vmatprep.mubr.f32.mxu0 0.0
      %1039 = vmatmul.mubr.f32.gmra.mrb[0].mxu0 %v921
      %v1040 = vpop.f32.mrb[0].mxu0
      %v1041 = vadd.f32 %v864, %v1040
      %v1042 = vpop.f32.mrb[0].mxu0
      %1043 = vmatprep.mubr.f32.mxu0 0.0
      %1044 = vmatmul.mubr.f32.gmra.mrb[0].mxu0 %v923
      %v1045 = vpop.f32.mrb[0].mxu0
      %v1046 = vadd.f32 %v869, %v1045
      %v1047 = vpop.f32.mrb[0].mxu0
      %1048 = vmatprep.mubr.f32.mxu0 0.0
      %1049 = vmatmul.mubr.f32.gmra.mrb[0].mxu0 %v925
      %v1050 = vpop.f32.mrb[0].mxu0
      %v1051 = vadd.f32 %v874, %v1050
      %v1052 = vpop.f32.mrb[0].mxu0
      %1053 = vmatprep.mubr.f32.mxu0 0.0
      %1054 = vmatmul.mubr.f32.gmra.mrb[0].mxu0 %v927
      %v1055 = vpop.f32.mrb[0].mxu0
      %v1056 = vadd.f32 %v879, %v1055
      %v1057 = vpop.f32.mrb[0].mxu0
      %1058 = vmatprep.mubr.f32.mxu0 0.0
      %1059 = vmatmul.mubr.f32.gmra.mrb[0].mxu0 %v929
      %v1060 = vpop.f32.mrb[0].mxu0
      %v1061 = vadd.f32 %v884, %v1060
      %v1062 = vpop.f32.mrb[0].mxu0
      %1063 = vmatprep.mubr.f32.mxu0 0.0
      %1064 = vmatmul.mubr.f32.gmra.mrb[0].mxu0 %v931
      %v1065 = vpop.f32.mrb[0].mxu0
      %v1066 = vadd.f32 %v889, %v1065
      %v1067 = vpop.f32.mrb[0].mxu0
      %1068 = vmatprep.mubr.f32.mxu0 0.0
      %1069 = vmatmul.mubr.f32.gmra.mrb[0].mxu0 %v933
      %v1070 = vpop.f32.mrb[0].mxu0
      %v1071 = vadd.f32 %v894, %v1070
      %v1072 = vpop.f32.mrb[0].mxu0
      %1073 = vmatprep.mubr.f32.mxu0 0.0
      %1074 = vmatmul.mubr.f32.gmra.mrb[0].mxu0 %v935
      %v1075 = vpop.f32.mrb[0].mxu0
      %v1076 = vadd.f32 %v899, %v1075
      %v1077 = vpop.f32.mrb[0].mxu0
      %1078 = vmatprep.mubr.f32.mxu0 0.0
      %1079 = vmatmul.mubr.f32.gmra.mrb[0].mxu0 %v937
      %v1080 = vpop.f32.mrb[0].mxu0
      %v1081 = vadd.f32 %v904, %v1080
      %v1082 = vpop.f32.mrb[0].mxu0
      %1083 = vdwg.mxu0
      %vm1084 = vcmask 1045504
      %v1085 = vrot.slane %v625, 2
      %v1086 = vrot.slane %v626, 2
      %v1087 = vsel %vm1084, %v1085, %v1086
      %v1088 = vrot.slane %v627, 2
      %v1089 = vsel %vm1084, %v1086, %v1088
      %v1090 = vrot.slane %v628, 2
      %v1091 = vrot.slane %v629, 2
      %v1092 = vsel %vm1084, %v1090, %v1091
      %v1093 = vrot.slane %v630, 2
      %v1094 = vsel %vm1084, %v1091, %v1093
      %v1095 = vrot.slane %v631, 2
      %v1096 = vrot.slane %v632, 2
      %v1097 = vsel %vm1084, %v1095, %v1096
      %v1098 = vrot.slane %v633, 2
      %v1099 = vsel %vm1084, %v1096, %v1098
      %v1100 = vrot.slane %v634, 2
      %v1101 = vrot.slane %v635, 2
      %v1102 = vsel %vm1084, %v1100, %v1101
      %v1103 = vrot.slane %v636, 2
      %v1104 = vsel %vm1084, %v1101, %v1103
      %v1105 = vrot.slane %v637, 2
      %v1106 = vrot.slane %v638, 2
      %v1107 = vsel %vm1084, %v1105, %v1106
      %v1108 = vrot.slane %v639, 2
      %v1109 = vsel %vm1084, %v1106, %v1108
      %v1110 = vrot.slane %v640, 2
      %v1111 = vrot.slane %v641, 2
      %v1112 = vsel %vm1084, %v1110, %v1111
      %v1113 = vrot.slane %v642, 2
      %v1114 = vsel %vm1084, %v1111, %v1113
      %v1115 = vrot.slane %v643, 2
      %v1116 = vrot.slane %v644, 2
      %v1117 = vsel %vm1084, %v1115, %v1116
      %v1118 = vrot.slane %v645, 2
      %v1119 = vsel %vm1084, %v1116, %v1118
      %v1120 = vrot.slane %v646, 2
      %v1121 = vrot.slane %v647, 2
      %v1122 = vsel %vm1084, %v1120, %v1121
      %v1123 = vrot.slane %v648, 2
      %v1124 = vsel %vm1084, %v1121, %v1123
      %v1125 = vsel %vm729, %v1087, 0
      %v1127 = vsel %vm729, %v1089, 0
      %v1129 = vsel %vm729, %v1092, 0
      %v1131 = vsel %vm729, %v1094, 0
      %v1133 = vsel %vm729, %v1097, 0
      %v1135 = vsel %vm729, %v1099, 0
      %v1137 = vsel %vm729, %v1102, 0
      %v1139 = vsel %vm729, %v1104, 0
      %v1141 = vsel %vm729, %v1107, 0
      %v1143 = vsel %vm729, %v1109, 0
      %v1145 = vsel %vm729, %v1112, 0
      %v1147 = vsel %vm729, %v1114, 0
      %v1149 = vsel %vm729, %v1117, 0
      %v1151 = vsel %vm729, %v1119, 0
      %v1153 = vsel %vm729, %v1122, 0
      %v1155 = vsel %vm729, %v1124, 0
      %1157 = vmatprep.subr.mxu0 0.0
      %1158 = vmatpush1.msra.mxu0 %v657
      %1159 = vmatprep.subr.mxu0 0.0
      %1160 = vmatpush1.msra.mxu0 0.0
      %1161 = vmatprep.subr.mxu0 0.0
      %1162 = vmatpush1.msra.mxu0 0.0
      %1163 = vmatprep.subr.mxu0 0.0
      %1164 = vmatpush1.msra.mxu0 0.0
      %1165 = vmatprep.subr.mxu0 0.0
      %1166 = vmatpush1.msra.mxu0 0.0
      %1167 = vmatprep.subr.mxu0 0.0
      %1168 = vmatpush1.msra.mxu0 0.0
      %1169 = vmatprep.subr.mxu0 0.0
      %1170 = vmatpush1.msra.mxu0 0.0
      %1171 = vmatprep.subr.mxu0 0.0
      %1172 = vmatpush1.msra.mxu0 0.0
      %1173 = vmatprep.subr.mxu0 0.0
      %1174 = vmatpush1.msra.mxu0 0.0
      %1175 = vmatprep.subr.mxu0 0.0
      %1176 = vmatpush1.msra.mxu0 0.0
      %1177 = vmatprep.subr.mxu0 0.0
      %1178 = vmatpush1.msra.mxu0 0.0
      %1179 = vmatprep.subr.mxu0 0.0
      %1180 = vmatpush1.msra.mxu0 0.0
      %1181 = vmatprep.subr.mxu0 0.0
      %1182 = vmatpush1.msra.mxu0 0.0
      %1183 = vmatprep.subr.mxu0 0.0
      %1184 = vmatpush1.msra.mxu0 0.0
      %1185 = vmatprep.subr.mxu0 0.0
      %1186 = vmatpush1.msra.mxu0 0.0
      %1187 = vmatprep.subr.mxu0 0.0
      %1188 = vmatpush1.msra.mxu0 0.0
      %1189 = vmatprep.subr.mxu0 0.0
      %1190 = vmatpush1.msra.mxu0 0.0
      %1191 = vmatprep.subr.mxu0 0.0
      %1192 = vmatpush1.msra.mxu0 0.0
      %1193 = vmatprep.subr.mxu0 0.0
      %1194 = vmatpush1.msra.mxu0 0.0
      %1195 = vmatprep.subr.mxu0 0.0
      %1196 = vmatpush1.msra.mxu0 0.0
      %1197 = vmatprep.subr.mxu0 0.0
      %1198 = vmatpush1.msra.mxu0 0.0
      %1199 = vmatprep.subr.mxu0 0.0
      %1200 = vmatpush1.msra.mxu0 0.0
      %1201 = vmatprep.subr.mxu0 0.0
      %1202 = vmatpush1.msra.mxu0 0.0
      %1203 = vmatprep.subr.mxu0 0.0
      %1204 = vmatpush1.msra.mxu0 0.0
      %1205 = vmatprep.subr.mxu0 0.0
      %1206 = vmatpush1.msra.mxu0 0.0
      %1207 = vmatprep.subr.mxu0 0.0
      %1208 = vmatpush1.msra.mxu0 0.0
      %1209 = vmatprep.subr.mxu0 0.0
      %1210 = vmatpush1.msra.mxu0 0.0
      %1211 = vmatprep.subr.mxu0 0.0
      %1212 = vmatpush1.msra.mxu0 0.0
      %1213 = vmatprep.subr.mxu0 0.0
      %1214 = vmatpush1.msra.mxu0 0.0
      %1215 = vmatprep.subr.mxu0 0.0
      %1216 = vmatpush1.msra.mxu0 0.0
      %1217 = vmatprep.subr.mxu0 0.0
      %1218 = vmatpush1.msra.mxu0 0.0
      %1219 = vmatprep.subr.mxu0 0.0
      %1220 = vmatpush1.msra.mxu0 0.0
      %1221 = vmatprep.mubr.f32.mxu0 0.0
      %1222 = vmatmul.mubr.f32.gmra.mrb[0].mxu0 %v1125
      %v1223 = vpop.f32.mrb[0].mxu0
      %v1224 = vadd.f32 0.0, %v1223
      %v1225 = vpop.f32.mrb[0].mxu0
      %1226 = vmatprep.mubr.f32.mxu0 0.0
      %1227 = vmatmul.mubr.f32.gmra.mrb[0].mxu0 %v1127
      %v1228 = vpop.f32.mrb[0].mxu0
      %v1229 = vadd.f32 0.0, %v1228
      %v1230 = vpop.f32.mrb[0].mxu0
      %1231 = vmatprep.mubr.f32.mxu0 0.0
      %1232 = vmatmul.mubr.f32.gmra.mrb[0].mxu0 %v1129
      %v1233 = vpop.f32.mrb[0].mxu0
      %v1234 = vadd.f32 0.0, %v1233
      %v1235 = vpop.f32.mrb[0].mxu0
      %1236 = vmatprep.mubr.f32.mxu0 0.0
      %1237 = vmatmul.mubr.f32.gmra.mrb[0].mxu0 %v1131
      %v1238 = vpop.f32.mrb[0].mxu0
      %v1239 = vadd.f32 0.0, %v1238
      %v1240 = vpop.f32.mrb[0].mxu0
      %1241 = vmatprep.mubr.f32.mxu0 0.0
      %1242 = vmatmul.mubr.f32.gmra.mrb[0].mxu0 %v1133
      %v1243 = vpop.f32.mrb[0].mxu0
      %v1244 = vadd.f32 0.0, %v1243
      %v1245 = vpop.f32.mrb[0].mxu0
      %1246 = vmatprep.mubr.f32.mxu0 0.0
      %1247 = vmatmul.mubr.f32.gmra.mrb[0].mxu0 %v1135
      %v1248 = vpop.f32.mrb[0].mxu0
      %v1249 = vadd.f32 0.0, %v1248
      %v1250 = vpop.f32.mrb[0].mxu0
      %1251 = vmatprep.mubr.f32.mxu0 0.0
      %1252 = vmatmul.mubr.f32.gmra.mrb[0].mxu0 %v1137
      %v1253 = vpop.f32.mrb[0].mxu0
      %v1254 = vadd.f32 0.0, %v1253
      %v1255 = vpop.f32.mrb[0].mxu0
      %1256 = vmatprep.mubr.f32.mxu0 0.0
      %1257 = vmatmul.mubr.f32.gmra.mrb[0].mxu0 %v1139
      %v1258 = vpop.f32.mrb[0].mxu0
      %v1259 = vadd.f32 0.0, %v1258
      %v1260 = vpop.f32.mrb[0].mxu0
      %1261 = vmatprep.mubr.f32.mxu0 0.0
      %1262 = vmatmul.mubr.f32.gmra.mrb[0].mxu0 %v1141
      %v1263 = vpop.f32.mrb[0].mxu0
      %v1264 = vadd.f32 0.0, %v1263
      %v1265 = vpop.f32.mrb[0].mxu0
      %1266 = vmatprep.mubr.f32.mxu0 0.0
      %1267 = vmatmul.mubr.f32.gmra.mrb[0].mxu0 %v1143
      %v1268 = vpop.f32.mrb[0].mxu0
      %v1269 = vadd.f32 0.0, %v1268
      %v1270 = vpop.f32.mrb[0].mxu0
      %1271 = vmatprep.mubr.f32.mxu0 0.0
      %1272 = vmatmul.mubr.f32.gmra.mrb[0].mxu0 %v1145
      %v1273 = vpop.f32.mrb[0].mxu0
      %v1274 = vadd.f32 0.0, %v1273
      %v1275 = vpop.f32.mrb[0].mxu0
      %1276 = vmatprep.mubr.f32.mxu0 0.0
      %1277 = vmatmul.mubr.f32.gmra.mrb[0].mxu0 %v1147
      %v1278 = vpop.f32.mrb[0].mxu0
      %v1279 = vadd.f32 0.0, %v1278
      %v1280 = vpop.f32.mrb[0].mxu0
      %1281 = vmatprep.mubr.f32.mxu0 0.0
      %1282 = vmatmul.mubr.f32.gmra.mrb[0].mxu0 %v1149
      %v1283 = vpop.f32.mrb[0].mxu0
      %v1284 = vadd.f32 0.0, %v1283
      %v1285 = vpop.f32.mrb[0].mxu0
      %1286 = vmatprep.mubr.f32.mxu0 0.0
      %1287 = vmatmul.mubr.f32.gmra.mrb[0].mxu0 %v1151
      %v1288 = vpop.f32.mrb[0].mxu0
      %v1289 = vadd.f32 0.0, %v1288
      %v1290 = vpop.f32.mrb[0].mxu0
      %1291 = vmatprep.mubr.f32.mxu0 0.0
      %1292 = vmatmul.mubr.f32.gmra.mrb[0].mxu0 %v1153
      %v1293 = vpop.f32.mrb[0].mxu0
      %v1294 = vadd.f32 0.0, %v1293
      %v1295 = vpop.f32.mrb[0].mxu0
      %1296 = vmatprep.mubr.f32.mxu0 0.0
      %1297 = vmatmul.mubr.f32.gmra.mrb[0].mxu0 %v1155
      %v1298 = vpop.f32.mrb[0].mxu0
      %v1299 = vadd.f32 0.0, %v1298
      %v1300 = vpop.f32.mrb[0].mxu0
      %1301 = vdwg.mxu0
      %v1302 = vadd.f32 %v1006, %v1224
      %v1303 = vadd.f32 %v1011, %v1229
      %v1304 = vadd.f32 %v1016, %v1234
      %v1305 = vadd.f32 %v1021, %v1239
      %v1306 = vadd.f32 %v1026, %v1244
      %v1307 = vadd.f32 %v1031, %v1249
      %v1308 = vadd.f32 %v1036, %v1254
      %v1309 = vadd.f32 %v1041, %v1259
      %v1310 = vadd.f32 %v1046, %v1264
      %v1311 = vadd.f32 %v1051, %v1269
      %v1312 = vadd.f32 %v1056, %v1274
      %v1313 = vadd.f32 %v1061, %v1279
      %v1314 = vadd.f32 %v1066, %v1284
      %v1315 = vadd.f32 %v1071, %v1289
      %v1316 = vadd.f32 %v1076, %v1294
      %v1317 = vadd.f32 %v1081, %v1299
      %v1319 = vsel %vm729, %v649, 0
      %v1322 = vsel %vm729, %v650, 0
      %1324 = vmatprep.subr.mxu0 0.0
      %1325 = vmatpush1.msra.mxu0 %v658
      %1326 = vmatprep.subr.mxu0 0.0
      %1327 = vmatpush1.msra.mxu0 0.0
      %1328 = vmatprep.subr.mxu0 0.0
      %1329 = vmatpush1.msra.mxu0 0.0
      %1330 = vmatprep.subr.mxu0 0.0
      %1331 = vmatpush1.msra.mxu0 0.0
      %1332 = vmatprep.subr.mxu0 0.0
      %1333 = vmatpush1.msra.mxu0 0.0
      %1334 = vmatprep.subr.mxu0 0.0
      %1335 = vmatpush1.msra.mxu0 0.0
      %1336 = vmatprep.subr.mxu0 0.0
      %1337 = vmatpush1.msra.mxu0 0.0
      %1338 = vmatprep.subr.mxu0 0.0
      %1339 = vmatpush1.msra.mxu0 0.0
      %1340 = vmatprep.subr.mxu0 0.0
      %1341 = vmatpush1.msra.mxu0 0.0
      %1342 = vmatprep.subr.mxu0 0.0
      %1343 = vmatpush1.msra.mxu0 0.0
      %1344 = vmatprep.subr.mxu0 0.0
      %1345 = vmatpush1.msra.mxu0 0.0
      %1346 = vmatprep.subr.mxu0 0.0
      %1347 = vmatpush1.msra.mxu0 0.0
      %1348 = vmatprep.subr.mxu0 0.0
      %1349 = vmatpush1.msra.mxu0 0.0
      %1350 = vmatprep.subr.mxu0 0.0
      %1351 = vmatpush1.msra.mxu0 0.0
      %1352 = vmatprep.subr.mxu0 0.0
      %1353 = vmatpush1.msra.mxu0 0.0
      %1354 = vmatprep.subr.mxu0 0.0
      %1355 = vmatpush1.msra.mxu0 0.0
      %1356 = vmatprep.subr.mxu0 0.0
      %1357 = vmatpush1.msra.mxu0 0.0
      %1358 = vmatprep.subr.mxu0 0.0
      %1359 = vmatpush1.msra.mxu0 0.0
      %1360 = vmatprep.subr.mxu0 0.0
      %1361 = vmatpush1.msra.mxu0 0.0
      %1362 = vmatprep.subr.mxu0 0.0
      %1363 = vmatpush1.msra.mxu0 0.0
      %1364 = vmatprep.subr.mxu0 0.0
      %1365 = vmatpush1.msra.mxu0 0.0
      %1366 = vmatprep.subr.mxu0 0.0
      %1367 = vmatpush1.msra.mxu0 0.0
      %1368 = vmatprep.subr.mxu0 0.0
      %1369 = vmatpush1.msra.mxu0 0.0
      %1370 = vmatprep.subr.mxu0 0.0
      %1371 = vmatpush1.msra.mxu0 0.0
      %1372 = vmatprep.subr.mxu0 0.0
      %1373 = vmatpush1.msra.mxu0 0.0
      %1374 = vmatprep.subr.mxu0 0.0
      %1375 = vmatpush1.msra.mxu0 0.0
      %1376 = vmatprep.subr.mxu0 0.0
      %1377 = vmatpush1.msra.mxu0 0.0
      %1378 = vmatprep.subr.mxu0 0.0
      %1379 = vmatpush1.msra.mxu0 0.0
      %1380 = vmatprep.subr.mxu0 0.0
      %1381 = vmatpush1.msra.mxu0 0.0
      %1382 = vmatprep.subr.mxu0 0.0
      %1383 = vmatpush1.msra.mxu0 0.0
      %1384 = vmatprep.subr.mxu0 0.0
      %1385 = vmatpush1.msra.mxu0 0.0
      %1386 = vmatprep.subr.mxu0 0.0
      %1387 = vmatpush1.msra.mxu0 0.0
      %1388 = vmatprep.mubr.f32.mxu0 0.0
      %1389 = vmatmul.mubr.f32.gmra.mrb[0].mxu0 %v911
      %v1390 = vpop.f32.mrb[0].mxu0
      %v1391 = vadd.f32 0.0, %v1390
      %v1392 = vpop.f32.mrb[0].mxu0
      %1393 = vmatprep.mubr.f32.mxu0 0.0
      %1394 = vmatmul.mubr.f32.gmra.mrb[0].mxu0 %v913
      %v1395 = vpop.f32.mrb[0].mxu0
      %v1396 = vadd.f32 0.0, %v1395
      %v1397 = vpop.f32.mrb[0].mxu0
      %1398 = vmatprep.mubr.f32.mxu0 0.0
      %1399 = vmatmul.mubr.f32.gmra.mrb[0].mxu0 %v915
      %v1400 = vpop.f32.mrb[0].mxu0
      %v1401 = vadd.f32 0.0, %v1400
      %v1402 = vpop.f32.mrb[0].mxu0
      %1403 = vmatprep.mubr.f32.mxu0 0.0
      %1404 = vmatmul.mubr.f32.gmra.mrb[0].mxu0 %v917
      %v1405 = vpop.f32.mrb[0].mxu0
      %v1406 = vadd.f32 0.0, %v1405
      %v1407 = vpop.f32.mrb[0].mxu0
      %1408 = vmatprep.mubr.f32.mxu0 0.0
      %1409 = vmatmul.mubr.f32.gmra.mrb[0].mxu0 %v919
      %v1410 = vpop.f32.mrb[0].mxu0
      %v1411 = vadd.f32 0.0, %v1410
      %v1412 = vpop.f32.mrb[0].mxu0
      %1413 = vmatprep.mubr.f32.mxu0 0.0
      %1414 = vmatmul.mubr.f32.gmra.mrb[0].mxu0 %v921
      %v1415 = vpop.f32.mrb[0].mxu0
      %v1416 = vadd.f32 0.0, %v1415
      %v1417 = vpop.f32.mrb[0].mxu0
      %1418 = vmatprep.mubr.f32.mxu0 0.0
      %1419 = vmatmul.mubr.f32.gmra.mrb[0].mxu0 %v923
      %v1420 = vpop.f32.mrb[0].mxu0
      %v1421 = vadd.f32 0.0, %v1420
      %v1422 = vpop.f32.mrb[0].mxu0
      %1423 = vmatprep.mubr.f32.mxu0 0.0
      %1424 = vmatmul.mubr.f32.gmra.mrb[0].mxu0 %v925
      %v1425 = vpop.f32.mrb[0].mxu0
      %v1426 = vadd.f32 0.0, %v1425
      %v1427 = vpop.f32.mrb[0].mxu0
      %1428 = vmatprep.mubr.f32.mxu0 0.0
      %1429 = vmatmul.mubr.f32.gmra.mrb[0].mxu0 %v927
      %v1430 = vpop.f32.mrb[0].mxu0
      %v1431 = vadd.f32 0.0, %v1430
      %v1432 = vpop.f32.mrb[0].mxu0
      %1433 = vmatprep.mubr.f32.mxu0 0.0
      %1434 = vmatmul.mubr.f32.gmra.mrb[0].mxu0 %v929
      %v1435 = vpop.f32.mrb[0].mxu0
      %v1436 = vadd.f32 0.0, %v1435
      %v1437 = vpop.f32.mrb[0].mxu0
      %1438 = vmatprep.mubr.f32.mxu0 0.0
      %1439 = vmatmul.mubr.f32.gmra.mrb[0].mxu0 %v931
      %v1440 = vpop.f32.mrb[0].mxu0
      %v1441 = vadd.f32 0.0, %v1440
      %v1442 = vpop.f32.mrb[0].mxu0
      %1443 = vmatprep.mubr.f32.mxu0 0.0
      %1444 = vmatmul.mubr.f32.gmra.mrb[0].mxu0 %v933
      %v1445 = vpop.f32.mrb[0].mxu0
      %v1446 = vadd.f32 0.0, %v1445
      %v1447 = vpop.f32.mrb[0].mxu0
      %1448 = vmatprep.mubr.f32.mxu0 0.0
      %1449 = vmatmul.mubr.f32.gmra.mrb[0].mxu0 %v935
      %v1450 = vpop.f32.mrb[0].mxu0
      %v1451 = vadd.f32 0.0, %v1450
      %v1452 = vpop.f32.mrb[0].mxu0
      %1453 = vmatprep.mubr.f32.mxu0 0.0
      %1454 = vmatmul.mubr.f32.gmra.mrb[0].mxu0 %v937
      %v1455 = vpop.f32.mrb[0].mxu0
      %v1456 = vadd.f32 0.0, %v1455
      %v1457 = vpop.f32.mrb[0].mxu0
      %1458 = vmatprep.mubr.f32.mxu0 0.0
      %1459 = vmatmul.mubr.f32.gmra.mrb[0].mxu0 %v1319
      %v1460 = vpop.f32.mrb[0].mxu0
      %v1461 = vadd.f32 0.0, %v1460
      %v1462 = vpop.f32.mrb[0].mxu0
      %1463 = vmatprep.mubr.f32.mxu0 0.0
      %1464 = vmatmul.mubr.f32.gmra.mrb[0].mxu0 %v1322
      %v1465 = vpop.f32.mrb[0].mxu0
      %v1466 = vadd.f32 0.0, %v1465
      %v1467 = vpop.f32.mrb[0].mxu0
      %1468 = vdwg.mxu0
      %v1469 = vadd.f32 %v1302, %v1391
      %v1470 = vadd.f32 %v1303, %v1396
      %v1471 = vadd.f32 %v1304, %v1401
      %v1472 = vadd.f32 %v1305, %v1406
      %v1473 = vadd.f32 %v1306, %v1411
      %v1474 = vadd.f32 %v1307, %v1416
      %v1475 = vadd.f32 %v1308, %v1421
      %v1476 = vadd.f32 %v1309, %v1426
      %v1477 = vadd.f32 %v1310, %v1431
      %v1478 = vadd.f32 %v1311, %v1436
      %v1479 = vadd.f32 %v1312, %v1441
      %v1480 = vadd.f32 %v1313, %v1446
      %v1481 = vadd.f32 %v1314, %v1451
      %v1482 = vadd.f32 %v1315, %v1456
      %v1483 = vadd.f32 %v1316, %v1461
      %v1484 = vadd.f32 %v1317, %v1466
      %v1486 = vrot.slane %v649, 1
      %v1487 = vrot.slane %v650, 1
      %v1488 = vsel %vm688, %v1486, %v1487
      %v1489 = vrot.slane %v651, 1
      %v1490 = vsel %vm688, %v1487, %v1489
      %v1491 = vsel %vm729, %v1488, 0
      %v1493 = vsel %vm729, %v1490, 0
      %1495 = vmatprep.subr.mxu0 0.0
      %1496 = vmatpush1.msra.mxu0 %v659
      %1497 = vmatprep.subr.mxu0 0.0
      %1498 = vmatpush1.msra.mxu0 0.0
      %1499 = vmatprep.subr.mxu0 0.0
      %1500 = vmatpush1.msra.mxu0 0.0
      %1501 = vmatprep.subr.mxu0 0.0
      %1502 = vmatpush1.msra.mxu0 0.0
      %1503 = vmatprep.subr.mxu0 0.0
      %1504 = vmatpush1.msra.mxu0 0.0
      %1505 = vmatprep.subr.mxu0 0.0
      %1506 = vmatpush1.msra.mxu0 0.0
      %1507 = vmatprep.subr.mxu0 0.0
      %1508 = vmatpush1.msra.mxu0 0.0
      %1509 = vmatprep.subr.mxu0 0.0
      %1510 = vmatpush1.msra.mxu0 0.0
      %1511 = vmatprep.subr.mxu0 0.0
      %1512 = vmatpush1.msra.mxu0 0.0
      %1513 = vmatprep.subr.mxu0 0.0
      %1514 = vmatpush1.msra.mxu0 0.0
      %1515 = vmatprep.subr.mxu0 0.0
      %1516 = vmatpush1.msra.mxu0 0.0
      %1517 = vmatprep.subr.mxu0 0.0
      %1518 = vmatpush1.msra.mxu0 0.0
      %1519 = vmatprep.subr.mxu0 0.0
      %1520 = vmatpush1.msra.mxu0 0.0
      %1521 = vmatprep.subr.mxu0 0.0
      %1522 = vmatpush1.msra.mxu0 0.0
      %1523 = vmatprep.subr.mxu0 0.0
      %1524 = vmatpush1.msra.mxu0 0.0
      %1525 = vmatprep.subr.mxu0 0.0
      %1526 = vmatpush1.msra.mxu0 0.0
      %1527 = vmatprep.subr.mxu0 0.0
      %1528 = vmatpush1.msra.mxu0 0.0
      %1529 = vmatprep.subr.mxu0 0.0
      %1530 = vmatpush1.msra.mxu0 0.0
      %1531 = vmatprep.subr.mxu0 0.0
      %1532 = vmatpush1.msra.mxu0 0.0
      %1533 = vmatprep.subr.mxu0 0.0
      %1534 = vmatpush1.msra.mxu0 0.0
      %1535 = vmatprep.subr.mxu0 0.0
      %1536 = vmatpush1.msra.mxu0 0.0
      %1537 = vmatprep.subr.mxu0 0.0
      %1538 = vmatpush1.msra.mxu0 0.0
      %1539 = vmatprep.subr.mxu0 0.0
      %1540 = vmatpush1.msra.mxu0 0.0
      %1541 = vmatprep.subr.mxu0 0.0
      %1542 = vmatpush1.msra.mxu0 0.0
      %1543 = vmatprep.subr.mxu0 0.0
      %1544 = vmatpush1.msra.mxu0 0.0
      %1545 = vmatprep.subr.mxu0 0.0
      %1546 = vmatpush1.msra.mxu0 0.0
      %1547 = vmatprep.subr.mxu0 0.0
      %1548 = vmatpush1.msra.mxu0 0.0
      %1549 = vmatprep.subr.mxu0 0.0
      %1550 = vmatpush1.msra.mxu0 0.0
      %1551 = vmatprep.subr.mxu0 0.0
      %1552 = vmatpush1.msra.mxu0 0.0
      %1553 = vmatprep.subr.mxu0 0.0
      %1554 = vmatpush1.msra.mxu0 0.0
      %1555 = vmatprep.subr.mxu0 0.0
      %1556 = vmatpush1.msra.mxu0 0.0
      %1557 = vmatprep.subr.mxu0 0.0
      %1558 = vmatpush1.msra.mxu0 0.0
      %1559 = vmatprep.mubr.f32.mxu0 0.0
      %1560 = vmatmul.mubr.f32.gmra.mrb[0].mxu0 %v734
      %v1561 = vpop.f32.mrb[0].mxu0
      %v1562 = vadd.f32 0.0, %v1561
      %v1563 = vpop.f32.mrb[0].mxu0
      %1564 = vmatprep.mubr.f32.mxu0 0.0
      %1565 = vmatmul.mubr.f32.gmra.mrb[0].mxu0 %v736
      %v1566 = vpop.f32.mrb[0].mxu0
      %v1567 = vadd.f32 0.0, %v1566
      %v1568 = vpop.f32.mrb[0].mxu0
      %1569 = vmatprep.mubr.f32.mxu0 0.0
      %1570 = vmatmul.mubr.f32.gmra.mrb[0].mxu0 %v738
      %v1571 = vpop.f32.mrb[0].mxu0
      %v1572 = vadd.f32 0.0, %v1571
      %v1573 = vpop.f32.mrb[0].mxu0
      %1574 = vmatprep.mubr.f32.mxu0 0.0
      %1575 = vmatmul.mubr.f32.gmra.mrb[0].mxu0 %v740
      %v1576 = vpop.f32.mrb[0].mxu0
      %v1577 = vadd.f32 0.0, %v1576
      %v1578 = vpop.f32.mrb[0].mxu0
      %1579 = vmatprep.mubr.f32.mxu0 0.0
      %1580 = vmatmul.mubr.f32.gmra.mrb[0].mxu0 %v742
      %v1581 = vpop.f32.mrb[0].mxu0
      %v1582 = vadd.f32 0.0, %v1581
      %v1583 = vpop.f32.mrb[0].mxu0
      %1584 = vmatprep.mubr.f32.mxu0 0.0
      %1585 = vmatmul.mubr.f32.gmra.mrb[0].mxu0 %v744
      %v1586 = vpop.f32.mrb[0].mxu0
      %v1587 = vadd.f32 0.0, %v1586
      %v1588 = vpop.f32.mrb[0].mxu0
      %1589 = vmatprep.mubr.f32.mxu0 0.0
      %1590 = vmatmul.mubr.f32.gmra.mrb[0].mxu0 %v746
      %v1591 = vpop.f32.mrb[0].mxu0
      %v1592 = vadd.f32 0.0, %v1591
      %v1593 = vpop.f32.mrb[0].mxu0
      %1594 = vmatprep.mubr.f32.mxu0 0.0
      %1595 = vmatmul.mubr.f32.gmra.mrb[0].mxu0 %v748
      %v1596 = vpop.f32.mrb[0].mxu0
      %v1597 = vadd.f32 0.0, %v1596
      %v1598 = vpop.f32.mrb[0].mxu0
      %1599 = vmatprep.mubr.f32.mxu0 0.0
      %1600 = vmatmul.mubr.f32.gmra.mrb[0].mxu0 %v750
      %v1601 = vpop.f32.mrb[0].mxu0
      %v1602 = vadd.f32 0.0, %v1601
      %v1603 = vpop.f32.mrb[0].mxu0
      %1604 = vmatprep.mubr.f32.mxu0 0.0
      %1605 = vmatmul.mubr.f32.gmra.mrb[0].mxu0 %v752
      %v1606 = vpop.f32.mrb[0].mxu0
      %v1607 = vadd.f32 0.0, %v1606
      %v1608 = vpop.f32.mrb[0].mxu0
      %1609 = vmatprep.mubr.f32.mxu0 0.0
      %1610 = vmatmul.mubr.f32.gmra.mrb[0].mxu0 %v754
      %v1611 = vpop.f32.mrb[0].mxu0
      %v1612 = vadd.f32 0.0, %v1611
      %v1613 = vpop.f32.mrb[0].mxu0
      %1614 = vmatprep.mubr.f32.mxu0 0.0
      %1615 = vmatmul.mubr.f32.gmra.mrb[0].mxu0 %v756
      %v1616 = vpop.f32.mrb[0].mxu0
      %v1617 = vadd.f32 0.0, %v1616
      %v1618 = vpop.f32.mrb[0].mxu0
      %1619 = vmatprep.mubr.f32.mxu0 0.0
      %1620 = vmatmul.mubr.f32.gmra.mrb[0].mxu0 %v758
      %v1621 = vpop.f32.mrb[0].mxu0
      %v1622 = vadd.f32 0.0, %v1621
      %v1623 = vpop.f32.mrb[0].mxu0
      %1624 = vmatprep.mubr.f32.mxu0 0.0
      %1625 = vmatmul.mubr.f32.gmra.mrb[0].mxu0 %v760
      %v1626 = vpop.f32.mrb[0].mxu0
      %v1627 = vadd.f32 0.0, %v1626
      %v1628 = vpop.f32.mrb[0].mxu0
      %1629 = vmatprep.mubr.f32.mxu0 0.0
      %1630 = vmatmul.mubr.f32.gmra.mrb[0].mxu0 %v1491
      %v1631 = vpop.f32.mrb[0].mxu0
      %v1632 = vadd.f32 0.0, %v1631
      %v1633 = vpop.f32.mrb[0].mxu0
      %1634 = vmatprep.mubr.f32.mxu0 0.0
      %1635 = vmatmul.mubr.f32.gmra.mrb[0].mxu0 %v1493
      %v1636 = vpop.f32.mrb[0].mxu0
      %v1637 = vadd.f32 0.0, %v1636
      %v1638 = vpop.f32.mrb[0].mxu0
      %1639 = vdwg.mxu0
      %v1640 = vadd.f32 %v1469, %v1562
      %v1641 = vadd.f32 %v1470, %v1567
      %v1642 = vadd.f32 %v1471, %v1572
      %v1643 = vadd.f32 %v1472, %v1577
      %v1644 = vadd.f32 %v1473, %v1582
      %v1645 = vadd.f32 %v1474, %v1587
      %v1646 = vadd.f32 %v1475, %v1592
      %v1647 = vadd.f32 %v1476, %v1597
      %v1648 = vadd.f32 %v1477, %v1602
      %v1649 = vadd.f32 %v1478, %v1607
      %v1650 = vadd.f32 %v1479, %v1612
      %v1651 = vadd.f32 %v1480, %v1617
      %v1652 = vadd.f32 %v1481, %v1622
      %v1653 = vadd.f32 %v1482, %v1627
      %v1654 = vadd.f32 %v1483, %v1632
      %v1655 = vadd.f32 %v1484, %v1637
      %v1656 = vrot.slane %v649, 2
      %v1657 = vrot.slane %v650, 2
      %v1658 = vsel %vm1084, %v1656, %v1657
      %v1659 = vrot.slane %v651, 2
      %v1660 = vsel %vm1084, %v1657, %v1659
      %v1661 = vsel %vm729, %v1658, 0
      %v1663 = vsel %vm729, %v1660, 0
      %1665 = vmatprep.subr.mxu0 0.0
      %1666 = vmatpush1.msra.mxu0 %v660
      %1667 = vmatprep.subr.mxu0 0.0
      %1668 = vmatpush1.msra.mxu0 0.0
      %1669 = vmatprep.subr.mxu0 0.0
      %1670 = vmatpush1.msra.mxu0 0.0
      %1671 = vmatprep.subr.mxu0 0.0
      %1672 = vmatpush1.msra.mxu0 0.0
      %1673 = vmatprep.subr.mxu0 0.0
      %1674 = vmatpush1.msra.mxu0 0.0
      %1675 = vmatprep.subr.mxu0 0.0
      %1676 = vmatpush1.msra.mxu0 0.0
      %1677 = vmatprep.subr.mxu0 0.0
      %1678 = vmatpush1.msra.mxu0 0.0
      %1679 = vmatprep.subr.mxu0 0.0
      %1680 = vmatpush1.msra.mxu0 0.0
      %1681 = vmatprep.subr.mxu0 0.0
      %1682 = vmatpush1.msra.mxu0 0.0
      %1683 = vmatprep.subr.mxu0 0.0
      %1684 = vmatpush1.msra.mxu0 0.0
      %1685 = vmatprep.subr.mxu0 0.0
      %1686 = vmatpush1.msra.mxu0 0.0
      %1687 = vmatprep.subr.mxu0 0.0
      %1688 = vmatpush1.msra.mxu0 0.0
      %1689 = vmatprep.subr.mxu0 0.0
      %1690 = vmatpush1.msra.mxu0 0.0
      %1691 = vmatprep.subr.mxu0 0.0
      %1692 = vmatpush1.msra.mxu0 0.0
      %1693 = vmatprep.subr.mxu0 0.0
      %1694 = vmatpush1.msra.mxu0 0.0
      %1695 = vmatprep.subr.mxu0 0.0
      %1696 = vmatpush1.msra.mxu0 0.0
      %1697 = vmatprep.subr.mxu0 0.0
      %1698 = vmatpush1.msra.mxu0 0.0
      %1699 = vmatprep.subr.mxu0 0.0
      %1700 = vmatpush1.msra.mxu0 0.0
      %1701 = vmatprep.subr.mxu0 0.0
      %1702 = vmatpush1.msra.mxu0 0.0
      %1703 = vmatprep.subr.mxu0 0.0
      %1704 = vmatpush1.msra.mxu0 0.0
      %1705 = vmatprep.subr.mxu0 0.0
      %1706 = vmatpush1.msra.mxu0 0.0
      %1707 = vmatprep.subr.mxu0 0.0
      %1708 = vmatpush1.msra.mxu0 0.0
      %1709 = vmatprep.subr.mxu0 0.0
      %1710 = vmatpush1.msra.mxu0 0.0
      %1711 = vmatprep.subr.mxu0 0.0
      %1712 = vmatpush1.msra.mxu0 0.0
      %1713 = vmatprep.subr.mxu0 0.0
      %1714 = vmatpush1.msra.mxu0 0.0
      %1715 = vmatprep.subr.mxu0 0.0
      %1716 = vmatpush1.msra.mxu0 0.0
      %1717 = vmatprep.subr.mxu0 0.0
      %1718 = vmatpush1.msra.mxu0 0.0
      %1719 = vmatprep.subr.mxu0 0.0
      %1720 = vmatpush1.msra.mxu0 0.0
      %1721 = vmatprep.subr.mxu0 0.0
      %1722 = vmatpush1.msra.mxu0 0.0
      %1723 = vmatprep.subr.mxu0 0.0
      %1724 = vmatpush1.msra.mxu0 0.0
      %1725 = vmatprep.subr.mxu0 0.0
      %1726 = vmatpush1.msra.mxu0 0.0
      %1727 = vmatprep.subr.mxu0 0.0
      %1728 = vmatpush1.msra.mxu0 0.0
      %1729 = vmatprep.mubr.f32.mxu0 0.0
      %1730 = vmatmul.mubr.f32.gmra.mrb[0].mxu0 %v1129
      %v1731 = vpop.f32.mrb[0].mxu0
      %v1732 = vadd.f32 0.0, %v1731
      %v1733 = vpop.f32.mrb[0].mxu0
      %1734 = vmatprep.mubr.f32.mxu0 0.0
      %1735 = vmatmul.mubr.f32.gmra.mrb[0].mxu0 %v1131
      %v1736 = vpop.f32.mrb[0].mxu0
      %v1737 = vadd.f32 0.0, %v1736
      %v1738 = vpop.f32.mrb[0].mxu0
      %1739 = vmatprep.mubr.f32.mxu0 0.0
      %1740 = vmatmul.mubr.f32.gmra.mrb[0].mxu0 %v1133
      %v1741 = vpop.f32.mrb[0].mxu0
      %v1742 = vadd.f32 0.0, %v1741
      %v1743 = vpop.f32.mrb[0].mxu0
      %1744 = vmatprep.mubr.f32.mxu0 0.0
      %1745 = vmatmul.mubr.f32.gmra.mrb[0].mxu0 %v1135
      %v1746 = vpop.f32.mrb[0].mxu0
      %v1747 = vadd.f32 0.0, %v1746
      %v1748 = vpop.f32.mrb[0].mxu0
      %1749 = vmatprep.mubr.f32.mxu0 0.0
      %1750 = vmatmul.mubr.f32.gmra.mrb[0].mxu0 %v1137
      %v1751 = vpop.f32.mrb[0].mxu0
      %v1752 = vadd.f32 0.0, %v1751
      %v1753 = vpop.f32.mrb[0].mxu0
      %1754 = vmatprep.mubr.f32.mxu0 0.0
      %1755 = vmatmul.mubr.f32.gmra.mrb[0].mxu0 %v1139
      %v1756 = vpop.f32.mrb[0].mxu0
      %v1757 = vadd.f32 0.0, %v1756
      %v1758 = vpop.f32.mrb[0].mxu0
      %1759 = vmatprep.mubr.f32.mxu0 0.0
      %1760 = vmatmul.mubr.f32.gmra.mrb[0].mxu0 %v1141
      %v1761 = vpop.f32.mrb[0].mxu0
      %v1762 = vadd.f32 0.0, %v1761
      %v1763 = vpop.f32.mrb[0].mxu0
      %1764 = vmatprep.mubr.f32.mxu0 0.0
      %1765 = vmatmul.mubr.f32.gmra.mrb[0].mxu0 %v1143
      %v1766 = vpop.f32.mrb[0].mxu0
      %v1767 = vadd.f32 0.0, %v1766
      %v1768 = vpop.f32.mrb[0].mxu0
      %1769 = vmatprep.mubr.f32.mxu0 0.0
      %1770 = vmatmul.mubr.f32.gmra.mrb[0].mxu0 %v1145
      %v1771 = vpop.f32.mrb[0].mxu0
      %v1772 = vadd.f32 0.0, %v1771
      %v1773 = vpop.f32.mrb[0].mxu0
      %1774 = vmatprep.mubr.f32.mxu0 0.0
      %1775 = vmatmul.mubr.f32.gmra.mrb[0].mxu0 %v1147
      %v1776 = vpop.f32.mrb[0].mxu0
      %v1777 = vadd.f32 0.0, %v1776
      %v1778 = vpop.f32.mrb[0].mxu0
      %1779 = vmatprep.mubr.f32.mxu0 0.0
      %1780 = vmatmul.mubr.f32.gmra.mrb[0].mxu0 %v1149
      %v1781 = vpop.f32.mrb[0].mxu0
      %v1782 = vadd.f32 0.0, %v1781
      %v1783 = vpop.f32.mrb[0].mxu0
      %1784 = vmatprep.mubr.f32.mxu0 0.0
      %1785 = vmatmul.mubr.f32.gmra.mrb[0].mxu0 %v1151
      %v1786 = vpop.f32.mrb[0].mxu0
      %v1787 = vadd.f32 0.0, %v1786
      %v1788 = vpop.f32.mrb[0].mxu0
      %1789 = vmatprep.mubr.f32.mxu0 0.0
      %1790 = vmatmul.mubr.f32.gmra.mrb[0].mxu0 %v1153
      %v1791 = vpop.f32.mrb[0].mxu0
      %v1792 = vadd.f32 0.0, %v1791
      %v1793 = vpop.f32.mrb[0].mxu0
      %1794 = vmatprep.mubr.f32.mxu0 0.0
      %1795 = vmatmul.mubr.f32.gmra.mrb[0].mxu0 %v1155
      %v1796 = vpop.f32.mrb[0].mxu0
      %v1797 = vadd.f32 0.0, %v1796
      %v1798 = vpop.f32.mrb[0].mxu0
      %1799 = vmatprep.mubr.f32.mxu0 0.0
      %1800 = vmatmul.mubr.f32.gmra.mrb[0].mxu0 %v1661
      %v1801 = vpop.f32.mrb[0].mxu0
      %v1802 = vadd.f32 0.0, %v1801
      %v1803 = vpop.f32.mrb[0].mxu0
      %1804 = vmatprep.mubr.f32.mxu0 0.0
      %1805 = vmatmul.mubr.f32.gmra.mrb[0].mxu0 %v1663
      %v1806 = vpop.f32.mrb[0].mxu0
      %v1807 = vadd.f32 0.0, %v1806
      %v1808 = vpop.f32.mrb[0].mxu0
      %1809 = vdwg.mxu0
      %v1810 = vadd.f32 %v1640, %v1732
      %v1811 = vadd.f32 %v1641, %v1737
      %v1812 = vadd.f32 %v1642, %v1742
      %v1813 = vadd.f32 %v1643, %v1747
      %v1814 = vadd.f32 %v1644, %v1752
      %v1815 = vadd.f32 %v1645, %v1757
      %v1816 = vadd.f32 %v1646, %v1762
      %v1817 = vadd.f32 %v1647, %v1767
      %v1818 = vadd.f32 %v1648, %v1772
      %v1819 = vadd.f32 %v1649, %v1777
      %v1820 = vadd.f32 %v1650, %v1782
      %v1821 = vadd.f32 %v1651, %v1787
      %v1822 = vadd.f32 %v1652, %v1792
      %v1823 = vadd.f32 %v1653, %v1797
      %v1824 = vadd.f32 %v1654, %v1802
      %v1825 = vadd.f32 %v1655, %v1807
      %v1827 = vsel %vm729, %v652, 0
      %v1830 = vsel %vm729, %v653, 0
      %1832 = vmatprep.subr.mxu0 0.0
      %1833 = vmatpush1.msra.mxu0 %v661
      %1834 = vmatprep.subr.mxu0 0.0
      %1835 = vmatpush1.msra.mxu0 0.0
      %1836 = vmatprep.subr.mxu0 0.0
      %1837 = vmatpush1.msra.mxu0 0.0
      %1838 = vmatprep.subr.mxu0 0.0
      %1839 = vmatpush1.msra.mxu0 0.0
      %1840 = vmatprep.subr.mxu0 0.0
      %1841 = vmatpush1.msra.mxu0 0.0
      %1842 = vmatprep.subr.mxu0 0.0
      %1843 = vmatpush1.msra.mxu0 0.0
      %1844 = vmatprep.subr.mxu0 0.0
      %1845 = vmatpush1.msra.mxu0 0.0
      %1846 = vmatprep.subr.mxu0 0.0
      %1847 = vmatpush1.msra.mxu0 0.0
      %1848 = vmatprep.subr.mxu0 0.0
      %1849 = vmatpush1.msra.mxu0 0.0
      %1850 = vmatprep.subr.mxu0 0.0
      %1851 = vmatpush1.msra.mxu0 0.0
      %1852 = vmatprep.subr.mxu0 0.0
      %1853 = vmatpush1.msra.mxu0 0.0
      %1854 = vmatprep.subr.mxu0 0.0
      %1855 = vmatpush1.msra.mxu0 0.0
      %1856 = vmatprep.subr.mxu0 0.0
      %1857 = vmatpush1.msra.mxu0 0.0
      %1858 = vmatprep.subr.mxu0 0.0
      %1859 = vmatpush1.msra.mxu0 0.0
      %1860 = vmatprep.subr.mxu0 0.0
      %1861 = vmatpush1.msra.mxu0 0.0
      %1862 = vmatprep.subr.mxu0 0.0
      %1863 = vmatpush1.msra.mxu0 0.0
      %1864 = vmatprep.subr.mxu0 0.0
      %1865 = vmatpush1.msra.mxu0 0.0
      %1866 = vmatprep.subr.mxu0 0.0
      %1867 = vmatpush1.msra.mxu0 0.0
      %1868 = vmatprep.subr.mxu0 0.0
      %1869 = vmatpush1.msra.mxu0 0.0
      %1870 = vmatprep.subr.mxu0 0.0
      %1871 = vmatpush1.msra.mxu0 0.0
      %1872 = vmatprep.subr.mxu0 0.0
      %1873 = vmatpush1.msra.mxu0 0.0
      %1874 = vmatprep.subr.mxu0 0.0
      %1875 = vmatpush1.msra.mxu0 0.0
      %1876 = vmatprep.subr.mxu0 0.0
      %1877 = vmatpush1.msra.mxu0 0.0
      %1878 = vmatprep.subr.mxu0 0.0
      %1879 = vmatpush1.msra.mxu0 0.0
      %1880 = vmatprep.subr.mxu0 0.0
      %1881 = vmatpush1.msra.mxu0 0.0
      %1882 = vmatprep.subr.mxu0 0.0
      %1883 = vmatpush1.msra.mxu0 0.0
      %1884 = vmatprep.subr.mxu0 0.0
      %1885 = vmatpush1.msra.mxu0 0.0
      %1886 = vmatprep.subr.mxu0 0.0
      %1887 = vmatpush1.msra.mxu0 0.0
      %1888 = vmatprep.subr.mxu0 0.0
      %1889 = vmatpush1.msra.mxu0 0.0
      %1890 = vmatprep.subr.mxu0 0.0
      %1891 = vmatpush1.msra.mxu0 0.0
      %1892 = vmatprep.subr.mxu0 0.0
      %1893 = vmatpush1.msra.mxu0 0.0
      %1894 = vmatprep.subr.mxu0 0.0
      %1895 = vmatpush1.msra.mxu0 0.0
      %1896 = vmatprep.mubr.f32.mxu0 0.0
      %1897 = vmatmul.mubr.f32.gmra.mrb[0].mxu0 %v915
      %v1898 = vpop.f32.mrb[0].mxu0
      %v1899 = vadd.f32 0.0, %v1898
      %v1900 = vpop.f32.mrb[0].mxu0
      %1901 = vmatprep.mubr.f32.mxu0 0.0
      %1902 = vmatmul.mubr.f32.gmra.mrb[0].mxu0 %v917
      %v1903 = vpop.f32.mrb[0].mxu0
      %v1904 = vadd.f32 0.0, %v1903
      %v1905 = vpop.f32.mrb[0].mxu0
      %1906 = vmatprep.mubr.f32.mxu0 0.0
      %1907 = vmatmul.mubr.f32.gmra.mrb[0].mxu0 %v919
      %v1908 = vpop.f32.mrb[0].mxu0
      %v1909 = vadd.f32 0.0, %v1908
      %v1910 = vpop.f32.mrb[0].mxu0
      %1911 = vmatprep.mubr.f32.mxu0 0.0
      %1912 = vmatmul.mubr.f32.gmra.mrb[0].mxu0 %v921
      %v1913 = vpop.f32.mrb[0].mxu0
      %v1914 = vadd.f32 0.0, %v1913
      %v1915 = vpop.f32.mrb[0].mxu0
      %1916 = vmatprep.mubr.f32.mxu0 0.0
      %1917 = vmatmul.mubr.f32.gmra.mrb[0].mxu0 %v923
      %v1918 = vpop.f32.mrb[0].mxu0
      %v1919 = vadd.f32 0.0, %v1918
      %v1920 = vpop.f32.mrb[0].mxu0
      %1921 = vmatprep.mubr.f32.mxu0 0.0
      %1922 = vmatmul.mubr.f32.gmra.mrb[0].mxu0 %v925
      %v1923 = vpop.f32.mrb[0].mxu0
      %v1924 = vadd.f32 0.0, %v1923
      %v1925 = vpop.f32.mrb[0].mxu0
      %1926 = vmatprep.mubr.f32.mxu0 0.0
      %1927 = vmatmul.mubr.f32.gmra.mrb[0].mxu0 %v927
      %v1928 = vpop.f32.mrb[0].mxu0
      %v1929 = vadd.f32 0.0, %v1928
      %v1930 = vpop.f32.mrb[0].mxu0
      %1931 = vmatprep.mubr.f32.mxu0 0.0
      %1932 = vmatmul.mubr.f32.gmra.mrb[0].mxu0 %v929
      %v1933 = vpop.f32.mrb[0].mxu0
      %v1934 = vadd.f32 0.0, %v1933
      %v1935 = vpop.f32.mrb[0].mxu0
      %1936 = vmatprep.mubr.f32.mxu0 0.0
      %1937 = vmatmul.mubr.f32.gmra.mrb[0].mxu0 %v931
      %v1938 = vpop.f32.mrb[0].mxu0
      %v1939 = vadd.f32 0.0, %v1938
      %v1940 = vpop.f32.mrb[0].mxu0
      %1941 = vmatprep.mubr.f32.mxu0 0.0
      %1942 = vmatmul.mubr.f32.gmra.mrb[0].mxu0 %v933
      %v1943 = vpop.f32.mrb[0].mxu0
      %v1944 = vadd.f32 0.0, %v1943
      %v1945 = vpop.f32.mrb[0].mxu0
      %1946 = vmatprep.mubr.f32.mxu0 0.0
      %1947 = vmatmul.mubr.f32.gmra.mrb[0].mxu0 %v935
      %v1948 = vpop.f32.mrb[0].mxu0
      %v1949 = vadd.f32 0.0, %v1948
      %v1950 = vpop.f32.mrb[0].mxu0
      %1951 = vmatprep.mubr.f32.mxu0 0.0
      %1952 = vmatmul.mubr.f32.gmra.mrb[0].mxu0 %v937
      %v1953 = vpop.f32.mrb[0].mxu0
      %v1954 = vadd.f32 0.0, %v1953
      %v1955 = vpop.f32.mrb[0].mxu0
      %1956 = vmatprep.mubr.f32.mxu0 0.0
      %1957 = vmatmul.mubr.f32.gmra.mrb[0].mxu0 %v1319
      %v1958 = vpop.f32.mrb[0].mxu0
      %v1959 = vadd.f32 0.0, %v1958
      %v1960 = vpop.f32.mrb[0].mxu0
      %1961 = vmatprep.mubr.f32.mxu0 0.0
      %1962 = vmatmul.mubr.f32.gmra.mrb[0].mxu0 %v1322
      %v1963 = vpop.f32.mrb[0].mxu0
      %v1964 = vadd.f32 0.0, %v1963
      %v1965 = vpop.f32.mrb[0].mxu0
      %1966 = vmatprep.mubr.f32.mxu0 0.0
      %1967 = vmatmul.mubr.f32.gmra.mrb[0].mxu0 %v1827
      %v1968 = vpop.f32.mrb[0].mxu0
      %v1969 = vadd.f32 0.0, %v1968
      %v1970 = vpop.f32.mrb[0].mxu0
      %1971 = vmatprep.mubr.f32.mxu0 0.0
      %1972 = vmatmul.mubr.f32.gmra.mrb[0].mxu0 %v1830
      %v1973 = vpop.f32.mrb[0].mxu0
      %v1974 = vadd.f32 0.0, %v1973
      %v1975 = vpop.f32.mrb[0].mxu0
      %1976 = vdwg.mxu0
      %v1977 = vadd.f32 %v1810, %v1899
      %v1978 = vadd.f32 %v1811, %v1904
      %v1979 = vadd.f32 %v1812, %v1909
      %v1980 = vadd.f32 %v1813, %v1914
      %v1981 = vadd.f32 %v1814, %v1919
      %v1982 = vadd.f32 %v1815, %v1924
      %v1983 = vadd.f32 %v1816, %v1929
      %v1984 = vadd.f32 %v1817, %v1934
      %v1985 = vadd.f32 %v1818, %v1939
      %v1986 = vadd.f32 %v1819, %v1944
      %v1987 = vadd.f32 %v1820, %v1949
      %v1988 = vadd.f32 %v1821, %v1954
      %v1989 = vadd.f32 %v1822, %v1959
      %v1990 = vadd.f32 %v1823, %v1964
      %v1991 = vadd.f32 %v1824, %v1969
      %v1992 = vadd.f32 %v1825, %v1974
      %v1994 = vrot.slane %v652, 1
      %v1995 = vrot.slane %v653, 1
      %v1996 = vsel %vm688, %v1994, %v1995
      %v1997 = vrot.slane %v654, 1
      %v1998 = vsel %vm688, %v1995, %v1997
      %v1999 = vsel %vm729, %v1996, 0
      %v2001 = vsel %vm729, %v1998, 0
      %2003 = vmatprep.subr.mxu0 0.0
      %2004 = vmatpush1.msra.mxu0 %v662
      %2005 = vmatprep.subr.mxu0 0.0
      %2006 = vmatpush1.msra.mxu0 0.0
      %2007 = vmatprep.subr.mxu0 0.0
      %2008 = vmatpush1.msra.mxu0 0.0
      %2009 = vmatprep.subr.mxu0 0.0
      %2010 = vmatpush1.msra.mxu0 0.0
      %2011 = vmatprep.subr.mxu0 0.0
      %2012 = vmatpush1.msra.mxu0 0.0
      %2013 = vmatprep.subr.mxu0 0.0
      %2014 = vmatpush1.msra.mxu0 0.0
      %2015 = vmatprep.subr.mxu0 0.0
      %2016 = vmatpush1.msra.mxu0 0.0
      %2017 = vmatprep.subr.mxu0 0.0
      %2018 = vmatpush1.msra.mxu0 0.0
      %2019 = vmatprep.subr.mxu0 0.0
      %2020 = vmatpush1.msra.mxu0 0.0
      %2021 = vmatprep.subr.mxu0 0.0
      %2022 = vmatpush1.msra.mxu0 0.0
      %2023 = vmatprep.subr.mxu0 0.0
      %2024 = vmatpush1.msra.mxu0 0.0
      %2025 = vmatprep.subr.mxu0 0.0
      %2026 = vmatpush1.msra.mxu0 0.0
      %2027 = vmatprep.subr.mxu0 0.0
      %2028 = vmatpush1.msra.mxu0 0.0
      %2029 = vmatprep.subr.mxu0 0.0
      %2030 = vmatpush1.msra.mxu0 0.0
      %2031 = vmatprep.subr.mxu0 0.0
      %2032 = vmatpush1.msra.mxu0 0.0
      %2033 = vmatprep.subr.mxu0 0.0
      %2034 = vmatpush1.msra.mxu0 0.0
      %2035 = vmatprep.subr.mxu0 0.0
      %2036 = vmatpush1.msra.mxu0 0.0
      %2037 = vmatprep.subr.mxu0 0.0
      %2038 = vmatpush1.msra.mxu0 0.0
      %2039 = vmatprep.subr.mxu0 0.0
      %2040 = vmatpush1.msra.mxu0 0.0
      %2041 = vmatprep.subr.mxu0 0.0
      %2042 = vmatpush1.msra.mxu0 0.0
      %2043 = vmatprep.subr.mxu0 0.0
      %2044 = vmatpush1.msra.mxu0 0.0
      %2045 = vmatprep.subr.mxu0 0.0
      %2046 = vmatpush1.msra.mxu0 0.0
      %2047 = vmatprep.subr.mxu0 0.0
      %2048 = vmatpush1.msra.mxu0 0.0
      %2049 = vmatprep.subr.mxu0 0.0
      %2050 = vmatpush1.msra.mxu0 0.0
      %2051 = vmatprep.subr.mxu0 0.0
      %2052 = vmatpush1.msra.mxu0 0.0
      %2053 = vmatprep.subr.mxu0 0.0
      %2054 = vmatpush1.msra.mxu0 0.0
      %2055 = vmatprep.subr.mxu0 0.0
      %2056 = vmatpush1.msra.mxu0 0.0
      %2057 = vmatprep.subr.mxu0 0.0
      %2058 = vmatpush1.msra.mxu0 0.0
      %2059 = vmatprep.subr.mxu0 0.0
      %2060 = vmatpush1.msra.mxu0 0.0
      %2061 = vmatprep.subr.mxu0 0.0
      %2062 = vmatpush1.msra.mxu0 0.0
      %2063 = vmatprep.subr.mxu0 0.0
      %2064 = vmatpush1.msra.mxu0 0.0
      %2065 = vmatprep.subr.mxu0 0.0
      %2066 = vmatpush1.msra.mxu0 0.0
      %2067 = vmatprep.mubr.f32.mxu0 0.0
      %2068 = vmatmul.mubr.f32.gmra.mrb[0].mxu0 %v738
      %v2069 = vpop.f32.mrb[0].mxu0
      %v2070 = vadd.f32 0.0, %v2069
      %v2071 = vpop.f32.mrb[0].mxu0
      %2072 = vmatprep.mubr.f32.mxu0 0.0
      %2073 = vmatmul.mubr.f32.gmra.mrb[0].mxu0 %v740
      %v2074 = vpop.f32.mrb[0].mxu0
      %v2075 = vadd.f32 0.0, %v2074
      %v2076 = vpop.f32.mrb[0].mxu0
      %2077 = vmatprep.mubr.f32.mxu0 0.0
      %2078 = vmatmul.mubr.f32.gmra.mrb[0].mxu0 %v742
      %v2079 = vpop.f32.mrb[0].mxu0
      %v2080 = vadd.f32 0.0, %v2079
      %v2081 = vpop.f32.mrb[0].mxu0
      %2082 = vmatprep.mubr.f32.mxu0 0.0
      %2083 = vmatmul.mubr.f32.gmra.mrb[0].mxu0 %v744
      %v2084 = vpop.f32.mrb[0].mxu0
      %v2085 = vadd.f32 0.0, %v2084
      %v2086 = vpop.f32.mrb[0].mxu0
      %2087 = vmatprep.mubr.f32.mxu0 0.0
      %2088 = vmatmul.mubr.f32.gmra.mrb[0].mxu0 %v746
      %v2089 = vpop.f32.mrb[0].mxu0
      %v2090 = vadd.f32 0.0, %v2089
      %v2091 = vpop.f32.mrb[0].mxu0
      %2092 = vmatprep.mubr.f32.mxu0 0.0
      %2093 = vmatmul.mubr.f32.gmra.mrb[0].mxu0 %v748
      %v2094 = vpop.f32.mrb[0].mxu0
      %v2095 = vadd.f32 0.0, %v2094
      %v2096 = vpop.f32.mrb[0].mxu0
      %2097 = vmatprep.mubr.f32.mxu0 0.0
      %2098 = vmatmul.mubr.f32.gmra.mrb[0].mxu0 %v750
      %v2099 = vpop.f32.mrb[0].mxu0
      %v2100 = vadd.f32 0.0, %v2099
      %v2101 = vpop.f32.mrb[0].mxu0
      %2102 = vmatprep.mubr.f32.mxu0 0.0
      %2103 = vmatmul.mubr.f32.gmra.mrb[0].mxu0 %v752
      %v2104 = vpop.f32.mrb[0].mxu0
      %v2105 = vadd.f32 0.0, %v2104
      %v2106 = vpop.f32.mrb[0].mxu0
      %2107 = vmatprep.mubr.f32.mxu0 0.0
      %2108 = vmatmul.mubr.f32.gmra.mrb[0].mxu0 %v754
      %v2109 = vpop.f32.mrb[0].mxu0
      %v2110 = vadd.f32 0.0, %v2109
      %v2111 = vpop.f32.mrb[0].mxu0
      %2112 = vmatprep.mubr.f32.mxu0 0.0
      %2113 = vmatmul.mubr.f32.gmra.mrb[0].mxu0 %v756
      %v2114 = vpop.f32.mrb[0].mxu0
      %v2115 = vadd.f32 0.0, %v2114
      %v2116 = vpop.f32.mrb[0].mxu0
      %2117 = vmatprep.mubr.f32.mxu0 0.0
      %2118 = vmatmul.mubr.f32.gmra.mrb[0].mxu0 %v758
      %v2119 = vpop.f32.mrb[0].mxu0
      %v2120 = vadd.f32 0.0, %v2119
      %v2121 = vpop.f32.mrb[0].mxu0
      %2122 = vmatprep.mubr.f32.mxu0 0.0
      %2123 = vmatmul.mubr.f32.gmra.mrb[0].mxu0 %v760
      %v2124 = vpop.f32.mrb[0].mxu0
      %v2125 = vadd.f32 0.0, %v2124
      %v2126 = vpop.f32.mrb[0].mxu0
      %2127 = vmatprep.mubr.f32.mxu0 0.0
      %2128 = vmatmul.mubr.f32.gmra.mrb[0].mxu0 %v1491
      %v2129 = vpop.f32.mrb[0].mxu0
      %v2130 = vadd.f32 0.0, %v2129
      %v2131 = vpop.f32.mrb[0].mxu0
      %2132 = vmatprep.mubr.f32.mxu0 0.0
      %2133 = vmatmul.mubr.f32.gmra.mrb[0].mxu0 %v1493
      %v2134 = vpop.f32.mrb[0].mxu0
      %v2135 = vadd.f32 0.0, %v2134
      %v2136 = vpop.f32.mrb[0].mxu0
      %2137 = vmatprep.mubr.f32.mxu0 0.0
      %2138 = vmatmul.mubr.f32.gmra.mrb[0].mxu0 %v1999
      %v2139 = vpop.f32.mrb[0].mxu0
      %v2140 = vadd.f32 0.0, %v2139
      %v2141 = vpop.f32.mrb[0].mxu0
      %2142 = vmatprep.mubr.f32.mxu0 0.0
      %2143 = vmatmul.mubr.f32.gmra.mrb[0].mxu0 %v2001
      %v2144 = vpop.f32.mrb[0].mxu0
      %v2145 = vadd.f32 0.0, %v2144
      %v2146 = vpop.f32.mrb[0].mxu0
      %2147 = vdwg.mxu0
      %v2148 = vadd.f32 %v1977, %v2070
      %v2149 = vadd.f32 %v1978, %v2075
      %v2150 = vadd.f32 %v1979, %v2080
      %v2151 = vadd.f32 %v1980, %v2085
      %v2152 = vadd.f32 %v1981, %v2090
      %v2153 = vadd.f32 %v1982, %v2095
      %v2154 = vadd.f32 %v1983, %v2100
      %v2155 = vadd.f32 %v1984, %v2105
      %v2156 = vadd.f32 %v1985, %v2110
      %v2157 = vadd.f32 %v1986, %v2115
      %v2158 = vadd.f32 %v1987, %v2120
      %v2159 = vadd.f32 %v1988, %v2125
      %v2160 = vadd.f32 %v1989, %v2130
      %v2161 = vadd.f32 %v1990, %v2135
      %v2162 = vadd.f32 %v1991, %v2140
      %v2163 = vadd.f32 %v1992, %v2145
      %v2164 = vrot.slane %v652, 2
      %v2165 = vrot.slane %v653, 2
      %v2166 = vsel %vm1084, %v2164, %v2165
      %v2167 = vrot.slane %v654, 2
      %v2168 = vsel %vm1084, %v2165, %v2167
      %v2169 = vsel %vm729, %v2166, 0
      %v2171 = vsel %vm729, %v2168, 0
      %2173 = vmatprep.subr.mxu0 0.0
      %2174 = vmatpush1.msra.mxu0 %v663
      %2175 = vmatprep.subr.mxu0 0.0
      %2176 = vmatpush1.msra.mxu0 0.0
      %2177 = vmatprep.subr.mxu0 0.0
      %2178 = vmatpush1.msra.mxu0 0.0
      %2179 = vmatprep.subr.mxu0 0.0
      %2180 = vmatpush1.msra.mxu0 0.0
      %2181 = vmatprep.subr.mxu0 0.0
      %2182 = vmatpush1.msra.mxu0 0.0
      %2183 = vmatprep.subr.mxu0 0.0
      %2184 = vmatpush1.msra.mxu0 0.0
      %2185 = vmatprep.subr.mxu0 0.0
      %2186 = vmatpush1.msra.mxu0 0.0
      %2187 = vmatprep.subr.mxu0 0.0
      %2188 = vmatpush1.msra.mxu0 0.0
      %2189 = vmatprep.subr.mxu0 0.0
      %2190 = vmatpush1.msra.mxu0 0.0
      %2191 = vmatprep.subr.mxu0 0.0
      %2192 = vmatpush1.msra.mxu0 0.0
      %2193 = vmatprep.subr.mxu0 0.0
      %2194 = vmatpush1.msra.mxu0 0.0
      %2195 = vmatprep.subr.mxu0 0.0
      %2196 = vmatpush1.msra.mxu0 0.0
      %2197 = vmatprep.subr.mxu0 0.0
      %2198 = vmatpush1.msra.mxu0 0.0
      %2199 = vmatprep.subr.mxu0 0.0
      %2200 = vmatpush1.msra.mxu0 0.0
      %2201 = vmatprep.subr.mxu0 0.0
      %2202 = vmatpush1.msra.mxu0 0.0
      %2203 = vmatprep.subr.mxu0 0.0
      %2204 = vmatpush1.msra.mxu0 0.0
      %2205 = vmatprep.subr.mxu0 0.0
      %2206 = vmatpush1.msra.mxu0 0.0
      %2207 = vmatprep.subr.mxu0 0.0
      %2208 = vmatpush1.msra.mxu0 0.0
      %2209 = vmatprep.subr.mxu0 0.0
      %2210 = vmatpush1.msra.mxu0 0.0
      %2211 = vmatprep.subr.mxu0 0.0
      %2212 = vmatpush1.msra.mxu0 0.0
      %2213 = vmatprep.subr.mxu0 0.0
      %2214 = vmatpush1.msra.mxu0 0.0
      %2215 = vmatprep.subr.mxu0 0.0
      %2216 = vmatpush1.msra.mxu0 0.0
      %2217 = vmatprep.subr.mxu0 0.0
      %2218 = vmatpush1.msra.mxu0 0.0
      %2219 = vmatprep.subr.mxu0 0.0
      %2220 = vmatpush1.msra.mxu0 0.0
      %2221 = vmatprep.subr.mxu0 0.0
      %2222 = vmatpush1.msra.mxu0 0.0
      %2223 = vmatprep.subr.mxu0 0.0
      %2224 = vmatpush1.msra.mxu0 0.0
      %2225 = vmatprep.subr.mxu0 0.0
      %2226 = vmatpush1.msra.mxu0 0.0
      %2227 = vmatprep.subr.mxu0 0.0
      %2228 = vmatpush1.msra.mxu0 0.0
      %2229 = vmatprep.subr.mxu0 0.0
      %2230 = vmatpush1.msra.mxu0 0.0
      %2231 = vmatprep.subr.mxu0 0.0
      %2232 = vmatpush1.msra.mxu0 0.0
      %2233 = vmatprep.subr.mxu0 0.0
      %2234 = vmatpush1.msra.mxu0 0.0
      %2235 = vmatprep.subr.mxu0 0.0
      %2236 = vmatpush1.msra.mxu0 0.0
      %2237 = vmatprep.mubr.f32.mxu0 0.0
      %2238 = vmatmul.mubr.f32.gmra.mrb[0].mxu0 %v1133
      %v2239 = vpop.f32.mrb[0].mxu0
      %v2240 = vadd.f32 0.0, %v2239
      %v2241 = vpop.f32.mrb[0].mxu0
      %2242 = vmatprep.mubr.f32.mxu0 0.0
      %2243 = vmatmul.mubr.f32.gmra.mrb[0].mxu0 %v1135
      %v2244 = vpop.f32.mrb[0].mxu0
      %v2245 = vadd.f32 0.0, %v2244
      %v2246 = vpop.f32.mrb[0].mxu0
      %2247 = vmatprep.mubr.f32.mxu0 0.0
      %2248 = vmatmul.mubr.f32.gmra.mrb[0].mxu0 %v1137
      %v2249 = vpop.f32.mrb[0].mxu0
      %v2250 = vadd.f32 0.0, %v2249
      %v2251 = vpop.f32.mrb[0].mxu0
      %2252 = vmatprep.mubr.f32.mxu0 0.0
      %2253 = vmatmul.mubr.f32.gmra.mrb[0].mxu0 %v1139
      %v2254 = vpop.f32.mrb[0].mxu0
      %v2255 = vadd.f32 0.0, %v2254
      %v2256 = vpop.f32.mrb[0].mxu0
      %2257 = vmatprep.mubr.f32.mxu0 0.0
      %2258 = vmatmul.mubr.f32.gmra.mrb[0].mxu0 %v1141
      %v2259 = vpop.f32.mrb[0].mxu0
      %v2260 = vadd.f32 0.0, %v2259
      %v2261 = vpop.f32.mrb[0].mxu0
      %2262 = vmatprep.mubr.f32.mxu0 0.0
      %2263 = vmatmul.mubr.f32.gmra.mrb[0].mxu0 %v1143
      %v2264 = vpop.f32.mrb[0].mxu0
      %v2265 = vadd.f32 0.0, %v2264
      %v2266 = vpop.f32.mrb[0].mxu0
      %2267 = vmatprep.mubr.f32.mxu0 0.0
      %2268 = vmatmul.mubr.f32.gmra.mrb[0].mxu0 %v1145
      %v2269 = vpop.f32.mrb[0].mxu0
      %v2270 = vadd.f32 0.0, %v2269
      %v2271 = vpop.f32.mrb[0].mxu0
      %2272 = vmatprep.mubr.f32.mxu0 0.0
      %2273 = vmatmul.mubr.f32.gmra.mrb[0].mxu0 %v1147
      %v2274 = vpop.f32.mrb[0].mxu0
      %v2275 = vadd.f32 0.0, %v2274
      %v2276 = vpop.f32.mrb[0].mxu0
      %2277 = vmatprep.mubr.f32.mxu0 0.0
      %2278 = vmatmul.mubr.f32.gmra.mrb[0].mxu0 %v1149
      %v2279 = vpop.f32.mrb[0].mxu0
      %v2280 = vadd.f32 0.0, %v2279
      %v2281 = vpop.f32.mrb[0].mxu0
      %2282 = vmatprep.mubr.f32.mxu0 0.0
      %2283 = vmatmul.mubr.f32.gmra.mrb[0].mxu0 %v1151
      %v2284 = vpop.f32.mrb[0].mxu0
      %v2285 = vadd.f32 0.0, %v2284
      %v2286 = vpop.f32.mrb[0].mxu0
      %2287 = vmatprep.mubr.f32.mxu0 0.0
      %2288 = vmatmul.mubr.f32.gmra.mrb[0].mxu0 %v1153
      %v2289 = vpop.f32.mrb[0].mxu0
      %v2290 = vadd.f32 0.0, %v2289
      %v2291 = vpop.f32.mrb[0].mxu0
      %2292 = vmatprep.mubr.f32.mxu0 0.0
      %2293 = vmatmul.mubr.f32.gmra.mrb[0].mxu0 %v1155
      %v2294 = vpop.f32.mrb[0].mxu0
      %v2295 = vadd.f32 0.0, %v2294
      %v2296 = vpop.f32.mrb[0].mxu0
      %2297 = vmatprep.mubr.f32.mxu0 0.0
      %2298 = vmatmul.mubr.f32.gmra.mrb[0].mxu0 %v1661
      %v2299 = vpop.f32.mrb[0].mxu0
      %v2300 = vadd.f32 0.0, %v2299
      %v2301 = vpop.f32.mrb[0].mxu0
      %2302 = vmatprep.mubr.f32.mxu0 0.0
      %2303 = vmatmul.mubr.f32.gmra.mrb[0].mxu0 %v1663
      %v2304 = vpop.f32.mrb[0].mxu0
      %v2305 = vadd.f32 0.0, %v2304
      %v2306 = vpop.f32.mrb[0].mxu0
      %2307 = vmatprep.mubr.f32.mxu0 0.0
      %2308 = vmatmul.mubr.f32.gmra.mrb[0].mxu0 %v2169
      %v2309 = vpop.f32.mrb[0].mxu0
      %v2310 = vadd.f32 0.0, %v2309
      %v2311 = vpop.f32.mrb[0].mxu0
      %2312 = vmatprep.mubr.f32.mxu0 0.0
      %2313 = vmatmul.mubr.f32.gmra.mrb[0].mxu0 %v2171
      %v2314 = vpop.f32.mrb[0].mxu0
      %v2315 = vadd.f32 0.0, %v2314
      %v2316 = vpop.f32.mrb[0].mxu0
      %2317 = vdwg.mxu0
      %v2318 = vadd.f32 %v2148, %v2240
      %v2319 = vadd.f32 %v2149, %v2245
      %v2320 = vadd.f32 %v2150, %v2250
      %v2321 = vadd.f32 %v2151, %v2255
      %v2322 = vadd.f32 %v2152, %v2260
      %v2323 = vadd.f32 %v2153, %v2265
      %v2324 = vadd.f32 %v2154, %v2270
      %v2325 = vadd.f32 %v2155, %v2275
      %v2326 = vadd.f32 %v2156, %v2280
      %v2327 = vadd.f32 %v2157, %v2285
      %v2328 = vadd.f32 %v2158, %v2290
      %v2329 = vadd.f32 %v2159, %v2295
      %v2330 = vadd.f32 %v2160, %v2300
      %v2331 = vadd.f32 %v2161, %v2305
      %v2332 = vadd.f32 %v2162, %v2310
      %v2333 = vadd.f32 %v2163, %v2315
      %v2334 = vld [vmem:[%s440] sm:$0xff]
      %v2335 = vld [vmem:[%s440 + $0x8] sm:$0xff]
      %v2336 = vld [vmem:[%s440 + $0x10] sm:$0xff]
      %v2337 = vld [vmem:[%s440 + $0x18] sm:$0xff]
      %v2338 = vld [vmem:[%s440 + $0x20] sm:$0xff]
      %v2339 = vld [vmem:[%s440 + $0x28] sm:$0xff]
      %v2340 = vld [vmem:[%s440 + $0x30] sm:$0xff]
      %v2341 = vld [vmem:[%s440 + $0x38] sm:$0xff]
      %v2342 = vld [vmem:[%s440 + $0x40] sm:$0xff]
      %v2343 = vld [vmem:[%s440 + $0x48] sm:$0xff]
      %v2344 = vld [vmem:[%s440 + $0x50] sm:$0xff]
      %v2345 = vld [vmem:[%s440 + $0x58] sm:$0xff]
      %v2346 = vld [vmem:[%s440 + $0x60] sm:$0xff]
      %v2347 = vld [vmem:[%s440 + $0x68] sm:$0xff]
      %v2348 = vld [vmem:[%s440 + $0x70] sm:$0xff]
      %v2349 = vld [vmem:[%s440 + $0x78] sm:$0xff]
      %v2350 = vadd.f32 %v2318, %v2334
      %v2351 = vadd.f32 %v2319, %v2335
      %v2352 = vadd.f32 %v2320, %v2336
      %v2353 = vadd.f32 %v2321, %v2337
      %v2354 = vadd.f32 %v2322, %v2338
      %v2355 = vadd.f32 %v2323, %v2339
      %v2356 = vadd.f32 %v2324, %v2340
      %v2357 = vadd.f32 %v2325, %v2341
      %v2358 = vadd.f32 %v2326, %v2342
      %v2359 = vadd.f32 %v2327, %v2343
      %v2360 = vadd.f32 %v2328, %v2344
      %v2361 = vadd.f32 %v2329, %v2345
      %v2362 = vadd.f32 %v2330, %v2346
      %v2363 = vadd.f32 %v2331, %v2347
      %v2364 = vadd.f32 %v2332, %v2348
      %v2365 = vadd.f32 %v2333, %v2349
      %2366 = vmatprep.subr.mxu0 0.0
      %2367 = vmatpush1.msra.mxu0 %v2350
      %2368 = vmatprep.subr.mxu0 0.0
      %2369 = vmatpush1.msra.mxu0 %v2351
      %2370 = vmatprep.subr.mxu0 0.0
      %2371 = vmatpush1.msra.mxu0 %v2352
      %2372 = vmatprep.subr.mxu0 0.0
      %2373 = vmatpush1.msra.mxu0 %v2353
      %2374 = vmatprep.subr.mxu0 0.0
      %2375 = vmatpush1.msra.mxu0 %v2354
      %2376 = vmatprep.subr.mxu0 0.0
      %2377 = vmatpush1.msra.mxu0 %v2355
      %2378 = vmatprep.subr.mxu0 0.0
      %2379 = vmatpush1.msra.mxu0 %v2356
      %2380 = vmatprep.subr.mxu0 0.0
      %2381 = vmatpush1.msra.mxu0 %v2357
      %2382 = vmatprep.subr.mxu0 0.0
      %2383 = vmatpush1.msra.mxu0 %v2358
      %2384 = vmatprep.subr.mxu0 0.0
      %2385 = vmatpush1.msra.mxu0 %v2359
      %2386 = vmatprep.subr.mxu0 0.0
      %2387 = vmatpush1.msra.mxu0 %v2360
      %2388 = vmatprep.subr.mxu0 0.0
      %2389 = vmatpush1.msra.mxu0 %v2361
      %2390 = vmatprep.subr.mxu0 0.0
      %2391 = vmatpush1.msra.mxu0 %v2362
      %2392 = vmatprep.subr.mxu0 0.0
      %2393 = vmatpush1.msra.mxu0 %v2363
      %2394 = vmatprep.subr.mxu0 0.0
      %2395 = vmatpush1.msra.mxu0 %v2364
      %2396 = vmatprep.subr.mxu0 0.0
      %2397 = vmatpush1.msra.mxu0 %v2365
      %2398 = vmatprep.subr.mxu0 0.0
      %2399 = vmatpush1.msra.mxu0 0.0
      %2400 = vmatprep.subr.mxu0 0.0
      %2401 = vmatpush1.msra.mxu0 0.0
      %2402 = vmatprep.subr.mxu0 0.0
      %2403 = vmatpush1.msra.mxu0 0.0
      %2404 = vmatprep.subr.mxu0 0.0
      %2405 = vmatpush1.msra.mxu0 0.0
      %2406 = vmatprep.subr.mxu0 0.0
      %2407 = vmatpush1.msra.mxu0 0.0
      %2408 = vmatprep.subr.mxu0 0.0
      %2409 = vmatpush1.msra.mxu0 0.0
      %2410 = vmatprep.subr.mxu0 0.0
      %2411 = vmatpush1.msra.mxu0 0.0
      %2412 = vmatprep.subr.mxu0 0.0
      %2413 = vmatpush1.msra.mxu0 0.0
      %2414 = vmatprep.subr.mxu0 0.0
      %2415 = vmatpush1.msra.mxu0 0.0
      %2416 = vmatprep.subr.mxu0 0.0
      %2417 = vmatpush1.msra.mxu0 0.0
      %2418 = vmatprep.subr.mxu0 0.0
      %2419 = vmatpush1.msra.mxu0 0.0
      %2420 = vmatprep.subr.mxu0 0.0
      %2421 = vmatpush1.msra.mxu0 0.0
      %2422 = vmatprep.subr.mxu0 0.0
      %2423 = vmatpush1.msra.mxu0 0.0
      %2424 = vmatprep.subr.mxu0 0.0
      %2425 = vmatpush1.msra.mxu0 0.0
      %2426 = vmatprep.subr.mxu0 0.0
      %2427 = vmatpush1.msra.mxu0 0.0
      %2428 = vmatprep.subr.mxu0 0.0
      %2429 = vmatpush1.msra.mxu0 0.0
      %2430 = vmatprep.mubr.f32.mxu0 0.0
      %2431 = vmatmul.mubr.f32.gmra.mrb[0].mxu0 1.0
      %v2432 = vpop.f32.mrb[0].mxu0
      %v2433 = vadd.f32 0.0, %v2432
      %v2434 = vpop.f32.mrb[0].mxu0
      %2435 = vdwg.mxu0
      %v2436 = vmul.f32 %v2350, %v2350
      %v2437 = vmul.f32 %v2351, %v2351
      %v2438 = vmul.f32 %v2352, %v2352
      %v2439 = vmul.f32 %v2353, %v2353
      %v2440 = vmul.f32 %v2354, %v2354
      %v2441 = vmul.f32 %v2355, %v2355
      %v2442 = vmul.f32 %v2356, %v2356
      %v2443 = vmul.f32 %v2357, %v2357
      %v2444 = vmul.f32 %v2358, %v2358
      %v2445 = vmul.f32 %v2359, %v2359
      %v2446 = vmul.f32 %v2360, %v2360
      %v2447 = vmul.f32 %v2361, %v2361
      %v2448 = vmul.f32 %v2362, %v2362
      %v2449 = vmul.f32 %v2363, %v2363
      %v2450 = vmul.f32 %v2364, %v2364
      %v2451 = vmul.f32 %v2365, %v2365
      %2452 = vmatprep.subr.mxu0 0.0
      %2453 = vmatpush1.msra.mxu0 %v2436
      %2454 = vmatprep.subr.mxu0 0.0
      %2455 = vmatpush1.msra.mxu0 %v2437
      %2456 = vmatprep.subr.mxu0 0.0
      %2457 = vmatpush1.msra.mxu0 %v2438
      %2458 = vmatprep.subr.mxu0 0.0
      %2459 = vmatpush1.msra.mxu0 %v2439
      %2460 = vmatprep.subr.mxu0 0.0
      %2461 = vmatpush1.msra.mxu0 %v2440
      %2462 = vmatprep.subr.mxu0 0.0
      %2463 = vmatpush1.msra.mxu0 %v2441
      %2464 = vmatprep.subr.mxu0 0.0
      %2465 = vmatpush1.msra.mxu0 %v2442
      %2466 = vmatprep.subr.mxu0 0.0
      %2467 = vmatpush1.msra.mxu0 %v2443
      %2468 = vmatprep.subr.mxu0 0.0
      %2469 = vmatpush1.msra.mxu0 %v2444
      %2470 = vmatprep.subr.mxu0 0.0
      %2471 = vmatpush1.msra.mxu0 %v2445
      %2472 = vmatprep.subr.mxu0 0.0
      %2473 = vmatpush1.msra.mxu0 %v2446
      %2474 = vmatprep.subr.mxu0 0.0
      %2475 = vmatpush1.msra.mxu0 %v2447
      %2476 = vmatprep.subr.mxu0 0.0
      %2477 = vmatpush1.msra.mxu0 %v2448
      %2478 = vmatprep.subr.mxu0 0.0
      %2479 = vmatpush1.msra.mxu0 %v2449
      %2480 = vmatprep.subr.mxu0 0.0
      %2481 = vmatpush1.msra.mxu0 %v2450
      %2482 = vmatprep.subr.mxu0 0.0
      %2483 = vmatpush1.msra.mxu0 %v2451
      %2484 = vmatprep.subr.mxu0 0.0
      %2485 = vmatpush1.msra.mxu0 0.0
      %2486 = vmatprep.subr.mxu0 0.0
      %2487 = vmatpush1.msra.mxu0 0.0
      %2488 = vmatprep.subr.mxu0 0.0
      %2489 = vmatpush1.msra.mxu0 0.0
      %2490 = vmatprep.subr.mxu0 0.0
      %2491 = vmatpush1.msra.mxu0 0.0
      %2492 = vmatprep.subr.mxu0 0.0
      %2493 = vmatpush1.msra.mxu0 0.0
      %2494 = vmatprep.subr.mxu0 0.0
      %2495 = vmatpush1.msra.mxu0 0.0
      %2496 = vmatprep.subr.mxu0 0.0
      %2497 = vmatpush1.msra.mxu0 0.0
      %2498 = vmatprep.subr.mxu0 0.0
      %2499 = vmatpush1.msra.mxu0 0.0
      %2500 = vmatprep.subr.mxu0 0.0
      %2501 = vmatpush1.msra.mxu0 0.0
      %2502 = vmatprep.subr.mxu0 0.0
      %2503 = vmatpush1.msra.mxu0 0.0
      %2504 = vmatprep.subr.mxu0 0.0
      %2505 = vmatpush1.msra.mxu0 0.0
      %2506 = vmatprep.subr.mxu0 0.0
      %2507 = vmatpush1.msra.mxu0 0.0
      %2508 = vmatprep.subr.mxu0 0.0
      %2509 = vmatpush1.msra.mxu0 0.0
      %2510 = vmatprep.subr.mxu0 0.0
      %2511 = vmatpush1.msra.mxu0 0.0
      %2512 = vmatprep.subr.mxu0 0.0
      %2513 = vmatpush1.msra.mxu0 0.0
      %2514 = vmatprep.subr.mxu0 0.0
      %2515 = vmatpush1.msra.mxu0 0.0
      %2516 = vmatprep.mubr.f32.mxu0 0.0
      %2517 = vmatmul.mubr.f32.gmra.mrb[0].mxu0 1.0
      %v2518 = vpop.f32.mrb[0].mxu0
      %v2519 = vadd.f32 0.0, %v2518
      %v2520 = vpop.f32.mrb[0].mxu0
      %2521 = vdwg.mxu0
      %v2523 = vrot.slane %v2519, 7
      %vm2525 = vcmask 1040384
      %v2526 = vsel %vm2525, %v2433, %v2523
      %vm2527 = vcmask 25600
      %2528 = vst.msk [vmem:[%s460] sm:$0x3] %vm2527, %v2526
      %vm2529 = vcmask 31744
      %2530 = vst.msk [vmem:[%s451] sm:$0xff] %vm2529, %v2350
      %2531 = vst.msk [vmem:[%s451 + $0x8] sm:$0xff] %vm2529, %v2351
      %2532 = vst.msk [vmem:[%s451 + $0x10] sm:$0xff] %vm2529, %v2352
      %2533 = vst.msk [vmem:[%s451 + $0x18] sm:$0xff] %vm2529, %v2353
      %2534 = vst.msk [vmem:[%s451 + $0x20] sm:$0xff] %vm2529, %v2354
      %2535 = vst.msk [vmem:[%s451 + $0x28] sm:$0xff] %vm2529, %v2355
      %2536 = vst.msk [vmem:[%s451 + $0x30] sm:$0xff] %vm2529, %v2356
      %2537 = vst.msk [vmem:[%s451 + $0x38] sm:$0xff] %vm2529, %v2357
      %2538 = vst.msk [vmem:[%s451 + $0x40] sm:$0xff] %vm2529, %v2358
      %2539 = vst.msk [vmem:[%s451 + $0x48] sm:$0xff] %vm2529, %v2359
      %2540 = vst.msk [vmem:[%s451 + $0x50] sm:$0xff] %vm2529, %v2360
      %2541 = vst.msk [vmem:[%s451 + $0x58] sm:$0xff] %vm2529, %v2361
      %2542 = vst.msk [vmem:[%s451 + $0x60] sm:$0xff] %vm2529, %v2362
      %2543 = vst.msk [vmem:[%s451 + $0x68] sm:$0xff] %vm2529, %v2363
      %2544 = vst.msk [vmem:[%s451 + $0x70] sm:$0xff] %vm2529, %v2364
      %2545 = vst.msk [vmem:[%s451 + $0x78] sm:$0xff] %vm2529, %v2365
      %s2546 = smul.u32 8, %s24
      %p2547 = scmp.lt.s32.totalorder %s23, 1
      %s2548 = scalar_select %p2547, %s23, 1
      %p2549 = scmp.lt.s32.totalorder %s2546, 15
      %s2550 = scalar_select %p2549, %s2546, 15
      %s2551 = smul.addr %s2550, 2
      %s2552 = smul.addr %s2548, 32
      %s2553 = sadd.s32 %s2551, %s2552
      %s2554 = smul.addr %s2553, 8
      %s2555 = scalar_lea.vmem %s6, %s2554
      %p2556 = scmp.lt.s32.totalorder %s23, 1
      %s2557 = scalar_select %p2556, %s23, 1
      %p2558 = scmp.lt.s32.totalorder %s24, 1
      %s2559 = scalar_select %p2558, %s24, 1
      %s2560 = smul.addr %s2557, 2
      %s2561 = sadd.s32 %s2559, %s2560
      %s2562 = smul.addr %s2561, 2
      %s2563 = scalar_lea.vmem %s7, %s2562
      // Predicated region
      $region45: #{residual_layer_forward.4} parent=43 // pred_check
        %p2564 = pneg %p202
      $region46: #{residual_layer_forward.4} parent=43 // pred_check_branch
        %2566 = sbr.rel (%p2564) target = $region48
      $region47: #{residual_layer_forward.4} parent=43 // pred_region
        %s2567 = smul.u32 8, %s24
      $region48: #{residual_layer_forward.4} parent=43 // pred_fallthru
        _
      // Predicated region
      $region49: #{residual_layer_forward.4} parent=43 // pred_check
        %p2568 = pneg %p230
      $region50: #{residual_layer_forward.4} parent=43 // pred_check_branch
        %2570 = sbr.rel (%p2568) target = $region52
      $region51: #{residual_layer_forward.4} parent=43 // pred_region
        _
      $region52: #{residual_layer_forward.4} parent=43 // pred_fallthru
        _
    $region44: #{residual_layer_forward.4} parent=5 // pred_fallthru
      _
    %p2571 = scmp.le.s32.totalorder 2, %s14
    // Predicated region
    $region53: #{residual_layer_forward.4} parent=5 // pred_check
      %p2572 = pneg %p2571
    $region54: #{residual_layer_forward.4} parent=5 // pred_check_branch
      %2574 = sbr.rel (%p2572) target = $region56
    $region55: #{residual_layer_forward.4} parent=5 // pred_region
      %s2575 = ssub.s32 %s14, 2
      // Predicated region
      $region57: #{residual_layer_forward.4} parent=55 // pred_check
        %p2576 = pneg %p208
      $region58: #{residual_layer_forward.4} parent=55 // pred_check_branch
        %2578 = sbr.rel (%p2576) target = $region60
      $region59: #{residual_layer_forward.4} parent=55 // pred_region
        %s2579 = smul.u32 8, %s26
        %p2580 = scmp.lt.s32.totalorder %s25, 1
        %s2581 = scalar_select %p2580, %s25, 1
        %p2582 = scmp.lt.s32.totalorder %s2579, 15
        %s2583 = scalar_select %p2582, %s2579, 15
        %s2584 = smul.addr %s2583, 2
        %s2585 = smul.addr %s2581, 32
        %s2586 = sadd.s32 %s2584, %s2585
        %s2587 = smul.addr %s2586, 8
        %s2588 = scalar_lea.vmem %s6, %s2587
      $region60: #{residual_layer_forward.4} parent=55 // pred_fallthru
        _
      // Predicated region
      $region61: #{residual_layer_forward.4} parent=55 // pred_check
        %p2589 = pneg %p236
      $region62: #{residual_layer_forward.4} parent=55 // pred_check_branch
        %2591 = sbr.rel (%p2589) target = $region64
      $region63: #{residual_layer_forward.4} parent=55 // pred_region
        %p2592 = scmp.lt.s32.totalorder %s25, 1
        %s2593 = scalar_select %p2592, %s25, 1
        %p2594 = scmp.lt.s32.totalorder %s26, 1
        %s2595 = scalar_select %p2594, %s26, 1
        %s2596 = smul.addr %s2593, 2
        %s2597 = sadd.s32 %s2595, %s2596
        %s2598 = smul.addr %s2597, 2
        %s2599 = scalar_lea.vmem %s7, %s2598
      $region64: #{residual_layer_forward.4} parent=55 // pred_fallthru
        _
    $region56: #{residual_layer_forward.4} parent=5 // pred_fallthru
      _
  $region6: #{residual_layer_forward.4} parent=0 // loop_footer
    %s18 = sadd.s32 1, %s14
  $region7: #{residual_layer_forward.4} parent=0 // loop_footer_branch
    %13 = sbr.rel target = $region3
  $region8: #{residual_layer_forward.4} parent=0 // loop_exit
    _

// kernel: residual_layer_forward.5
$region0: #{residual_layer_forward.5}
  #allocation0 [shape = 'u32[]', space=smem, size = 0x4, offset = 0x4, fixed_abs, tag = 'smem constant byte address 0x4 - core index']
  #allocation1 [shape = 'u32[144,128]{1,0:T(1,128)}', space=vmem, size = 0x12000, scoped, tag = 'internal scratch']
  %s0 = inlined_call_operand.vmem [shape: f32[8,256], index: 0, kind: input, shape index: {}]
  %s1 = inlined_call_operand.vmem [shape: f32[1,256], index: 1, kind: input, shape index: {}]
  %s2 = inlined_call_operand.vmem [shape: f32[1,256], index: 2, kind: input, shape index: {}]
  %s3 = inlined_call_operand.vmem [shape: f32[8,256], index: 3, kind: output, shape index: {}]
  %s4 = sld [smem:[#allocation0]]
  $region22: #{residual_layer_forward.5} parent=0
    _
  %s6 = ssub.s32 1, %s4
  %s7 = scalar_select 0, %s6, %s4
  // Predicated region
  $region2: #{residual_layer_forward.5} parent=0 // pred_check
    _
  $region3: #{residual_layer_forward.5} parent=0 // pred_check_branch
    %9 = sbr.rel (0) target = $region5
  $region4: #{residual_layer_forward.5} parent=0 // pred_region
    _
  $region5: #{residual_layer_forward.5} parent=0 // pred_fallthru
    _
  // Predicated region
  $region6: #{residual_layer_forward.5} parent=0 // pred_check
    _
  $region7: #{residual_layer_forward.5} parent=0 // pred_check_branch
    %11 = sbr.rel (0) target = $region9
  $region8: #{residual_layer_forward.5} parent=0 // pred_region
    _
  $region9: #{residual_layer_forward.5} parent=0 // pred_fallthru
    _
  // Predicated region
  $region10: #{residual_layer_forward.5} parent=0 // pred_check
    _
  $region11: #{residual_layer_forward.5} parent=0 // pred_check_branch
    %13 = sbr.rel (0) target = $region13
  $region12: #{residual_layer_forward.5} parent=0 // pred_region
    _
  $region13: #{residual_layer_forward.5} parent=0 // pred_fallthru
    _
  %v14 = vld [vmem:[%s0] sm:$0xff]
  %v15 = vld [vmem:[%s0 + $0x8] sm:$0xff]
  %v16 = vld [vmem:[%s1] sm:$0x3]
  %v18 = vlaneseq
  %v19 = vshrl.u32 %v18, 7
  %v20 = vsub.s32 0, %v19
  %v21 = vrot.slane %v16, %v20
  %v22 = vlaneseq
  %v23 = vshrl.u32 %v22, 7
  %v24 = vsub.s32 1, %v23
  %v25 = vrot.slane %v16, %v24
  %v28 = vmul.f32 %v14, %v21
  %v29 = vmul.f32 %v15, %v25
  %v30 = vld [vmem:[%s2] sm:$0x3]
  %v32 = vlaneseq
  %v33 = vshrl.u32 %v32, 7
  %v34 = vsub.s32 0, %v33
  %v35 = vrot.slane %v30, %v34
  %v36 = vlaneseq
  %v37 = vshrl.u32 %v36, 7
  %v38 = vsub.s32 1, %v37
  %v39 = vrot.slane %v30, %v38
  %v42 = vadd.f32 %v28, %v35
  %v43 = vadd.f32 %v29, %v39
  %vm44 = vcmp.ge.f32.partialorder %v42, 0.0
  %vm45 = vcmp.ge.f32.partialorder %v43, 0.0
  %v46 = vmul.f32 %v42, 0.01
  %v47 = vmul.f32 %v43, 0.01
  %v48 = vsel %vm44, %v42, %v46
  %v49 = vsel %vm45, %v43, %v47
  %50 = vst [vmem:[%s3] sm:$0xff] %v48
  %51 = vst [vmem:[%s3 + $0x8] sm:$0xff] %v49
  // Predicated region
  $region14: #{residual_layer_forward.5} parent=0 // pred_check
    _
  $region15: #{residual_layer_forward.5} parent=0 // pred_check_branch
    %53 = sbr.rel (0) target = $region17
  $region16: #{residual_layer_forward.5} parent=0 // pred_region
    _
  $region17: #{residual_layer_forward.5} parent=0 // pred_fallthru
    _
  // Predicated region
  $region18: #{residual_layer_forward.5} parent=0 // pred_check
    _
  $region19: #{residual_layer_forward.5} parent=0 // pred_check_branch
    %55 = sbr.rel (0) target = $region21
  $region20: #{residual_layer_forward.5} parent=0 // pred_region
    _
  $region21: #{residual_layer_forward.5} parent=0 // pred_fallthru
    _

</llo_original>
